<compile_context>
chip_gen: v7x
topology: tpu7x:2x2x1
jax: 0.10.0
libtpu: 0.0.40
codegen_flags: <defaults>
</compile_context>

<pallas_src>
import jax
import jax.numpy as jnp
import numpy as np
from jax.experimental import pallas as pl
from jax.experimental.pallas import tpu as pltpu


# ----------------------------------------------------------------------------
# Fused kernel (BT images per grid step)
# ----------------------------------------------------------------------------
def _lenet5_kernel(x_ref, m1_ref, b1_ref, m2_ref, b2_ref,
                   w3_ref, b3_ref, w4_ref, b4_ref, w5_ref, b5_ref, o_ref):
    f32 = jnp.float32
    BT = o_ref.shape[0]

    def half_max(y):                       # 2x2 pool along W (column halves)
        h = y.shape[-1] // 2
        return jnp.maximum(y[:, :h], y[:, h:])

    # Hoist bias loads once (JAX does not CSE repeated ref reads).
    b1 = b1_ref[...]                       # (1, 84)
    b2 = b2_ref[...]                       # (1, 80)

    # ---- conv1 (5x5, pad=2) + ReLU + 2x2 max-pool --------------------------
    # x_ref[0, r, j*BT + b, :] == zero-padded 32x32 input row (4*j + r) of
    # image b.  acc1[d] rows m*BT + b == pre-pool conv1 row (4*m + d),
    # columns laid out [wo even | wo odd] (168) so W-pooling is a half-max.
    acc1 = [jnp.zeros((7 * BT, 168), f32) for _ in range(4)]
    for kh in range(5):
        mk = m1_ref[kh]                    # (32, 168): one load, four uses
        for d in range(4):
            s = d + kh
            r, j0 = s % 4, s // 4
            acc1[d] = acc1[d] + jnp.dot(
                x_ref[0, r, j0 * BT:(j0 + 7) * BT, :], mk,
                preferred_element_type=f32)
    # relu(maxpool(y)) == relu(max(y) + bias): bias constant over the window,
    # ReLU monotone.  Pooled conv1 rows: even (2m) / odd (2m+1), (7*BT, 84),
    # row m*BT + b, col ci*14 + w.
    a1_e = jnp.maximum(jnp.maximum(half_max(acc1[0]), half_max(acc1[1])) + b1, 0.0)
    a1_o = jnp.maximum(jnp.maximum(half_max(acc1[2]), half_max(acc1[3])) + b1, 0.0)

    # ---- conv2 (5x5, valid) + ReLU + 2x2 max-pool ---------------------------
    # acc2[p] rows m*BT + b == pre-pool conv2 row (2*m + p), cols [even|odd].
    acc2 = [jnp.zeros((5 * BT, 160), f32) for _ in range(2)]
    for kh in range(5):
        mk = m2_ref[kh]                    # (84, 160): one load, two uses
        for p in range(2):
            s = p + kh
            src = a1_e if s % 2 == 0 else a1_o
            acc2[p] = acc2[p] + jnp.dot(
                src[(s // 2) * BT:(s // 2 + 5) * BT, :], mk,
                preferred_element_type=f32)
    # (5*BT, 80): row m*BT + b == pooled conv2 row m of image b, col co*5 + w.
    p2 = jnp.maximum(jnp.maximum(half_max(acc2[0]), half_max(acc2[1])) + b2, 0.0)

    # ---- fc3 -> ReLU -> fc4 -> ReLU -> output (all M = BT on the MXU) ------
    # torch.flatten(NCHW) order is folded into the (5, 80, 120) fc3 weight.
    h = jnp.zeros((BT, 120), f32)
    for m in range(5):
        h = h + jnp.dot(p2[m * BT:(m + 1) * BT, :], w3_ref[m],
                        preferred_element_type=f32)
    h = jnp.maximum(h + b3_ref[...], 0.0)                        # (BT, 120)
    h = jnp.maximum(jnp.dot(h, w4_ref[...], preferred_element_type=f32)
                    + b4_ref[...], 0.0)                          # (BT, 84)
    # Lane-dense (128-wide, zero-padded) classifier output.
    o_ref[...] = (jnp.dot(h, w5_ref[...], preferred_element_type=f32)
                  + b5_ref[...])                                 # (BT, 128)


# ----------------------------------------------------------------------------
# One-time host-side weight re-layout
# ----------------------------------------------------------------------------
def _conv1_band_mats(w1):
    """w1 (6,1,5,5) -> (5, 32, 168): y[ho,:] = sum_kh x_pad[ho+kh,:] @ M[kh];
    columns laid out as (wo%2)*84 + co*14 + wo//2 (pool-friendly)."""
    w1 = np.asarray(w1, np.float32)
    Cout, _, KH, KW = w1.shape
    Wo, Wp, Wh = 28, 32, 14
    m = np.zeros((KH, Wp, 2 * Cout * Wh), np.float32)
    co = np.arange(Cout)
    for kh in range(KH):
        for wo in range(Wo):
            col = (wo % 2) * Cout * Wh + co * Wh + wo // 2
            for kw in range(KW):
                m[kh, wo + kw, col] = w1[:, 0, kh, kw]
    return m


def _conv2_band_mats(w2):
    """w2 (16,6,5,5) -> (5, 84, 160): rows ci*14+wv, cols (wo%2)*80+co*5+wo//2."""
    w2 = np.asarray(w2, np.float32)
    Cout, Cin, KH, KW = w2.shape
    Wi, Wo, Wh = 14, 10, 5
    m = np.zeros((KH, Cin * Wi, 2 * Cout * Wh), np.float32)
    co = np.arange(Cout)
    for kh in range(KH):
        for ci in range(Cin):
            for wo in range(Wo):
                col = (wo % 2) * Cout * Wh + co * Wh + wo // 2
                for kw in range(KW):
                    m[kh, ci * Wi + wo + kw, col] = w2[:, ci, kh, kw]
    return m


def prepare_params(params):
    """Done once at init: every per-call transpose/reshape/pad lives here."""
    w1, b1, w2, b2, w3, b3, w4, b4, w5, b5 = (
        np.asarray(p, np.float32) for p in params)
    m1 = _conv1_band_mats(w1)                         # (5, 32, 168)
    m2 = _conv2_band_mats(w2)                         # (5, 84, 160)
    b1r = np.repeat(b1, 14)[None, :]                  # (1, 84)  col = co*14 + w
    b2r = np.repeat(b2, 5)[None, :]                   # (1, 80)  col = co*5  + w
    # fc3 weight permuted so the kernel's pooled (row, co*5+w) layout feeds it
    # directly (folds torch.flatten(NCHW) into the weight).
    w3p = np.transpose(w3.reshape(120, 16, 5, 5), (2, 1, 3, 0)).reshape(5, 80, 120)
    # Lane-dense classifier: pad 10 -> 128 output lanes (sliced in wrapper).
    w5t = np.zeros((84, 128), np.float32)
    w5t[:, :10] = w5.T
    b5p = np.zeros((1, 128), np.float32)
    b5p[0, :10] = b5
    prep = (m1, b1r, m2, b2r, w3p, b3[None, :], w4.T, b4[None, :], w5t, b5p)
    return tuple(jnp.asarray(a) for a in prep)


def _round_up(n, m):
    return ((n + m - 1) // m) * m


# ----------------------------------------------------------------------------
# Forward pass: one pallas_call, BT images per grid step
# ----------------------------------------------------------------------------
def lenet5_forward(x_nchw, prepared, block_batch=128):
    """x_nchw: (B, 1, 28, 28) float32 -> logits (B, 10).

    block_batch: images per grid step (rounded to a multiple of 8).  128 is a
    safe default for all generations (~9 MB VMEM); 256-512 improves FC-layer
    MXU fill on v6e/v7x if vmem_limit_bytes is raised accordingly.
    """
    m1, b1r, m2, b2r, w3p, b3r, w4t, b4r, w5t, b5r = prepared
    B = x_nchw.shape[0]
    assert x_nchw.shape[1:] == (1, 28, 28)

    bb = max(8, _round_up(int(block_batch), 8))
    BT = min(bb, _round_up(B, 8))                 # adapt to small batches
    nblocks = pl.cdiv(B, BT)
    Bp = nblocks * BT                             # zero-padded batch

    # Input-side prep (fused by XLA with the HBM load): pad batch to Bp, pad
    # spatially by 2, and lay rows out as (block, row%4, (row//4)*BT + b, 32)
    # so in-kernel H-pooling and batching need only static contiguous slices.
    xpad = jnp.pad(x_nchw[:, 0], ((0, Bp - B), (2, 2), (2, 2)))   # (Bp, 32, 32)
    xr = xpad.reshape(nblocks, BT, 8, 4, 32)      # (blk, b, j, r, col)
    xr = xr.transpose(0, 3, 2, 1, 4)              # (blk, r, j, b, col)
    xr = xr.reshape(nblocks, 4, 8 * BT, 32)       # middle axis = j*BT + b

    out = pl.pallas_call(
        _lenet5_kernel,
        out_shape=jax.ShapeDtypeStruct((Bp, 128), jnp.float32),
        grid=(nblocks,),
        in_specs=[
            pl.BlockSpec((1, 4, 8 * BT, 32), lambda i: (i, 0, 0, 0)),
            pl.BlockSpec(m1.shape, lambda i: (0, 0, 0)),
            pl.BlockSpec(b1r.shape, lambda i: (0, 0)),
            pl.BlockSpec(m2.shape, lambda i: (0, 0, 0)),
            pl.BlockSpec(b2r.shape, lambda i: (0, 0)),
            pl.BlockSpec(w3p.shape, lambda i: (0, 0, 0)),
            pl.BlockSpec(b3r.shape, lambda i: (0, 0)),
            pl.BlockSpec(w4t.shape, lambda i: (0, 0)),
            pl.BlockSpec(b4r.shape, lambda i: (0, 0)),
            pl.BlockSpec(w5t.shape, lambda i: (0, 0)),
            pl.BlockSpec(b5r.shape, lambda i: (0, 0)),
        ],
        out_specs=pl.BlockSpec((BT, 128), lambda i: (i, 0)),
        compiler_params=pltpu.CompilerParams(
            dimension_semantics=("parallel",),
            vmem_limit_bytes=32 * 1024 * 1024),
    )(xr, m1, b1r, m2, b2r, w3p, b3r, w4t, b4r, w5t, b5r)
    return out[:B, :10]


# ----------------------------------------------------------------------------
# Deterministic parameter init (PyTorch-default-like uniform(+-1/sqrt(fan_in)))
# ----------------------------------------------------------------------------
def init_params(key):
    ks = jax.random.split(key, 10)

    def u(k, shape, fan_in):
        bound = 1.0 / float(np.sqrt(fan_in))
        return jax.random.uniform(k, shape, jnp.float32, -bound, bound)

    w1 = u(ks[0], (6, 1, 5, 5), 1 * 5 * 5)
    b1 = u(ks[1], (6,), 1 * 5 * 5)
    w2 = u(ks[2], (16, 6, 5, 5), 6 * 5 * 5)
    b2 = u(ks[3], (16,), 6 * 5 * 5)
    w3 = u(ks[4], (120, 400), 400)
    b3 = u(ks[5], (120,), 400)
    w4 = u(ks[6], (84, 120), 120)
    b4 = u(ks[7], (84,), 120)
    w5 = u(ks[8], (10, 84), 84)
    b5 = u(ks[9], (10,), 84)
    return (w1, b1, w2, b2, w3, b3, w4, b4, w5, b5)


# ----------------------------------------------------------------------------
# Pure-JAX reference (mirrors the PyTorch forward) for correctness check
# ----------------------------------------------------------------------------
def lenet5_reference(x, params):
    w1, b1, w2, b2, w3, b3, w4, b4, w5, b5 = params
    hp = jax.lax.Precision.HIGHEST
    dn = ('NCHW', 'OIHW', 'NCHW')
    y = jax.lax.conv_general_dilated(x, w1, (1, 1), ((2, 2), (2, 2)),
                                     dimension_numbers=dn, precision=hp)
    y = jax.nn.relu(y + b1[None, :, None, None])
    y = jax.lax.reduce_window(y, -jnp.inf, jax.lax.max,
                              (1, 1, 2, 2), (1, 1, 2, 2), 'VALID')
    y = jax.lax.conv_general_dilated(y, w2, (1, 1), ((0, 0), (0, 0)),
                                     dimension_numbers=dn, precision=hp)
    y = jax.nn.relu(y + b2[None, :, None, None])
    y = jax.lax.reduce_window(y, -jnp.inf, jax.lax.max,
                              (1, 1, 2, 2), (1, 1, 2, 2), 'VALID')
    y = y.reshape(y.shape[0], -1)
    y = jax.nn.relu(jnp.dot(y, w3.T, precision=hp) + b3)
    y = jax.nn.relu(jnp.dot(y, w4.T, precision=hp) + b4)
    return jnp.dot(y, w5.T, precision=hp) + b5


# ----------------------------------------------------------------------------
if __name__ == "__main__":
    key = jax.random.PRNGKey(0)
    pkey, xkey = jax.random.split(key)
    params = init_params(pkey)
    prepared = prepare_params(params)

    fwd = jax.jit(lenet5_forward, static_argnames=("block_batch",))

    # Check 1: small batch (B=2), tail-padded into one BT=8 block.
    x1 = jax.random.normal(xkey, (2, 1, 28, 28), jnp.float32)
    out1 = jax.block_until_ready(fwd(x1, prepared))
    assert out1.shape == (2, 10), out1.shape
    ref1 = lenet5_reference(x1, params)
    err1 = float(jnp.max(jnp.abs(out1 - ref1)))
    if not bool(jnp.allclose(out1, ref1, atol=2e-3, rtol=2e-3)):
        raise RuntimeError(f"Pallas LeNet5 mismatch (B=2): max abs err = {err1}")

    # Check 2: B=20 with block_batch=8 -> 3 grid steps + padded tail block.
    x2 = jax.random.normal(jax.random.fold_in(xkey, 1), (20, 1, 28, 28),
                           jnp.float32)
    out2 = jax.block_until_ready(fwd(x2, prepared, block_batch=8))
    assert out2.shape == (20, 10), out2.shape
    ref2 = lenet5_reference(x2, params)
    err2 = float(jnp.max(jnp.abs(out2 - ref2)))
    if not bool(jnp.allclose(out2, ref2, atol=2e-3, rtol=2e-3)):
        raise RuntimeError(f"Pallas LeNet5 mismatch (B=20): max abs err = {err2}")

    print("KERNEL_OK")
</pallas_src>

<mosaic_0001>
module attributes {stable_mosaic.version = 11 : i64} {
  func.func @_lenet5_kernel(%arg0: i32, %arg1: memref<1x4x64x32xf32, #tpu.memory_space<vmem>>, %arg2: memref<5x32x168xf32, #tpu.memory_space<vmem>>, %arg3: memref<1x84xf32, #tpu.memory_space<vmem>>, %arg4: memref<5x84x160xf32, #tpu.memory_space<vmem>>, %arg5: memref<1x80xf32, #tpu.memory_space<vmem>>, %arg6: memref<5x80x120xf32, #tpu.memory_space<vmem>>, %arg7: memref<1x120xf32, #tpu.memory_space<vmem>>, %arg8: memref<120x84xf32, #tpu.memory_space<vmem>>, %arg9: memref<1x84xf32, #tpu.memory_space<vmem>>, %arg10: memref<84x128xf32, #tpu.memory_space<vmem>>, %arg11: memref<1x128xf32, #tpu.memory_space<vmem>>, %arg12: memref<8x128xf32, #tpu.memory_space<vmem>>) attributes {dimension_semantics = [#tpu.dimension_semantics<parallel>], iteration_bounds = array<i64: 1>, scalar_prefetch = 0 : i64, scratch_operands = 0 : i64, tpu.core_type = #tpu.core_type<tc>, window_params = [{transform_indices = @transform_0, window_bounds = array<i64: 1, 4, 64, 32>}, {pipeline_mode = #tpu.pipeline_mode<synchronous>, transform_indices = @transform_1, window_bounds = array<i64: 5, 32, 168>}, {pipeline_mode = #tpu.pipeline_mode<synchronous>, transform_indices = @transform_2, window_bounds = array<i64: 1, 84>}, {pipeline_mode = #tpu.pipeline_mode<synchronous>, transform_indices = @transform_3, window_bounds = array<i64: 5, 84, 160>}, {pipeline_mode = #tpu.pipeline_mode<synchronous>, transform_indices = @transform_4, window_bounds = array<i64: 1, 80>}, {pipeline_mode = #tpu.pipeline_mode<synchronous>, transform_indices = @transform_5, window_bounds = array<i64: 5, 80, 120>}, {pipeline_mode = #tpu.pipeline_mode<synchronous>, transform_indices = @transform_6, window_bounds = array<i64: 1, 120>}, {pipeline_mode = #tpu.pipeline_mode<synchronous>, transform_indices = @transform_7, window_bounds = array<i64: 120, 84>}, {pipeline_mode = #tpu.pipeline_mode<synchronous>, transform_indices = @transform_8, window_bounds = array<i64: 1, 84>}, {pipeline_mode = #tpu.pipeline_mode<synchronous>, transform_indices = @transform_9, window_bounds = array<i64: 84, 128>}, {pipeline_mode = #tpu.pipeline_mode<synchronous>, transform_indices = @transform_10, window_bounds = array<i64: 1, 128>}, {transform_indices = @transform_11, window_bounds = array<i64: 8, 128>}]} {
    %c0 = arith.constant 0 : index
    %c0_0 = arith.constant 0 : index
    %0 = vector.load %arg3[%c0, %c0_0] : memref<1x84xf32, #tpu.memory_space<vmem>>, vector<1x84xf32>
    %c0_1 = arith.constant 0 : index
    %c0_2 = arith.constant 0 : index
    %1 = vector.load %arg5[%c0_1, %c0_2] : memref<1x80xf32, #tpu.memory_space<vmem>>, vector<1x80xf32>
    %cst = arith.constant 0.000000e+00 : f32
    %2 = vector.broadcast %cst : f32 to vector<56x168xf32>
    %cst_3 = arith.constant 0.000000e+00 : f32
    %3 = vector.broadcast %cst_3 : f32 to vector<56x168xf32>
    %cst_4 = arith.constant 0.000000e+00 : f32
    %4 = vector.broadcast %cst_4 : f32 to vector<56x168xf32>
    %cst_5 = arith.constant 0.000000e+00 : f32
    %5 = vector.broadcast %cst_5 : f32 to vector<56x168xf32>
    %c0_6 = arith.constant 0 : index
    %c0_7 = arith.constant 0 : index
    %c0_8 = arith.constant 0 : index
    %6 = vector.load %arg2[%c0_6, %c0_7, %c0_8] : memref<5x32x168xf32, #tpu.memory_space<vmem>>, vector<1x32x168xf32>
    %7 = vector.shape_cast %6 : vector<1x32x168xf32> to vector<32x168xf32>
    %c0_9 = arith.constant 0 : index
    %c0_10 = arith.constant 0 : index
    %c0_11 = arith.constant 0 : index
    %c0_12 = arith.constant 0 : index
    %8 = vector.load %arg1[%c0_9, %c0_10, %c0_11, %c0_12] : memref<1x4x64x32xf32, #tpu.memory_space<vmem>>, vector<1x1x56x32xf32>
    %9 = vector.shape_cast %8 : vector<1x1x56x32xf32> to vector<56x32xf32>
    %cst_13 = arith.constant dense<0.000000e+00> : vector<56x168xf32>
    %10 = tpu.matmul %9, %7, %cst_13 {dimension_numbers = #tpu.dot_dimension_numbers<[1], [0], [0], [1], [0, 0, 1, 1], [], []>} : vector<56x32xf32>, vector<32x168xf32>, vector<56x168xf32> -> vector<56x168xf32>
    %11 = arith.addf %2, %10 : vector<56x168xf32>
    %c0_14 = arith.constant 0 : index
    %c1 = arith.constant 1 : index
    %c0_15 = arith.constant 0 : index
    %c0_16 = arith.constant 0 : index
    %12 = vector.load %arg1[%c0_14, %c1, %c0_15, %c0_16] : memref<1x4x64x32xf32, #tpu.memory_space<vmem>>, vector<1x1x56x32xf32>
    %13 = vector.shape_cast %12 : vector<1x1x56x32xf32> to vector<56x32xf32>
    %cst_17 = arith.constant dense<0.000000e+00> : vector<56x168xf32>
    %14 = tpu.matmul %13, %7, %cst_17 {dimension_numbers = #tpu.dot_dimension_numbers<[1], [0], [0], [1], [0, 0, 1, 1], [], []>} : vector<56x32xf32>, vector<32x168xf32>, vector<56x168xf32> -> vector<56x168xf32>
    %15 = arith.addf %3, %14 : vector<56x168xf32>
    %c0_18 = arith.constant 0 : index
    %c2 = arith.constant 2 : index
    %c0_19 = arith.constant 0 : index
    %c0_20 = arith.constant 0 : index
    %16 = vector.load %arg1[%c0_18, %c2, %c0_19, %c0_20] : memref<1x4x64x32xf32, #tpu.memory_space<vmem>>, vector<1x1x56x32xf32>
    %17 = vector.shape_cast %16 : vector<1x1x56x32xf32> to vector<56x32xf32>
    %cst_21 = arith.constant dense<0.000000e+00> : vector<56x168xf32>
    %18 = tpu.matmul %17, %7, %cst_21 {dimension_numbers = #tpu.dot_dimension_numbers<[1], [0], [0], [1], [0, 0, 1, 1], [], []>} : vector<56x32xf32>, vector<32x168xf32>, vector<56x168xf32> -> vector<56x168xf32>
    %19 = arith.addf %4, %18 : vector<56x168xf32>
    %c0_22 = arith.constant 0 : index
    %c3 = arith.constant 3 : index
    %c0_23 = arith.constant 0 : index
    %c0_24 = arith.constant 0 : index
    %20 = vector.load %arg1[%c0_22, %c3, %c0_23, %c0_24] : memref<1x4x64x32xf32, #tpu.memory_space<vmem>>, vector<1x1x56x32xf32>
    %21 = vector.shape_cast %20 : vector<1x1x56x32xf32> to vector<56x32xf32>
    %cst_25 = arith.constant dense<0.000000e+00> : vector<56x168xf32>
    %22 = tpu.matmul %21, %7, %cst_25 {dimension_numbers = #tpu.dot_dimension_numbers<[1], [0], [0], [1], [0, 0, 1, 1], [], []>} : vector<56x32xf32>, vector<32x168xf32>, vector<56x168xf32> -> vector<56x168xf32>
    %23 = arith.addf %5, %22 : vector<56x168xf32>
    %c1_26 = arith.constant 1 : index
    %c0_27 = arith.constant 0 : index
    %c0_28 = arith.constant 0 : index
    %24 = vector.load %arg2[%c1_26, %c0_27, %c0_28] : memref<5x32x168xf32, #tpu.memory_space<vmem>>, vector<1x32x168xf32>
    %25 = vector.shape_cast %24 : vector<1x32x168xf32> to vector<32x168xf32>
    %c0_29 = arith.constant 0 : index
    %c1_30 = arith.constant 1 : index
    %c0_31 = arith.constant 0 : index
    %c0_32 = arith.constant 0 : index
    %26 = vector.load %arg1[%c0_29, %c1_30, %c0_31, %c0_32] : memref<1x4x64x32xf32, #tpu.memory_space<vmem>>, vector<1x1x56x32xf32>
    %27 = vector.shape_cast %26 : vector<1x1x56x32xf32> to vector<56x32xf32>
    %cst_33 = arith.constant dense<0.000000e+00> : vector<56x168xf32>
    %28 = tpu.matmul %27, %25, %cst_33 {dimension_numbers = #tpu.dot_dimension_numbers<[1], [0], [0], [1], [0, 0, 1, 1], [], []>} : vector<56x32xf32>, vector<32x168xf32>, vector<56x168xf32> -> vector<56x168xf32>
    %29 = arith.addf %11, %28 : vector<56x168xf32>
    %c0_34 = arith.constant 0 : index
    %c2_35 = arith.constant 2 : index
    %c0_36 = arith.constant 0 : index
    %c0_37 = arith.constant 0 : index
    %30 = vector.load %arg1[%c0_34, %c2_35, %c0_36, %c0_37] : memref<1x4x64x32xf32, #tpu.memory_space<vmem>>, vector<1x1x56x32xf32>
    %31 = vector.shape_cast %30 : vector<1x1x56x32xf32> to vector<56x32xf32>
    %cst_38 = arith.constant dense<0.000000e+00> : vector<56x168xf32>
    %32 = tpu.matmul %31, %25, %cst_38 {dimension_numbers = #tpu.dot_dimension_numbers<[1], [0], [0], [1], [0, 0, 1, 1], [], []>} : vector<56x32xf32>, vector<32x168xf32>, vector<56x168xf32> -> vector<56x168xf32>
    %33 = arith.addf %15, %32 : vector<56x168xf32>
    %c0_39 = arith.constant 0 : index
    %c3_40 = arith.constant 3 : index
    %c0_41 = arith.constant 0 : index
    %c0_42 = arith.constant 0 : index
    %34 = vector.load %arg1[%c0_39, %c3_40, %c0_41, %c0_42] : memref<1x4x64x32xf32, #tpu.memory_space<vmem>>, vector<1x1x56x32xf32>
    %35 = vector.shape_cast %34 : vector<1x1x56x32xf32> to vector<56x32xf32>
    %cst_43 = arith.constant dense<0.000000e+00> : vector<56x168xf32>
    %36 = tpu.matmul %35, %25, %cst_43 {dimension_numbers = #tpu.dot_dimension_numbers<[1], [0], [0], [1], [0, 0, 1, 1], [], []>} : vector<56x32xf32>, vector<32x168xf32>, vector<56x168xf32> -> vector<56x168xf32>
    %37 = arith.addf %19, %36 : vector<56x168xf32>
    %c0_44 = arith.constant 0 : index
    %c0_45 = arith.constant 0 : index
    %c8 = arith.constant 8 : index
    %c0_46 = arith.constant 0 : index
    %38 = vector.load %arg1[%c0_44, %c0_45, %c8, %c0_46] : memref<1x4x64x32xf32, #tpu.memory_space<vmem>>, vector<1x1x56x32xf32>
    %39 = vector.shape_cast %38 : vector<1x1x56x32xf32> to vector<56x32xf32>
    %cst_47 = arith.constant dense<0.000000e+00> : vector<56x168xf32>
    %40 = tpu.matmul %39, %25, %cst_47 {dimension_numbers = #tpu.dot_dimension_numbers<[1], [0], [0], [1], [0, 0, 1, 1], [], []>} : vector<56x32xf32>, vector<32x168xf32>, vector<56x168xf32> -> vector<56x168xf32>
    %41 = arith.addf %23, %40 : vector<56x168xf32>
    %c2_48 = arith.constant 2 : index
    %c0_49 = arith.constant 0 : index
    %c0_50 = arith.constant 0 : index
    %42 = vector.load %arg2[%c2_48, %c0_49, %c0_50] : memref<5x32x168xf32, #tpu.memory_space<vmem>>, vector<1x32x168xf32>
    %43 = vector.shape_cast %42 : vector<1x32x168xf32> to vector<32x168xf32>
    %c0_51 = arith.constant 0 : index
    %c2_52 = arith.constant 2 : index
    %c0_53 = arith.constant 0 : index
    %c0_54 = arith.constant 0 : index
    %44 = vector.load %arg1[%c0_51, %c2_52, %c0_53, %c0_54] : memref<1x4x64x32xf32, #tpu.memory_space<vmem>>, vector<1x1x56x32xf32>
    %45 = vector.shape_cast %44 : vector<1x1x56x32xf32> to vector<56x32xf32>
    %cst_55 = arith.constant dense<0.000000e+00> : vector<56x168xf32>
    %46 = tpu.matmul %45, %43, %cst_55 {dimension_numbers = #tpu.dot_dimension_numbers<[1], [0], [0], [1], [0, 0, 1, 1], [], []>} : vector<56x32xf32>, vector<32x168xf32>, vector<56x168xf32> -> vector<56x168xf32>
    %47 = arith.addf %29, %46 : vector<56x168xf32>
    %c0_56 = arith.constant 0 : index
    %c3_57 = arith.constant 3 : index
    %c0_58 = arith.constant 0 : index
    %c0_59 = arith.constant 0 : index
    %48 = vector.load %arg1[%c0_56, %c3_57, %c0_58, %c0_59] : memref<1x4x64x32xf32, #tpu.memory_space<vmem>>, vector<1x1x56x32xf32>
    %49 = vector.shape_cast %48 : vector<1x1x56x32xf32> to vector<56x32xf32>
    %cst_60 = arith.constant dense<0.000000e+00> : vector<56x168xf32>
    %50 = tpu.matmul %49, %43, %cst_60 {dimension_numbers = #tpu.dot_dimension_numbers<[1], [0], [0], [1], [0, 0, 1, 1], [], []>} : vector<56x32xf32>, vector<32x168xf32>, vector<56x168xf32> -> vector<56x168xf32>
    %51 = arith.addf %33, %50 : vector<56x168xf32>
    %c0_61 = arith.constant 0 : index
    %c0_62 = arith.constant 0 : index
    %c8_63 = arith.constant 8 : index
    %c0_64 = arith.constant 0 : index
    %52 = vector.load %arg1[%c0_61, %c0_62, %c8_63, %c0_64] : memref<1x4x64x32xf32, #tpu.memory_space<vmem>>, vector<1x1x56x32xf32>
    %53 = vector.shape_cast %52 : vector<1x1x56x32xf32> to vector<56x32xf32>
    %cst_65 = arith.constant dense<0.000000e+00> : vector<56x168xf32>
    %54 = tpu.matmul %53, %43, %cst_65 {dimension_numbers = #tpu.dot_dimension_numbers<[1], [0], [0], [1], [0, 0, 1, 1], [], []>} : vector<56x32xf32>, vector<32x168xf32>, vector<56x168xf32> -> vector<56x168xf32>
    %55 = arith.addf %37, %54 : vector<56x168xf32>
    %c0_66 = arith.constant 0 : index
    %c1_67 = arith.constant 1 : index
    %c8_68 = arith.constant 8 : index
    %c0_69 = arith.constant 0 : index
    %56 = vector.load %arg1[%c0_66, %c1_67, %c8_68, %c0_69] : memref<1x4x64x32xf32, #tpu.memory_space<vmem>>, vector<1x1x56x32xf32>
    %57 = vector.shape_cast %56 : vector<1x1x56x32xf32> to vector<56x32xf32>
    %cst_70 = arith.constant dense<0.000000e+00> : vector<56x168xf32>
    %58 = tpu.matmul %57, %43, %cst_70 {dimension_numbers = #tpu.dot_dimension_numbers<[1], [0], [0], [1], [0, 0, 1, 1], [], []>} : vector<56x32xf32>, vector<32x168xf32>, vector<56x168xf32> -> vector<56x168xf32>
    %59 = arith.addf %41, %58 : vector<56x168xf32>
    %c3_71 = arith.constant 3 : index
    %c0_72 = arith.constant 0 : index
    %c0_73 = arith.constant 0 : index
    %60 = vector.load %arg2[%c3_71, %c0_72, %c0_73] : memref<5x32x168xf32, #tpu.memory_space<vmem>>, vector<1x32x168xf32>
    %61 = vector.shape_cast %60 : vector<1x32x168xf32> to vector<32x168xf32>
    %c0_74 = arith.constant 0 : index
    %c3_75 = arith.constant 3 : index
    %c0_76 = arith.constant 0 : index
    %c0_77 = arith.constant 0 : index
    %62 = vector.load %arg1[%c0_74, %c3_75, %c0_76, %c0_77] : memref<1x4x64x32xf32, #tpu.memory_space<vmem>>, vector<1x1x56x32xf32>
    %63 = vector.shape_cast %62 : vector<1x1x56x32xf32> to vector<56x32xf32>
    %cst_78 = arith.constant dense<0.000000e+00> : vector<56x168xf32>
    %64 = tpu.matmul %63, %61, %cst_78 {dimension_numbers = #tpu.dot_dimension_numbers<[1], [0], [0], [1], [0, 0, 1, 1], [], []>} : vector<56x32xf32>, vector<32x168xf32>, vector<56x168xf32> -> vector<56x168xf32>
    %65 = arith.addf %47, %64 : vector<56x168xf32>
    %c0_79 = arith.constant 0 : index
    %c0_80 = arith.constant 0 : index
    %c8_81 = arith.constant 8 : index
    %c0_82 = arith.constant 0 : index
    %66 = vector.load %arg1[%c0_79, %c0_80, %c8_81, %c0_82] : memref<1x4x64x32xf32, #tpu.memory_space<vmem>>, vector<1x1x56x32xf32>
    %67 = vector.shape_cast %66 : vector<1x1x56x32xf32> to vector<56x32xf32>
    %cst_83 = arith.constant dense<0.000000e+00> : vector<56x168xf32>
    %68 = tpu.matmul %67, %61, %cst_83 {dimension_numbers = #tpu.dot_dimension_numbers<[1], [0], [0], [1], [0, 0, 1, 1], [], []>} : vector<56x32xf32>, vector<32x168xf32>, vector<56x168xf32> -> vector<56x168xf32>
    %69 = arith.addf %51, %68 : vector<56x168xf32>
    %c0_84 = arith.constant 0 : index
    %c1_85 = arith.constant 1 : index
    %c8_86 = arith.constant 8 : index
    %c0_87 = arith.constant 0 : index
    %70 = vector.load %arg1[%c0_84, %c1_85, %c8_86, %c0_87] : memref<1x4x64x32xf32, #tpu.memory_space<vmem>>, vector<1x1x56x32xf32>
    %71 = vector.shape_cast %70 : vector<1x1x56x32xf32> to vector<56x32xf32>
    %cst_88 = arith.constant dense<0.000000e+00> : vector<56x168xf32>
    %72 = tpu.matmul %71, %61, %cst_88 {dimension_numbers = #tpu.dot_dimension_numbers<[1], [0], [0], [1], [0, 0, 1, 1], [], []>} : vector<56x32xf32>, vector<32x168xf32>, vector<56x168xf32> -> vector<56x168xf32>
    %73 = arith.addf %55, %72 : vector<56x168xf32>
    %c0_89 = arith.constant 0 : index
    %c2_90 = arith.constant 2 : index
    %c8_91 = arith.constant 8 : index
    %c0_92 = arith.constant 0 : index
    %74 = vector.load %arg1[%c0_89, %c2_90, %c8_91, %c0_92] : memref<1x4x64x32xf32, #tpu.memory_space<vmem>>, vector<1x1x56x32xf32>
    %75 = vector.shape_cast %74 : vector<1x1x56x32xf32> to vector<56x32xf32>
    %cst_93 = arith.constant dense<0.000000e+00> : vector<56x168xf32>
    %76 = tpu.matmul %75, %61, %cst_93 {dimension_numbers = #tpu.dot_dimension_numbers<[1], [0], [0], [1], [0, 0, 1, 1], [], []>} : vector<56x32xf32>, vector<32x168xf32>, vector<56x168xf32> -> vector<56x168xf32>
    %77 = arith.addf %59, %76 : vector<56x168xf32>
    %c4 = arith.constant 4 : index
    %c0_94 = arith.constant 0 : index
    %c0_95 = arith.constant 0 : index
    %78 = vector.load %arg2[%c4, %c0_94, %c0_95] : memref<5x32x168xf32, #tpu.memory_space<vmem>>, vector<1x32x168xf32>
    %79 = vector.shape_cast %78 : vector<1x32x168xf32> to vector<32x168xf32>
    %c0_96 = arith.constant 0 : index
    %c0_97 = arith.constant 0 : index
    %c8_98 = arith.constant 8 : index
    %c0_99 = arith.constant 0 : index
    %80 = vector.load %arg1[%c0_96, %c0_97, %c8_98, %c0_99] : memref<1x4x64x32xf32, #tpu.memory_space<vmem>>, vector<1x1x56x32xf32>
    %81 = vector.shape_cast %80 : vector<1x1x56x32xf32> to vector<56x32xf32>
    %cst_100 = arith.constant dense<0.000000e+00> : vector<56x168xf32>
    %82 = tpu.matmul %81, %79, %cst_100 {dimension_numbers = #tpu.dot_dimension_numbers<[1], [0], [0], [1], [0, 0, 1, 1], [], []>} : vector<56x32xf32>, vector<32x168xf32>, vector<56x168xf32> -> vector<56x168xf32>
    %83 = arith.addf %65, %82 : vector<56x168xf32>
    %c0_101 = arith.constant 0 : index
    %c1_102 = arith.constant 1 : index
    %c8_103 = arith.constant 8 : index
    %c0_104 = arith.constant 0 : index
    %84 = vector.load %arg1[%c0_101, %c1_102, %c8_103, %c0_104] : memref<1x4x64x32xf32, #tpu.memory_space<vmem>>, vector<1x1x56x32xf32>
    %85 = vector.shape_cast %84 : vector<1x1x56x32xf32> to vector<56x32xf32>
    %cst_105 = arith.constant dense<0.000000e+00> : vector<56x168xf32>
    %86 = tpu.matmul %85, %79, %cst_105 {dimension_numbers = #tpu.dot_dimension_numbers<[1], [0], [0], [1], [0, 0, 1, 1], [], []>} : vector<56x32xf32>, vector<32x168xf32>, vector<56x168xf32> -> vector<56x168xf32>
    %87 = arith.addf %69, %86 : vector<56x168xf32>
    %c0_106 = arith.constant 0 : index
    %c2_107 = arith.constant 2 : index
    %c8_108 = arith.constant 8 : index
    %c0_109 = arith.constant 0 : index
    %88 = vector.load %arg1[%c0_106, %c2_107, %c8_108, %c0_109] : memref<1x4x64x32xf32, #tpu.memory_space<vmem>>, vector<1x1x56x32xf32>
    %89 = vector.shape_cast %88 : vector<1x1x56x32xf32> to vector<56x32xf32>
    %cst_110 = arith.constant dense<0.000000e+00> : vector<56x168xf32>
    %90 = tpu.matmul %89, %79, %cst_110 {dimension_numbers = #tpu.dot_dimension_numbers<[1], [0], [0], [1], [0, 0, 1, 1], [], []>} : vector<56x32xf32>, vector<32x168xf32>, vector<56x168xf32> -> vector<56x168xf32>
    %91 = arith.addf %73, %90 : vector<56x168xf32>
    %c0_111 = arith.constant 0 : index
    %c3_112 = arith.constant 3 : index
    %c8_113 = arith.constant 8 : index
    %c0_114 = arith.constant 0 : index
    %92 = vector.load %arg1[%c0_111, %c3_112, %c8_113, %c0_114] : memref<1x4x64x32xf32, #tpu.memory_space<vmem>>, vector<1x1x56x32xf32>
    %93 = vector.shape_cast %92 : vector<1x1x56x32xf32> to vector<56x32xf32>
    %cst_115 = arith.constant dense<0.000000e+00> : vector<56x168xf32>
    %94 = tpu.matmul %93, %79, %cst_115 {dimension_numbers = #tpu.dot_dimension_numbers<[1], [0], [0], [1], [0, 0, 1, 1], [], []>} : vector<56x32xf32>, vector<32x168xf32>, vector<56x168xf32> -> vector<56x168xf32>
    %95 = arith.addf %77, %94 : vector<56x168xf32>
    %96 = vector.extract_strided_slice %83 {offsets = [0, 0], sizes = [56, 84], strides = [1, 1]} : vector<56x168xf32> to vector<56x84xf32>
    %97 = vector.extract_strided_slice %83 {offsets = [0, 84], sizes = [56, 84], strides = [1, 1]} : vector<56x168xf32> to vector<56x84xf32>
    %98 = arith.maximumf %96, %97 : vector<56x84xf32>
    %99 = vector.extract_strided_slice %87 {offsets = [0, 0], sizes = [56, 84], strides = [1, 1]} : vector<56x168xf32> to vector<56x84xf32>
    %100 = vector.extract_strided_slice %87 {offsets = [0, 84], sizes = [56, 84], strides = [1, 1]} : vector<56x168xf32> to vector<56x84xf32>
    %101 = arith.maximumf %99, %100 : vector<56x84xf32>
    %102 = arith.maximumf %98, %101 : vector<56x84xf32>
    %103 = vector.broadcast %0 : vector<1x84xf32> to vector<56x84xf32>
    %104 = arith.addf %102, %103 : vector<56x84xf32>
    %cst_116 = arith.constant 0.000000e+00 : f32
    %105 = vector.broadcast %cst_116 : f32 to vector<56x84xf32>
    %106 = arith.maximumf %104, %105 : vector<56x84xf32>
    %107 = vector.extract_strided_slice %91 {offsets = [0, 0], sizes = [56, 84], strides = [1, 1]} : vector<56x168xf32> to vector<56x84xf32>
    %108 = vector.extract_strided_slice %91 {offsets = [0, 84], sizes = [56, 84], strides = [1, 1]} : vector<56x168xf32> to vector<56x84xf32>
    %109 = arith.maximumf %107, %108 : vector<56x84xf32>
    %110 = vector.extract_strided_slice %95 {offsets = [0, 0], sizes = [56, 84], strides = [1, 1]} : vector<56x168xf32> to vector<56x84xf32>
    %111 = vector.extract_strided_slice %95 {offsets = [0, 84], sizes = [56, 84], strides = [1, 1]} : vector<56x168xf32> to vector<56x84xf32>
    %112 = arith.maximumf %110, %111 : vector<56x84xf32>
    %113 = arith.maximumf %109, %112 : vector<56x84xf32>
    %114 = vector.broadcast %0 : vector<1x84xf32> to vector<56x84xf32>
    %115 = arith.addf %113, %114 : vector<56x84xf32>
    %cst_117 = arith.constant 0.000000e+00 : f32
    %116 = vector.broadcast %cst_117 : f32 to vector<56x84xf32>
    %117 = arith.maximumf %115, %116 : vector<56x84xf32>
    %cst_118 = arith.constant 0.000000e+00 : f32
    %118 = vector.broadcast %cst_118 : f32 to vector<40x160xf32>
    %cst_119 = arith.constant 0.000000e+00 : f32
    %119 = vector.broadcast %cst_119 : f32 to vector<40x160xf32>
    %c0_120 = arith.constant 0 : index
    %c0_121 = arith.constant 0 : index
    %c0_122 = arith.constant 0 : index
    %120 = vector.load %arg4[%c0_120, %c0_121, %c0_122] : memref<5x84x160xf32, #tpu.memory_space<vmem>>, vector<1x84x160xf32>
    %121 = vector.shape_cast %120 : vector<1x84x160xf32> to vector<84x160xf32>
    %122 = vector.extract_strided_slice %106 {offsets = [0, 0], sizes = [40, 84], strides = [1, 1]} : vector<56x84xf32> to vector<40x84xf32>
    %cst_123 = arith.constant dense<0.000000e+00> : vector<40x160xf32>
    %123 = tpu.matmul %122, %121, %cst_123 {dimension_numbers = #tpu.dot_dimension_numbers<[1], [0], [0], [1], [0, 0, 1, 1], [], []>} : vector<40x84xf32>, vector<84x160xf32>, vector<40x160xf32> -> vector<40x160xf32>
    %124 = arith.addf %118, %123 : vector<40x160xf32>
    %125 = vector.extract_strided_slice %117 {offsets = [0, 0], sizes = [40, 84], strides = [1, 1]} : vector<56x84xf32> to vector<40x84xf32>
    %cst_124 = arith.constant dense<0.000000e+00> : vector<40x160xf32>
    %126 = tpu.matmul %125, %121, %cst_124 {dimension_numbers = #tpu.dot_dimension_numbers<[1], [0], [0], [1], [0, 0, 1, 1], [], []>} : vector<40x84xf32>, vector<84x160xf32>, vector<40x160xf32> -> vector<40x160xf32>
    %127 = arith.addf %119, %126 : vector<40x160xf32>
    %c1_125 = arith.constant 1 : index
    %c0_126 = arith.constant 0 : index
    %c0_127 = arith.constant 0 : index
    %128 = vector.load %arg4[%c1_125, %c0_126, %c0_127] : memref<5x84x160xf32, #tpu.memory_space<vmem>>, vector<1x84x160xf32>
    %129 = vector.shape_cast %128 : vector<1x84x160xf32> to vector<84x160xf32>
    %130 = vector.extract_strided_slice %117 {offsets = [0, 0], sizes = [40, 84], strides = [1, 1]} : vector<56x84xf32> to vector<40x84xf32>
    %cst_128 = arith.constant dense<0.000000e+00> : vector<40x160xf32>
    %131 = tpu.matmul %130, %129, %cst_128 {dimension_numbers = #tpu.dot_dimension_numbers<[1], [0], [0], [1], [0, 0, 1, 1], [], []>} : vector<40x84xf32>, vector<84x160xf32>, vector<40x160xf32> -> vector<40x160xf32>
    %132 = arith.addf %124, %131 : vector<40x160xf32>
    %133 = vector.extract_strided_slice %106 {offsets = [8, 0], sizes = [40, 84], strides = [1, 1]} : vector<56x84xf32> to vector<40x84xf32>
    %cst_129 = arith.constant dense<0.000000e+00> : vector<40x160xf32>
    %134 = tpu.matmul %133, %129, %cst_129 {dimension_numbers = #tpu.dot_dimension_numbers<[1], [0], [0], [1], [0, 0, 1, 1], [], []>} : vector<40x84xf32>, vector<84x160xf32>, vector<40x160xf32> -> vector<40x160xf32>
    %135 = arith.addf %127, %134 : vector<40x160xf32>
    %c2_130 = arith.constant 2 : index
    %c0_131 = arith.constant 0 : index
    %c0_132 = arith.constant 0 : index
    %136 = vector.load %arg4[%c2_130, %c0_131, %c0_132] : memref<5x84x160xf32, #tpu.memory_space<vmem>>, vector<1x84x160xf32>
    %137 = vector.shape_cast %136 : vector<1x84x160xf32> to vector<84x160xf32>
    %138 = vector.extract_strided_slice %106 {offsets = [8, 0], sizes = [40, 84], strides = [1, 1]} : vector<56x84xf32> to vector<40x84xf32>
    %cst_133 = arith.constant dense<0.000000e+00> : vector<40x160xf32>
    %139 = tpu.matmul %138, %137, %cst_133 {dimension_numbers = #tpu.dot_dimension_numbers<[1], [0], [0], [1], [0, 0, 1, 1], [], []>} : vector<40x84xf32>, vector<84x160xf32>, vector<40x160xf32> -> vector<40x160xf32>
    %140 = arith.addf %132, %139 : vector<40x160xf32>
    %141 = vector.extract_strided_slice %117 {offsets = [8, 0], sizes = [40, 84], strides = [1, 1]} : vector<56x84xf32> to vector<40x84xf32>
    %cst_134 = arith.constant dense<0.000000e+00> : vector<40x160xf32>
    %142 = tpu.matmul %141, %137, %cst_134 {dimension_numbers = #tpu.dot_dimension_numbers<[1], [0], [0], [1], [0, 0, 1, 1], [], []>} : vector<40x84xf32>, vector<84x160xf32>, vector<40x160xf32> -> vector<40x160xf32>
    %143 = arith.addf %135, %142 : vector<40x160xf32>
    %c3_135 = arith.constant 3 : index
    %c0_136 = arith.constant 0 : index
    %c0_137 = arith.constant 0 : index
    %144 = vector.load %arg4[%c3_135, %c0_136, %c0_137] : memref<5x84x160xf32, #tpu.memory_space<vmem>>, vector<1x84x160xf32>
    %145 = vector.shape_cast %144 : vector<1x84x160xf32> to vector<84x160xf32>
    %146 = vector.extract_strided_slice %117 {offsets = [8, 0], sizes = [40, 84], strides = [1, 1]} : vector<56x84xf32> to vector<40x84xf32>
    %cst_138 = arith.constant dense<0.000000e+00> : vector<40x160xf32>
    %147 = tpu.matmul %146, %145, %cst_138 {dimension_numbers = #tpu.dot_dimension_numbers<[1], [0], [0], [1], [0, 0, 1, 1], [], []>} : vector<40x84xf32>, vector<84x160xf32>, vector<40x160xf32> -> vector<40x160xf32>
    %148 = arith.addf %140, %147 : vector<40x160xf32>
    %149 = vector.extract_strided_slice %106 {offsets = [16, 0], sizes = [40, 84], strides = [1, 1]} : vector<56x84xf32> to vector<40x84xf32>
    %cst_139 = arith.constant dense<0.000000e+00> : vector<40x160xf32>
    %150 = tpu.matmul %149, %145, %cst_139 {dimension_numbers = #tpu.dot_dimension_numbers<[1], [0], [0], [1], [0, 0, 1, 1], [], []>} : vector<40x84xf32>, vector<84x160xf32>, vector<40x160xf32> -> vector<40x160xf32>
    %151 = arith.addf %143, %150 : vector<40x160xf32>
    %c4_140 = arith.constant 4 : index
    %c0_141 = arith.constant 0 : index
    %c0_142 = arith.constant 0 : index
    %152 = vector.load %arg4[%c4_140, %c0_141, %c0_142] : memref<5x84x160xf32, #tpu.memory_space<vmem>>, vector<1x84x160xf32>
    %153 = vector.shape_cast %152 : vector<1x84x160xf32> to vector<84x160xf32>
    %154 = vector.extract_strided_slice %106 {offsets = [16, 0], sizes = [40, 84], strides = [1, 1]} : vector<56x84xf32> to vector<40x84xf32>
    %cst_143 = arith.constant dense<0.000000e+00> : vector<40x160xf32>
    %155 = tpu.matmul %154, %153, %cst_143 {dimension_numbers = #tpu.dot_dimension_numbers<[1], [0], [0], [1], [0, 0, 1, 1], [], []>} : vector<40x84xf32>, vector<84x160xf32>, vector<40x160xf32> -> vector<40x160xf32>
    %156 = arith.addf %148, %155 : vector<40x160xf32>
    %157 = vector.extract_strided_slice %117 {offsets = [16, 0], sizes = [40, 84], strides = [1, 1]} : vector<56x84xf32> to vector<40x84xf32>
    %cst_144 = arith.constant dense<0.000000e+00> : vector<40x160xf32>
    %158 = tpu.matmul %157, %153, %cst_144 {dimension_numbers = #tpu.dot_dimension_numbers<[1], [0], [0], [1], [0, 0, 1, 1], [], []>} : vector<40x84xf32>, vector<84x160xf32>, vector<40x160xf32> -> vector<40x160xf32>
    %159 = arith.addf %151, %158 : vector<40x160xf32>
    %160 = vector.extract_strided_slice %156 {offsets = [0, 0], sizes = [40, 80], strides = [1, 1]} : vector<40x160xf32> to vector<40x80xf32>
    %161 = vector.extract_strided_slice %156 {offsets = [0, 80], sizes = [40, 80], strides = [1, 1]} : vector<40x160xf32> to vector<40x80xf32>
    %162 = arith.maximumf %160, %161 : vector<40x80xf32>
    %163 = vector.extract_strided_slice %159 {offsets = [0, 0], sizes = [40, 80], strides = [1, 1]} : vector<40x160xf32> to vector<40x80xf32>
    %164 = vector.extract_strided_slice %159 {offsets = [0, 80], sizes = [40, 80], strides = [1, 1]} : vector<40x160xf32> to vector<40x80xf32>
    %165 = arith.maximumf %163, %164 : vector<40x80xf32>
    %166 = arith.maximumf %162, %165 : vector<40x80xf32>
    %167 = vector.broadcast %1 : vector<1x80xf32> to vector<40x80xf32>
    %168 = arith.addf %166, %167 : vector<40x80xf32>
    %cst_145 = arith.constant 0.000000e+00 : f32
    %169 = vector.broadcast %cst_145 : f32 to vector<40x80xf32>
    %170 = arith.maximumf %168, %169 : vector<40x80xf32>
    %cst_146 = arith.constant 0.000000e+00 : f32
    %171 = vector.broadcast %cst_146 : f32 to vector<8x120xf32>
    %172 = vector.extract_strided_slice %170 {offsets = [0, 0], sizes = [8, 80], strides = [1, 1]} : vector<40x80xf32> to vector<8x80xf32>
    %c0_147 = arith.constant 0 : index
    %c0_148 = arith.constant 0 : index
    %c0_149 = arith.constant 0 : index
    %173 = vector.load %arg6[%c0_147, %c0_148, %c0_149] : memref<5x80x120xf32, #tpu.memory_space<vmem>>, vector<1x80x120xf32>
    %174 = vector.shape_cast %173 : vector<1x80x120xf32> to vector<80x120xf32>
    %cst_150 = arith.constant dense<0.000000e+00> : vector<8x120xf32>
    %175 = tpu.matmul %172, %174, %cst_150 {dimension_numbers = #tpu.dot_dimension_numbers<[1], [0], [0], [1], [0, 0, 1, 1], [], []>} : vector<8x80xf32>, vector<80x120xf32>, vector<8x120xf32> -> vector<8x120xf32>
    %176 = arith.addf %171, %175 : vector<8x120xf32>
    %177 = vector.extract_strided_slice %170 {offsets = [8, 0], sizes = [8, 80], strides = [1, 1]} : vector<40x80xf32> to vector<8x80xf32>
    %c1_151 = arith.constant 1 : index
    %c0_152 = arith.constant 0 : index
    %c0_153 = arith.constant 0 : index
    %178 = vector.load %arg6[%c1_151, %c0_152, %c0_153] : memref<5x80x120xf32, #tpu.memory_space<vmem>>, vector<1x80x120xf32>
    %179 = vector.shape_cast %178 : vector<1x80x120xf32> to vector<80x120xf32>
    %cst_154 = arith.constant dense<0.000000e+00> : vector<8x120xf32>
    %180 = tpu.matmul %177, %179, %cst_154 {dimension_numbers = #tpu.dot_dimension_numbers<[1], [0], [0], [1], [0, 0, 1, 1], [], []>} : vector<8x80xf32>, vector<80x120xf32>, vector<8x120xf32> -> vector<8x120xf32>
    %181 = arith.addf %176, %180 : vector<8x120xf32>
    %182 = vector.extract_strided_slice %170 {offsets = [16, 0], sizes = [8, 80], strides = [1, 1]} : vector<40x80xf32> to vector<8x80xf32>
    %c2_155 = arith.constant 2 : index
    %c0_156 = arith.constant 0 : index
    %c0_157 = arith.constant 0 : index
    %183 = vector.load %arg6[%c2_155, %c0_156, %c0_157] : memref<5x80x120xf32, #tpu.memory_space<vmem>>, vector<1x80x120xf32>
    %184 = vector.shape_cast %183 : vector<1x80x120xf32> to vector<80x120xf32>
    %cst_158 = arith.constant dense<0.000000e+00> : vector<8x120xf32>
    %185 = tpu.matmul %182, %184, %cst_158 {dimension_numbers = #tpu.dot_dimension_numbers<[1], [0], [0], [1], [0, 0, 1, 1], [], []>} : vector<8x80xf32>, vector<80x120xf32>, vector<8x120xf32> -> vector<8x120xf32>
    %186 = arith.addf %181, %185 : vector<8x120xf32>
    %187 = vector.extract_strided_slice %170 {offsets = [24, 0], sizes = [8, 80], strides = [1, 1]} : vector<40x80xf32> to vector<8x80xf32>
    %c3_159 = arith.constant 3 : index
    %c0_160 = arith.constant 0 : index
    %c0_161 = arith.constant 0 : index
    %188 = vector.load %arg6[%c3_159, %c0_160, %c0_161] : memref<5x80x120xf32, #tpu.memory_space<vmem>>, vector<1x80x120xf32>
    %189 = vector.shape_cast %188 : vector<1x80x120xf32> to vector<80x120xf32>
    %cst_162 = arith.constant dense<0.000000e+00> : vector<8x120xf32>
    %190 = tpu.matmul %187, %189, %cst_162 {dimension_numbers = #tpu.dot_dimension_numbers<[1], [0], [0], [1], [0, 0, 1, 1], [], []>} : vector<8x80xf32>, vector<80x120xf32>, vector<8x120xf32> -> vector<8x120xf32>
    %191 = arith.addf %186, %190 : vector<8x120xf32>
    %192 = vector.extract_strided_slice %170 {offsets = [32, 0], sizes = [8, 80], strides = [1, 1]} : vector<40x80xf32> to vector<8x80xf32>
    %c4_163 = arith.constant 4 : index
    %c0_164 = arith.constant 0 : index
    %c0_165 = arith.constant 0 : index
    %193 = vector.load %arg6[%c4_163, %c0_164, %c0_165] : memref<5x80x120xf32, #tpu.memory_space<vmem>>, vector<1x80x120xf32>
    %194 = vector.shape_cast %193 : vector<1x80x120xf32> to vector<80x120xf32>
    %cst_166 = arith.constant dense<0.000000e+00> : vector<8x120xf32>
    %195 = tpu.matmul %192, %194, %cst_166 {dimension_numbers = #tpu.dot_dimension_numbers<[1], [0], [0], [1], [0, 0, 1, 1], [], []>} : vector<8x80xf32>, vector<80x120xf32>, vector<8x120xf32> -> vector<8x120xf32>
    %196 = arith.addf %191, %195 : vector<8x120xf32>
    %c0_167 = arith.constant 0 : index
    %c0_168 = arith.constant 0 : index
    %197 = vector.load %arg7[%c0_167, %c0_168] : memref<1x120xf32, #tpu.memory_space<vmem>>, vector<1x120xf32>
    %198 = vector.broadcast %197 : vector<1x120xf32> to vector<8x120xf32>
    %199 = arith.addf %196, %198 : vector<8x120xf32>
    %cst_169 = arith.constant 0.000000e+00 : f32
    %200 = vector.broadcast %cst_169 : f32 to vector<8x120xf32>
    %201 = arith.maximumf %199, %200 : vector<8x120xf32>
    %c0_170 = arith.constant 0 : index
    %c0_171 = arith.constant 0 : index
    %202 = vector.load %arg8[%c0_170, %c0_171] : memref<120x84xf32, #tpu.memory_space<vmem>>, vector<120x84xf32>
    %cst_172 = arith.constant dense<0.000000e+00> : vector<8x84xf32>
    %203 = tpu.matmul %201, %202, %cst_172 {dimension_numbers = #tpu.dot_dimension_numbers<[1], [0], [0], [1], [0, 0, 1, 1], [], []>} : vector<8x120xf32>, vector<120x84xf32>, vector<8x84xf32> -> vector<8x84xf32>
    %c0_173 = arith.constant 0 : index
    %c0_174 = arith.constant 0 : index
    %204 = vector.load %arg9[%c0_173, %c0_174] : memref<1x84xf32, #tpu.memory_space<vmem>>, vector<1x84xf32>
    %205 = vector.broadcast %204 : vector<1x84xf32> to vector<8x84xf32>
    %206 = arith.addf %203, %205 : vector<8x84xf32>
    %cst_175 = arith.constant 0.000000e+00 : f32
    %207 = vector.broadcast %cst_175 : f32 to vector<8x84xf32>
    %208 = arith.maximumf %206, %207 : vector<8x84xf32>
    %c0_176 = arith.constant 0 : index
    %c0_177 = arith.constant 0 : index
    %209 = vector.load %arg10[%c0_176, %c0_177] : memref<84x128xf32, #tpu.memory_space<vmem>>, vector<84x128xf32>
    %cst_178 = arith.constant dense<0.000000e+00> : vector<8x128xf32>
    %210 = tpu.matmul %208, %209, %cst_178 {dimension_numbers = #tpu.dot_dimension_numbers<[1], [0], [0], [1], [0, 0, 1, 1], [], []>} : vector<8x84xf32>, vector<84x128xf32>, vector<8x128xf32> -> vector<8x128xf32>
    %c0_179 = arith.constant 0 : index
    %c0_180 = arith.constant 0 : index
    %211 = vector.load %arg11[%c0_179, %c0_180] : memref<1x128xf32, #tpu.memory_space<vmem>>, vector<1x128xf32>
    %212 = vector.broadcast %211 : vector<1x128xf32> to vector<8x128xf32>
    %213 = arith.addf %210, %212 : vector<8x128xf32>
    %c0_181 = arith.constant 0 : index
    %c0_182 = arith.constant 0 : index
    %214 = vector.load %arg12[%c0_181, %c0_182] : memref<8x128xf32, #tpu.memory_space<vmem>>, vector<8x128xf32>
    tpu.vector_store %arg12[%c0_181, %c0_182], %213 {strides = array<i32>} : memref<8x128xf32, #tpu.memory_space<vmem>>, vector<8x128xf32>,
    return
  }
  func.func @transform_0(%arg0: i32) -> (i32, i32, i32, i32) {
    %c0_i32 = arith.constant 0 : i32
    %c0_i32_0 = arith.constant 0 : i32
    %c0_i32_1 = arith.constant 0 : i32
    %c0_i32_2 = arith.constant 0 : i32
    return %arg0, %c0_i32, %c0_i32_0, %c0_i32_1 : i32, i32, i32, i32
  }
  func.func @transform_1(%arg0: i32) -> (i32, i32, i32) {
    %c0_i32 = arith.constant 0 : i32
    %c0_i32_0 = arith.constant 0 : i32
    %c0_i32_1 = arith.constant 0 : i32
    %c0_i32_2 = arith.constant 0 : i32
    return %c0_i32, %c0_i32_0, %c0_i32_1 : i32, i32, i32
  }
  func.func @transform_2(%arg0: i32) -> (i32, i32) {
    %c0_i32 = arith.constant 0 : i32
    %c0_i32_0 = arith.constant 0 : i32
    %c0_i32_1 = arith.constant 0 : i32
    return %c0_i32, %c0_i32_0 : i32, i32
  }
  func.func @transform_3(%arg0: i32) -> (i32, i32, i32) {
    %c0_i32 = arith.constant 0 : i32
    %c0_i32_0 = arith.constant 0 : i32
    %c0_i32_1 = arith.constant 0 : i32
    %c0_i32_2 = arith.constant 0 : i32
    return %c0_i32, %c0_i32_0, %c0_i32_1 : i32, i32, i32
  }
  func.func @transform_4(%arg0: i32) -> (i32, i32) {
    %c0_i32 = arith.constant 0 : i32
    %c0_i32_0 = arith.constant 0 : i32
    %c0_i32_1 = arith.constant 0 : i32
    return %c0_i32, %c0_i32_0 : i32, i32
  }
  func.func @transform_5(%arg0: i32) -> (i32, i32, i32) {
    %c0_i32 = arith.constant 0 : i32
    %c0_i32_0 = arith.constant 0 : i32
    %c0_i32_1 = arith.constant 0 : i32
    %c0_i32_2 = arith.constant 0 : i32
    return %c0_i32, %c0_i32_0, %c0_i32_1 : i32, i32, i32
  }
  func.func @transform_6(%arg0: i32) -> (i32, i32) {
    %c0_i32 = arith.constant 0 : i32
    %c0_i32_0 = arith.constant 0 : i32
    %c0_i32_1 = arith.constant 0 : i32
    return %c0_i32, %c0_i32_0 : i32, i32
  }
  func.func @transform_7(%arg0: i32) -> (i32, i32) {
    %c0_i32 = arith.constant 0 : i32
    %c0_i32_0 = arith.constant 0 : i32
    %c0_i32_1 = arith.constant 0 : i32
    return %c0_i32, %c0_i32_0 : i32, i32
  }
  func.func @transform_8(%arg0: i32) -> (i32, i32) {
    %c0_i32 = arith.constant 0 : i32
    %c0_i32_0 = arith.constant 0 : i32
    %c0_i32_1 = arith.constant 0 : i32
    return %c0_i32, %c0_i32_0 : i32, i32
  }
  func.func @transform_9(%arg0: i32) -> (i32, i32) {
    %c0_i32 = arith.constant 0 : i32
    %c0_i32_0 = arith.constant 0 : i32
    %c0_i32_1 = arith.constant 0 : i32
    return %c0_i32, %c0_i32_0 : i32, i32
  }
  func.func @transform_10(%arg0: i32) -> (i32, i32) {
    %c0_i32 = arith.constant 0 : i32
    %c0_i32_0 = arith.constant 0 : i32
    %c0_i32_1 = arith.constant 0 : i32
    return %c0_i32, %c0_i32_0 : i32, i32
  }
  func.func @transform_11(%arg0: i32) -> (i32, i32) {
    %c0_i32 = arith.constant 0 : i32
    %c0_i32_0 = arith.constant 0 : i32
    return %arg0, %c0_i32 : i32, i32
  }
}

</mosaic_0001>

<llo_original>
// kernel: lenet5_forward.1
$region0: #{lenet5_forward.1}
  #allocation0 [shape = 'u32[]', space=smem, size = 0x4, offset = 0x4, fixed_abs, tag = 'smem constant byte address 0x4 - core index']
  #allocation1 [shape = 'u32[144,128]{1,0:T(1,128)}', space=vmem, size = 0x12000, scoped, tag = 'internal scratch']
  %s0 = inlined_call_operand.vmem [shape: f32[1,4,64,32], index: 0, kind: input, shape index: {}]
  %s1 = inlined_call_operand.vmem [shape: f32[5,32,168], index: 1, kind: input, shape index: {}]
  %s2 = inlined_call_operand.vmem [shape: f32[1,84], index: 2, kind: input, shape index: {}]
  %s3 = inlined_call_operand.vmem [shape: f32[5,84,160], index: 3, kind: input, shape index: {}]
  %s4 = inlined_call_operand.vmem [shape: f32[1,80], index: 4, kind: input, shape index: {}]
  %s5 = inlined_call_operand.vmem [shape: f32[5,80,120], index: 5, kind: input, shape index: {}]
  %s6 = inlined_call_operand.vmem [shape: f32[1,120], index: 6, kind: input, shape index: {}]
  %s7 = inlined_call_operand.vmem [shape: f32[120,84], index: 7, kind: input, shape index: {}]
  %s8 = inlined_call_operand.vmem [shape: f32[1,84], index: 8, kind: input, shape index: {}]
  %s9 = inlined_call_operand.vmem [shape: f32[84,128], index: 9, kind: input, shape index: {}]
  %s10 = inlined_call_operand.vmem [shape: f32[1,128], index: 10, kind: input, shape index: {}]
  %s11 = inlined_call_operand.vmem [shape: f32[8,128], index: 11, kind: output, shape index: {}]
  %s12 = sld [smem:[#allocation0]]
  $region54: #{lenet5_forward.1} parent=0
    _
  %s14 = ssub.s32 1, %s12
  %s15 = scalar_select 0, %s14, %s12
  // Predicated region
  $region2: #{lenet5_forward.1} parent=0 // pred_check
    _
  $region3: #{lenet5_forward.1} parent=0 // pred_check_branch
    %17 = sbr.rel (0) target = $region5
  $region4: #{lenet5_forward.1} parent=0 // pred_region
    _
  $region5: #{lenet5_forward.1} parent=0 // pred_fallthru
    _
  // Predicated region
  $region6: #{lenet5_forward.1} parent=0 // pred_check
    _
  $region7: #{lenet5_forward.1} parent=0 // pred_check_branch
    %19 = sbr.rel (0) target = $region9
  $region8: #{lenet5_forward.1} parent=0 // pred_region
    _
  $region9: #{lenet5_forward.1} parent=0 // pred_fallthru
    _
  // Predicated region
  $region10: #{lenet5_forward.1} parent=0 // pred_check
    _
  $region11: #{lenet5_forward.1} parent=0 // pred_check_branch
    %21 = sbr.rel (0) target = $region13
  $region12: #{lenet5_forward.1} parent=0 // pred_region
    _
  $region13: #{lenet5_forward.1} parent=0 // pred_fallthru
    _
  // Predicated region
  $region14: #{lenet5_forward.1} parent=0 // pred_check
    _
  $region15: #{lenet5_forward.1} parent=0 // pred_check_branch
    %23 = sbr.rel (0) target = $region17
  $region16: #{lenet5_forward.1} parent=0 // pred_region
    _
  $region17: #{lenet5_forward.1} parent=0 // pred_fallthru
    _
  // Predicated region
  $region18: #{lenet5_forward.1} parent=0 // pred_check
    _
  $region19: #{lenet5_forward.1} parent=0 // pred_check_branch
    %25 = sbr.rel (0) target = $region21
  $region20: #{lenet5_forward.1} parent=0 // pred_region
    _
  $region21: #{lenet5_forward.1} parent=0 // pred_fallthru
    _
  // Predicated region
  $region22: #{lenet5_forward.1} parent=0 // pred_check
    _
  $region23: #{lenet5_forward.1} parent=0 // pred_check_branch
    %27 = sbr.rel (0) target = $region25
  $region24: #{lenet5_forward.1} parent=0 // pred_region
    _
  $region25: #{lenet5_forward.1} parent=0 // pred_fallthru
    _
  // Predicated region
  $region26: #{lenet5_forward.1} parent=0 // pred_check
    _
  $region27: #{lenet5_forward.1} parent=0 // pred_check_branch
    %29 = sbr.rel (0) target = $region29
  $region28: #{lenet5_forward.1} parent=0 // pred_region
    _
  $region29: #{lenet5_forward.1} parent=0 // pred_fallthru
    _
  // Predicated region
  $region30: #{lenet5_forward.1} parent=0 // pred_check
    _
  $region31: #{lenet5_forward.1} parent=0 // pred_check_branch
    %31 = sbr.rel (0) target = $region33
  $region32: #{lenet5_forward.1} parent=0 // pred_region
    _
  $region33: #{lenet5_forward.1} parent=0 // pred_fallthru
    _
  // Predicated region
  $region34: #{lenet5_forward.1} parent=0 // pred_check
    _
  $region35: #{lenet5_forward.1} parent=0 // pred_check_branch
    %33 = sbr.rel (0) target = $region37
  $region36: #{lenet5_forward.1} parent=0 // pred_region
    _
  $region37: #{lenet5_forward.1} parent=0 // pred_fallthru
    _
  // Predicated region
  $region38: #{lenet5_forward.1} parent=0 // pred_check
    _
  $region39: #{lenet5_forward.1} parent=0 // pred_check_branch
    %35 = sbr.rel (0) target = $region41
  $region40: #{lenet5_forward.1} parent=0 // pred_region
    _
  $region41: #{lenet5_forward.1} parent=0 // pred_fallthru
    _
  // Predicated region
  $region42: #{lenet5_forward.1} parent=0 // pred_check
    _
  $region43: #{lenet5_forward.1} parent=0 // pred_check_branch
    %37 = sbr.rel (0) target = $region45
  $region44: #{lenet5_forward.1} parent=0 // pred_region
    _
  $region45: #{lenet5_forward.1} parent=0 // pred_fallthru
    _
  %v38 = vld [vmem:[%s2] sm:$0x1]
  %v39 = vld [vmem:[%s4] sm:$0x1]
  %v40 = vld [vmem:[%s1] sm:$0xff]
  %v41 = vld [vmem:[%s1 + $0x8] sm:$0xff]
  %v42 = vld [vmem:[%s1 + $0x10] sm:$0xff]
  %v43 = vld [vmem:[%s1 + $0x18] sm:$0xff]
  %v44 = vld [vmem:[%s1 + $0x20] sm:$0xff]
  %v45 = vld [vmem:[%s1 + $0x28] sm:$0xff]
  %v46 = vld [vmem:[%s1 + $0x30] sm:$0xff]
  %v47 = vld [vmem:[%s1 + $0x38] sm:$0xff]
  %v48 = vld [vmem:[%s0] sm:$0xff]
  %v49 = vld [vmem:[%s0 + $0x8] sm:$0xff]
  %v50 = vld [vmem:[%s0 + $0x10] sm:$0xff]
  %v51 = vld [vmem:[%s0 + $0x18] sm:$0xff]
  %v52 = vld [vmem:[%s0 + $0x20] sm:$0xff]
  %v53 = vld [vmem:[%s0 + $0x28] sm:$0xff]
  %v54 = vld [vmem:[%s0 + $0x30] sm:$0xff]
  %s55 = scalar_lea.vmem %s0, 64
  %v56 = vld [vmem:[%s55] sm:$0xff]
  %v57 = vld [vmem:[%s55 + $0x8] sm:$0xff]
  %v58 = vld [vmem:[%s55 + $0x10] sm:$0xff]
  %v59 = vld [vmem:[%s55 + $0x18] sm:$0xff]
  %v60 = vld [vmem:[%s55 + $0x20] sm:$0xff]
  %v61 = vld [vmem:[%s55 + $0x28] sm:$0xff]
  %v62 = vld [vmem:[%s55 + $0x30] sm:$0xff]
  %s63 = scalar_lea.vmem %s0, 128
  %v64 = vld [vmem:[%s63] sm:$0xff]
  %v65 = vld [vmem:[%s63 + $0x8] sm:$0xff]
  %v66 = vld [vmem:[%s63 + $0x10] sm:$0xff]
  %v67 = vld [vmem:[%s63 + $0x18] sm:$0xff]
  %v68 = vld [vmem:[%s63 + $0x20] sm:$0xff]
  %v69 = vld [vmem:[%s63 + $0x28] sm:$0xff]
  %v70 = vld [vmem:[%s63 + $0x30] sm:$0xff]
  %s71 = scalar_lea.vmem %s0, 192
  %v72 = vld [vmem:[%s71] sm:$0xff]
  %v73 = vld [vmem:[%s71 + $0x8] sm:$0xff]
  %v74 = vld [vmem:[%s71 + $0x10] sm:$0xff]
  %v75 = vld [vmem:[%s71 + $0x18] sm:$0xff]
  %v76 = vld [vmem:[%s71 + $0x20] sm:$0xff]
  %v77 = vld [vmem:[%s71 + $0x28] sm:$0xff]
  %v78 = vld [vmem:[%s71 + $0x30] sm:$0xff]
  %s79 = scalar_lea.vmem %s1, 64
  %v80 = vld [vmem:[%s79] sm:$0xff]
  %v81 = vld [vmem:[%s79 + $0x8] sm:$0xff]
  %v82 = vld [vmem:[%s79 + $0x10] sm:$0xff]
  %v83 = vld [vmem:[%s79 + $0x18] sm:$0xff]
  %v84 = vld [vmem:[%s79 + $0x20] sm:$0xff]
  %v85 = vld [vmem:[%s79 + $0x28] sm:$0xff]
  %v86 = vld [vmem:[%s79 + $0x30] sm:$0xff]
  %v87 = vld [vmem:[%s79 + $0x38] sm:$0xff]
  %vm88 = vcmask 261120
  %v90 = vsel %vm88, %v56, 0
  %v93 = vsel %vm88, %v57, 0
  %v96 = vsel %vm88, %v58, 0
  %v99 = vsel %vm88, %v59, 0
  %v102 = vsel %vm88, %v60, 0
  %v105 = vsel %vm88, %v61, 0
  %v108 = vsel %vm88, %v62, 0
  %110 = vmatprep.subr.mxu0 %v81
  %111 = vmatpush1.msra.mxu0 %v80
  %112 = vmatprep.subr.mxu0 %v83
  %113 = vmatpush1.msra.mxu0 %v82
  %114 = vmatprep.subr.mxu0 %v85
  %115 = vmatpush1.msra.mxu0 %v84
  %116 = vmatprep.subr.mxu0 %v87
  %117 = vmatpush1.msra.mxu0 %v86
  %118 = vmatprep.subr.mxu0 0.0
  %119 = vmatpush1.msra.mxu0 0.0
  %120 = vmatprep.subr.mxu0 0.0
  %121 = vmatpush1.msra.mxu0 0.0
  %122 = vmatprep.subr.mxu0 0.0
  %123 = vmatpush1.msra.mxu0 0.0
  %124 = vmatprep.subr.mxu0 0.0
  %125 = vmatpush1.msra.mxu0 0.0
  %126 = vmatprep.subr.mxu0 0.0
  %127 = vmatpush1.msra.mxu0 0.0
  %128 = vmatprep.subr.mxu0 0.0
  %129 = vmatpush1.msra.mxu0 0.0
  %130 = vmatprep.subr.mxu0 0.0
  %131 = vmatpush1.msra.mxu0 0.0
  %132 = vmatprep.subr.mxu0 0.0
  %133 = vmatpush1.msra.mxu0 0.0
  %134 = vmatprep.subr.mxu0 0.0
  %135 = vmatpush1.msra.mxu0 0.0
  %136 = vmatprep.subr.mxu0 0.0
  %137 = vmatpush1.msra.mxu0 0.0
  %138 = vmatprep.subr.mxu0 0.0
  %139 = vmatpush1.msra.mxu0 0.0
  %140 = vmatprep.subr.mxu0 0.0
  %141 = vmatpush1.msra.mxu0 0.0
  %142 = vmatprep.subr.mxu0 0.0
  %143 = vmatpush1.msra.mxu0 0.0
  %144 = vmatprep.subr.mxu0 0.0
  %145 = vmatpush1.msra.mxu0 0.0
  %146 = vmatprep.subr.mxu0 0.0
  %147 = vmatpush1.msra.mxu0 0.0
  %148 = vmatprep.subr.mxu0 0.0
  %149 = vmatpush1.msra.mxu0 0.0
  %150 = vmatprep.subr.mxu0 0.0
  %151 = vmatpush1.msra.mxu0 0.0
  %152 = vmatprep.subr.mxu0 0.0
  %153 = vmatpush1.msra.mxu0 0.0
  %154 = vmatprep.subr.mxu0 0.0
  %155 = vmatpush1.msra.mxu0 0.0
  %156 = vmatprep.subr.mxu0 0.0
  %157 = vmatpush1.msra.mxu0 0.0
  %158 = vmatprep.subr.mxu0 0.0
  %159 = vmatpush1.msra.mxu0 0.0
  %160 = vmatprep.subr.mxu0 0.0
  %161 = vmatpush1.msra.mxu0 0.0
  %162 = vmatprep.subr.mxu0 0.0
  %163 = vmatpush1.msra.mxu0 0.0
  %164 = vmatprep.subr.mxu0 0.0
  %165 = vmatpush1.msra.mxu0 0.0
  %166 = vmatprep.subr.mxu0 0.0
  %167 = vmatpush1.msra.mxu0 0.0
  %168 = vmatprep.subr.mxu0 0.0
  %169 = vmatpush1.msra.mxu0 0.0
  %170 = vmatprep.subr.mxu0 0.0
  %171 = vmatpush1.msra.mxu0 0.0
  %172 = vmatprep.subr.mxu0 0.0
  %173 = vmatpush1.msra.mxu0 0.0
  %174 = vmatprep.mubr.f32.mxu0 0.0
  %175 = vmatmul.mubr.f32.gmra.mrb[0].mxu0 %v90
  %v176 = vpop.f32.mrb[0].mxu0
  %v177 = vadd.f32 0.0, %v176
  %v178 = vpop.f32.mrb[0].mxu0
  %v179 = vadd.f32 0.0, %v178
  %180 = vmatprep.mubr.f32.mxu0 0.0
  %181 = vmatmul.mubr.f32.gmra.mrb[0].mxu0 %v93
  %v182 = vpop.f32.mrb[0].mxu0
  %v183 = vadd.f32 0.0, %v182
  %v184 = vpop.f32.mrb[0].mxu0
  %v185 = vadd.f32 0.0, %v184
  %186 = vmatprep.mubr.f32.mxu0 0.0
  %187 = vmatmul.mubr.f32.gmra.mrb[0].mxu0 %v96
  %v188 = vpop.f32.mrb[0].mxu0
  %v189 = vadd.f32 0.0, %v188
  %v190 = vpop.f32.mrb[0].mxu0
  %v191 = vadd.f32 0.0, %v190
  %192 = vmatprep.mubr.f32.mxu0 0.0
  %193 = vmatmul.mubr.f32.gmra.mrb[0].mxu0 %v99
  %v194 = vpop.f32.mrb[0].mxu0
  %v195 = vadd.f32 0.0, %v194
  %v196 = vpop.f32.mrb[0].mxu0
  %v197 = vadd.f32 0.0, %v196
  %198 = vmatprep.mubr.f32.mxu0 0.0
  %199 = vmatmul.mubr.f32.gmra.mrb[0].mxu0 %v102
  %v200 = vpop.f32.mrb[0].mxu0
  %v201 = vadd.f32 0.0, %v200
  %v202 = vpop.f32.mrb[0].mxu0
  %v203 = vadd.f32 0.0, %v202
  %204 = vmatprep.mubr.f32.mxu0 0.0
  %205 = vmatmul.mubr.f32.gmra.mrb[0].mxu0 %v105
  %v206 = vpop.f32.mrb[0].mxu0
  %v207 = vadd.f32 0.0, %v206
  %v208 = vpop.f32.mrb[0].mxu0
  %v209 = vadd.f32 0.0, %v208
  %210 = vmatprep.mubr.f32.mxu0 0.0
  %211 = vmatmul.mubr.f32.gmra.mrb[0].mxu0 %v108
  %v212 = vpop.f32.mrb[0].mxu0
  %v213 = vadd.f32 0.0, %v212
  %v214 = vpop.f32.mrb[0].mxu0
  %v215 = vadd.f32 0.0, %v214
  %216 = vdwg.mxu0
  %v218 = vsel %vm88, %v48, 0
  %v221 = vsel %vm88, %v49, 0
  %v224 = vsel %vm88, %v50, 0
  %v227 = vsel %vm88, %v51, 0
  %v230 = vsel %vm88, %v52, 0
  %v233 = vsel %vm88, %v53, 0
  %v236 = vsel %vm88, %v54, 0
  %238 = vmatprep.subr.mxu0 %v41
  %239 = vmatpush1.msra.mxu0 %v40
  %240 = vmatprep.subr.mxu0 %v43
  %241 = vmatpush1.msra.mxu0 %v42
  %242 = vmatprep.subr.mxu0 %v45
  %243 = vmatpush1.msra.mxu0 %v44
  %244 = vmatprep.subr.mxu0 %v47
  %245 = vmatpush1.msra.mxu0 %v46
  %246 = vmatprep.subr.mxu0 0.0
  %247 = vmatpush1.msra.mxu0 0.0
  %248 = vmatprep.subr.mxu0 0.0
  %249 = vmatpush1.msra.mxu0 0.0
  %250 = vmatprep.subr.mxu0 0.0
  %251 = vmatpush1.msra.mxu0 0.0
  %252 = vmatprep.subr.mxu0 0.0
  %253 = vmatpush1.msra.mxu0 0.0
  %254 = vmatprep.subr.mxu0 0.0
  %255 = vmatpush1.msra.mxu0 0.0
  %256 = vmatprep.subr.mxu0 0.0
  %257 = vmatpush1.msra.mxu0 0.0
  %258 = vmatprep.subr.mxu0 0.0
  %259 = vmatpush1.msra.mxu0 0.0
  %260 = vmatprep.subr.mxu0 0.0
  %261 = vmatpush1.msra.mxu0 0.0
  %262 = vmatprep.subr.mxu0 0.0
  %263 = vmatpush1.msra.mxu0 0.0
  %264 = vmatprep.subr.mxu0 0.0
  %265 = vmatpush1.msra.mxu0 0.0
  %266 = vmatprep.subr.mxu0 0.0
  %267 = vmatpush1.msra.mxu0 0.0
  %268 = vmatprep.subr.mxu0 0.0
  %269 = vmatpush1.msra.mxu0 0.0
  %270 = vmatprep.subr.mxu0 0.0
  %271 = vmatpush1.msra.mxu0 0.0
  %272 = vmatprep.subr.mxu0 0.0
  %273 = vmatpush1.msra.mxu0 0.0
  %274 = vmatprep.subr.mxu0 0.0
  %275 = vmatpush1.msra.mxu0 0.0
  %276 = vmatprep.subr.mxu0 0.0
  %277 = vmatpush1.msra.mxu0 0.0
  %278 = vmatprep.subr.mxu0 0.0
  %279 = vmatpush1.msra.mxu0 0.0
  %280 = vmatprep.subr.mxu0 0.0
  %281 = vmatpush1.msra.mxu0 0.0
  %282 = vmatprep.subr.mxu0 0.0
  %283 = vmatpush1.msra.mxu0 0.0
  %284 = vmatprep.subr.mxu0 0.0
  %285 = vmatpush1.msra.mxu0 0.0
  %286 = vmatprep.subr.mxu0 0.0
  %287 = vmatpush1.msra.mxu0 0.0
  %288 = vmatprep.subr.mxu0 0.0
  %289 = vmatpush1.msra.mxu0 0.0
  %290 = vmatprep.subr.mxu0 0.0
  %291 = vmatpush1.msra.mxu0 0.0
  %292 = vmatprep.subr.mxu0 0.0
  %293 = vmatpush1.msra.mxu0 0.0
  %294 = vmatprep.subr.mxu0 0.0
  %295 = vmatpush1.msra.mxu0 0.0
  %296 = vmatprep.subr.mxu0 0.0
  %297 = vmatpush1.msra.mxu0 0.0
  %298 = vmatprep.subr.mxu0 0.0
  %299 = vmatpush1.msra.mxu0 0.0
  %300 = vmatprep.subr.mxu0 0.0
  %301 = vmatpush1.msra.mxu0 0.0
  %302 = vmatprep.mubr.f32.mxu0 0.0
  %303 = vmatmul.mubr.f32.gmra.mrb[0].mxu0 %v218
  %v304 = vpop.f32.mrb[0].mxu0
  %v305 = vadd.f32 %v177, %v304
  %v306 = vpop.f32.mrb[0].mxu0
  %v307 = vadd.f32 %v179, %v306
  %308 = vmatprep.mubr.f32.mxu0 0.0
  %309 = vmatmul.mubr.f32.gmra.mrb[0].mxu0 %v221
  %v310 = vpop.f32.mrb[0].mxu0
  %v311 = vadd.f32 %v183, %v310
  %v312 = vpop.f32.mrb[0].mxu0
  %v313 = vadd.f32 %v185, %v312
  %314 = vmatprep.mubr.f32.mxu0 0.0
  %315 = vmatmul.mubr.f32.gmra.mrb[0].mxu0 %v224
  %v316 = vpop.f32.mrb[0].mxu0
  %v317 = vadd.f32 %v189, %v316
  %v318 = vpop.f32.mrb[0].mxu0
  %v319 = vadd.f32 %v191, %v318
  %320 = vmatprep.mubr.f32.mxu0 0.0
  %321 = vmatmul.mubr.f32.gmra.mrb[0].mxu0 %v227
  %v322 = vpop.f32.mrb[0].mxu0
  %v323 = vadd.f32 %v195, %v322
  %v324 = vpop.f32.mrb[0].mxu0
  %v325 = vadd.f32 %v197, %v324
  %326 = vmatprep.mubr.f32.mxu0 0.0
  %327 = vmatmul.mubr.f32.gmra.mrb[0].mxu0 %v230
  %v328 = vpop.f32.mrb[0].mxu0
  %v329 = vadd.f32 %v201, %v328
  %v330 = vpop.f32.mrb[0].mxu0
  %v331 = vadd.f32 %v203, %v330
  %332 = vmatprep.mubr.f32.mxu0 0.0
  %333 = vmatmul.mubr.f32.gmra.mrb[0].mxu0 %v233
  %v334 = vpop.f32.mrb[0].mxu0
  %v335 = vadd.f32 %v207, %v334
  %v336 = vpop.f32.mrb[0].mxu0
  %v337 = vadd.f32 %v209, %v336
  %338 = vmatprep.mubr.f32.mxu0 0.0
  %339 = vmatmul.mubr.f32.gmra.mrb[0].mxu0 %v236
  %v340 = vpop.f32.mrb[0].mxu0
  %v341 = vadd.f32 %v213, %v340
  %v342 = vpop.f32.mrb[0].mxu0
  %v343 = vadd.f32 %v215, %v342
  %344 = vdwg.mxu0
  %v346 = vsel %vm88, %v64, 0
  %v349 = vsel %vm88, %v65, 0
  %v352 = vsel %vm88, %v66, 0
  %v355 = vsel %vm88, %v67, 0
  %v358 = vsel %vm88, %v68, 0
  %v361 = vsel %vm88, %v69, 0
  %v364 = vsel %vm88, %v70, 0
  %366 = vmatprep.subr.mxu0 %v81
  %367 = vmatpush1.msra.mxu0 %v80
  %368 = vmatprep.subr.mxu0 %v83
  %369 = vmatpush1.msra.mxu0 %v82
  %370 = vmatprep.subr.mxu0 %v85
  %371 = vmatpush1.msra.mxu0 %v84
  %372 = vmatprep.subr.mxu0 %v87
  %373 = vmatpush1.msra.mxu0 %v86
  %374 = vmatprep.subr.mxu0 0.0
  %375 = vmatpush1.msra.mxu0 0.0
  %376 = vmatprep.subr.mxu0 0.0
  %377 = vmatpush1.msra.mxu0 0.0
  %378 = vmatprep.subr.mxu0 0.0
  %379 = vmatpush1.msra.mxu0 0.0
  %380 = vmatprep.subr.mxu0 0.0
  %381 = vmatpush1.msra.mxu0 0.0
  %382 = vmatprep.subr.mxu0 0.0
  %383 = vmatpush1.msra.mxu0 0.0
  %384 = vmatprep.subr.mxu0 0.0
  %385 = vmatpush1.msra.mxu0 0.0
  %386 = vmatprep.subr.mxu0 0.0
  %387 = vmatpush1.msra.mxu0 0.0
  %388 = vmatprep.subr.mxu0 0.0
  %389 = vmatpush1.msra.mxu0 0.0
  %390 = vmatprep.subr.mxu0 0.0
  %391 = vmatpush1.msra.mxu0 0.0
  %392 = vmatprep.subr.mxu0 0.0
  %393 = vmatpush1.msra.mxu0 0.0
  %394 = vmatprep.subr.mxu0 0.0
  %395 = vmatpush1.msra.mxu0 0.0
  %396 = vmatprep.subr.mxu0 0.0
  %397 = vmatpush1.msra.mxu0 0.0
  %398 = vmatprep.subr.mxu0 0.0
  %399 = vmatpush1.msra.mxu0 0.0
  %400 = vmatprep.subr.mxu0 0.0
  %401 = vmatpush1.msra.mxu0 0.0
  %402 = vmatprep.subr.mxu0 0.0
  %403 = vmatpush1.msra.mxu0 0.0
  %404 = vmatprep.subr.mxu0 0.0
  %405 = vmatpush1.msra.mxu0 0.0
  %406 = vmatprep.subr.mxu0 0.0
  %407 = vmatpush1.msra.mxu0 0.0
  %408 = vmatprep.subr.mxu0 0.0
  %409 = vmatpush1.msra.mxu0 0.0
  %410 = vmatprep.subr.mxu0 0.0
  %411 = vmatpush1.msra.mxu0 0.0
  %412 = vmatprep.subr.mxu0 0.0
  %413 = vmatpush1.msra.mxu0 0.0
  %414 = vmatprep.subr.mxu0 0.0
  %415 = vmatpush1.msra.mxu0 0.0
  %416 = vmatprep.subr.mxu0 0.0
  %417 = vmatpush1.msra.mxu0 0.0
  %418 = vmatprep.subr.mxu0 0.0
  %419 = vmatpush1.msra.mxu0 0.0
  %420 = vmatprep.subr.mxu0 0.0
  %421 = vmatpush1.msra.mxu0 0.0
  %422 = vmatprep.subr.mxu0 0.0
  %423 = vmatpush1.msra.mxu0 0.0
  %424 = vmatprep.subr.mxu0 0.0
  %425 = vmatpush1.msra.mxu0 0.0
  %426 = vmatprep.subr.mxu0 0.0
  %427 = vmatpush1.msra.mxu0 0.0
  %428 = vmatprep.subr.mxu0 0.0
  %429 = vmatpush1.msra.mxu0 0.0
  %430 = vmatprep.mubr.f32.mxu0 0.0
  %431 = vmatmul.mubr.f32.gmra.mrb[0].mxu0 %v346
  %v432 = vpop.f32.mrb[0].mxu0
  %v433 = vadd.f32 0.0, %v432
  %v434 = vpop.f32.mrb[0].mxu0
  %v435 = vadd.f32 0.0, %v434
  %436 = vmatprep.mubr.f32.mxu0 0.0
  %437 = vmatmul.mubr.f32.gmra.mrb[0].mxu0 %v349
  %v438 = vpop.f32.mrb[0].mxu0
  %v439 = vadd.f32 0.0, %v438
  %v440 = vpop.f32.mrb[0].mxu0
  %v441 = vadd.f32 0.0, %v440
  %442 = vmatprep.mubr.f32.mxu0 0.0
  %443 = vmatmul.mubr.f32.gmra.mrb[0].mxu0 %v352
  %v444 = vpop.f32.mrb[0].mxu0
  %v445 = vadd.f32 0.0, %v444
  %v446 = vpop.f32.mrb[0].mxu0
  %v447 = vadd.f32 0.0, %v446
  %448 = vmatprep.mubr.f32.mxu0 0.0
  %449 = vmatmul.mubr.f32.gmra.mrb[0].mxu0 %v355
  %v450 = vpop.f32.mrb[0].mxu0
  %v451 = vadd.f32 0.0, %v450
  %v452 = vpop.f32.mrb[0].mxu0
  %v453 = vadd.f32 0.0, %v452
  %454 = vmatprep.mubr.f32.mxu0 0.0
  %455 = vmatmul.mubr.f32.gmra.mrb[0].mxu0 %v358
  %v456 = vpop.f32.mrb[0].mxu0
  %v457 = vadd.f32 0.0, %v456
  %v458 = vpop.f32.mrb[0].mxu0
  %v459 = vadd.f32 0.0, %v458
  %460 = vmatprep.mubr.f32.mxu0 0.0
  %461 = vmatmul.mubr.f32.gmra.mrb[0].mxu0 %v361
  %v462 = vpop.f32.mrb[0].mxu0
  %v463 = vadd.f32 0.0, %v462
  %v464 = vpop.f32.mrb[0].mxu0
  %v465 = vadd.f32 0.0, %v464
  %466 = vmatprep.mubr.f32.mxu0 0.0
  %467 = vmatmul.mubr.f32.gmra.mrb[0].mxu0 %v364
  %v468 = vpop.f32.mrb[0].mxu0
  %v469 = vadd.f32 0.0, %v468
  %v470 = vpop.f32.mrb[0].mxu0
  %v471 = vadd.f32 0.0, %v470
  %472 = vdwg.mxu0
  %473 = vmatprep.subr.mxu0 %v41
  %474 = vmatpush1.msra.mxu0 %v40
  %475 = vmatprep.subr.mxu0 %v43
  %476 = vmatpush1.msra.mxu0 %v42
  %477 = vmatprep.subr.mxu0 %v45
  %478 = vmatpush1.msra.mxu0 %v44
  %479 = vmatprep.subr.mxu0 %v47
  %480 = vmatpush1.msra.mxu0 %v46
  %481 = vmatprep.subr.mxu0 0.0
  %482 = vmatpush1.msra.mxu0 0.0
  %483 = vmatprep.subr.mxu0 0.0
  %484 = vmatpush1.msra.mxu0 0.0
  %485 = vmatprep.subr.mxu0 0.0
  %486 = vmatpush1.msra.mxu0 0.0
  %487 = vmatprep.subr.mxu0 0.0
  %488 = vmatpush1.msra.mxu0 0.0
  %489 = vmatprep.subr.mxu0 0.0
  %490 = vmatpush1.msra.mxu0 0.0
  %491 = vmatprep.subr.mxu0 0.0
  %492 = vmatpush1.msra.mxu0 0.0
  %493 = vmatprep.subr.mxu0 0.0
  %494 = vmatpush1.msra.mxu0 0.0
  %495 = vmatprep.subr.mxu0 0.0
  %496 = vmatpush1.msra.mxu0 0.0
  %497 = vmatprep.subr.mxu0 0.0
  %498 = vmatpush1.msra.mxu0 0.0
  %499 = vmatprep.subr.mxu0 0.0
  %500 = vmatpush1.msra.mxu0 0.0
  %501 = vmatprep.subr.mxu0 0.0
  %502 = vmatpush1.msra.mxu0 0.0
  %503 = vmatprep.subr.mxu0 0.0
  %504 = vmatpush1.msra.mxu0 0.0
  %505 = vmatprep.subr.mxu0 0.0
  %506 = vmatpush1.msra.mxu0 0.0
  %507 = vmatprep.subr.mxu0 0.0
  %508 = vmatpush1.msra.mxu0 0.0
  %509 = vmatprep.subr.mxu0 0.0
  %510 = vmatpush1.msra.mxu0 0.0
  %511 = vmatprep.subr.mxu0 0.0
  %512 = vmatpush1.msra.mxu0 0.0
  %513 = vmatprep.subr.mxu0 0.0
  %514 = vmatpush1.msra.mxu0 0.0
  %515 = vmatprep.subr.mxu0 0.0
  %516 = vmatpush1.msra.mxu0 0.0
  %517 = vmatprep.subr.mxu0 0.0
  %518 = vmatpush1.msra.mxu0 0.0
  %519 = vmatprep.subr.mxu0 0.0
  %520 = vmatpush1.msra.mxu0 0.0
  %521 = vmatprep.subr.mxu0 0.0
  %522 = vmatpush1.msra.mxu0 0.0
  %523 = vmatprep.subr.mxu0 0.0
  %524 = vmatpush1.msra.mxu0 0.0
  %525 = vmatprep.subr.mxu0 0.0
  %526 = vmatpush1.msra.mxu0 0.0
  %527 = vmatprep.subr.mxu0 0.0
  %528 = vmatpush1.msra.mxu0 0.0
  %529 = vmatprep.subr.mxu0 0.0
  %530 = vmatpush1.msra.mxu0 0.0
  %531 = vmatprep.subr.mxu0 0.0
  %532 = vmatpush1.msra.mxu0 0.0
  %533 = vmatprep.subr.mxu0 0.0
  %534 = vmatpush1.msra.mxu0 0.0
  %535 = vmatprep.subr.mxu0 0.0
  %536 = vmatpush1.msra.mxu0 0.0
  %537 = vmatprep.mubr.f32.mxu0 0.0
  %538 = vmatmul.mubr.f32.gmra.mrb[0].mxu0 %v90
  %v539 = vpop.f32.mrb[0].mxu0
  %v540 = vadd.f32 %v433, %v539
  %v541 = vpop.f32.mrb[0].mxu0
  %v542 = vadd.f32 %v435, %v541
  %543 = vmatprep.mubr.f32.mxu0 0.0
  %544 = vmatmul.mubr.f32.gmra.mrb[0].mxu0 %v93
  %v545 = vpop.f32.mrb[0].mxu0
  %v546 = vadd.f32 %v439, %v545
  %v547 = vpop.f32.mrb[0].mxu0
  %v548 = vadd.f32 %v441, %v547
  %549 = vmatprep.mubr.f32.mxu0 0.0
  %550 = vmatmul.mubr.f32.gmra.mrb[0].mxu0 %v96
  %v551 = vpop.f32.mrb[0].mxu0
  %v552 = vadd.f32 %v445, %v551
  %v553 = vpop.f32.mrb[0].mxu0
  %v554 = vadd.f32 %v447, %v553
  %555 = vmatprep.mubr.f32.mxu0 0.0
  %556 = vmatmul.mubr.f32.gmra.mrb[0].mxu0 %v99
  %v557 = vpop.f32.mrb[0].mxu0
  %v558 = vadd.f32 %v451, %v557
  %v559 = vpop.f32.mrb[0].mxu0
  %v560 = vadd.f32 %v453, %v559
  %561 = vmatprep.mubr.f32.mxu0 0.0
  %562 = vmatmul.mubr.f32.gmra.mrb[0].mxu0 %v102
  %v563 = vpop.f32.mrb[0].mxu0
  %v564 = vadd.f32 %v457, %v563
  %v565 = vpop.f32.mrb[0].mxu0
  %v566 = vadd.f32 %v459, %v565
  %567 = vmatprep.mubr.f32.mxu0 0.0
  %568 = vmatmul.mubr.f32.gmra.mrb[0].mxu0 %v105
  %v569 = vpop.f32.mrb[0].mxu0
  %v570 = vadd.f32 %v463, %v569
  %v571 = vpop.f32.mrb[0].mxu0
  %v572 = vadd.f32 %v465, %v571
  %573 = vmatprep.mubr.f32.mxu0 0.0
  %574 = vmatmul.mubr.f32.gmra.mrb[0].mxu0 %v108
  %v575 = vpop.f32.mrb[0].mxu0
  %v576 = vadd.f32 %v469, %v575
  %v577 = vpop.f32.mrb[0].mxu0
  %v578 = vadd.f32 %v471, %v577
  %579 = vdwg.mxu0
  %v581 = vsel %vm88, %v72, 0
  %v584 = vsel %vm88, %v73, 0
  %v587 = vsel %vm88, %v74, 0
  %v590 = vsel %vm88, %v75, 0
  %v593 = vsel %vm88, %v76, 0
  %v596 = vsel %vm88, %v77, 0
  %v599 = vsel %vm88, %v78, 0
  %601 = vmatprep.subr.mxu0 %v81
  %602 = vmatpush1.msra.mxu0 %v80
  %603 = vmatprep.subr.mxu0 %v83
  %604 = vmatpush1.msra.mxu0 %v82
  %605 = vmatprep.subr.mxu0 %v85
  %606 = vmatpush1.msra.mxu0 %v84
  %607 = vmatprep.subr.mxu0 %v87
  %608 = vmatpush1.msra.mxu0 %v86
  %609 = vmatprep.subr.mxu0 0.0
  %610 = vmatpush1.msra.mxu0 0.0
  %611 = vmatprep.subr.mxu0 0.0
  %612 = vmatpush1.msra.mxu0 0.0
  %613 = vmatprep.subr.mxu0 0.0
  %614 = vmatpush1.msra.mxu0 0.0
  %615 = vmatprep.subr.mxu0 0.0
  %616 = vmatpush1.msra.mxu0 0.0
  %617 = vmatprep.subr.mxu0 0.0
  %618 = vmatpush1.msra.mxu0 0.0
  %619 = vmatprep.subr.mxu0 0.0
  %620 = vmatpush1.msra.mxu0 0.0
  %621 = vmatprep.subr.mxu0 0.0
  %622 = vmatpush1.msra.mxu0 0.0
  %623 = vmatprep.subr.mxu0 0.0
  %624 = vmatpush1.msra.mxu0 0.0
  %625 = vmatprep.subr.mxu0 0.0
  %626 = vmatpush1.msra.mxu0 0.0
  %627 = vmatprep.subr.mxu0 0.0
  %628 = vmatpush1.msra.mxu0 0.0
  %629 = vmatprep.subr.mxu0 0.0
  %630 = vmatpush1.msra.mxu0 0.0
  %631 = vmatprep.subr.mxu0 0.0
  %632 = vmatpush1.msra.mxu0 0.0
  %633 = vmatprep.subr.mxu0 0.0
  %634 = vmatpush1.msra.mxu0 0.0
  %635 = vmatprep.subr.mxu0 0.0
  %636 = vmatpush1.msra.mxu0 0.0
  %637 = vmatprep.subr.mxu0 0.0
  %638 = vmatpush1.msra.mxu0 0.0
  %639 = vmatprep.subr.mxu0 0.0
  %640 = vmatpush1.msra.mxu0 0.0
  %641 = vmatprep.subr.mxu0 0.0
  %642 = vmatpush1.msra.mxu0 0.0
  %643 = vmatprep.subr.mxu0 0.0
  %644 = vmatpush1.msra.mxu0 0.0
  %645 = vmatprep.subr.mxu0 0.0
  %646 = vmatpush1.msra.mxu0 0.0
  %647 = vmatprep.subr.mxu0 0.0
  %648 = vmatpush1.msra.mxu0 0.0
  %649 = vmatprep.subr.mxu0 0.0
  %650 = vmatpush1.msra.mxu0 0.0
  %651 = vmatprep.subr.mxu0 0.0
  %652 = vmatpush1.msra.mxu0 0.0
  %653 = vmatprep.subr.mxu0 0.0
  %654 = vmatpush1.msra.mxu0 0.0
  %655 = vmatprep.subr.mxu0 0.0
  %656 = vmatpush1.msra.mxu0 0.0
  %657 = vmatprep.subr.mxu0 0.0
  %658 = vmatpush1.msra.mxu0 0.0
  %659 = vmatprep.subr.mxu0 0.0
  %660 = vmatpush1.msra.mxu0 0.0
  %661 = vmatprep.subr.mxu0 0.0
  %662 = vmatpush1.msra.mxu0 0.0
  %663 = vmatprep.subr.mxu0 0.0
  %664 = vmatpush1.msra.mxu0 0.0
  %665 = vmatprep.mubr.f32.mxu0 0.0
  %666 = vmatmul.mubr.f32.gmra.mrb[0].mxu0 %v581
  %v667 = vpop.f32.mrb[0].mxu0
  %v668 = vadd.f32 0.0, %v667
  %v669 = vpop.f32.mrb[0].mxu0
  %v670 = vadd.f32 0.0, %v669
  %671 = vmatprep.mubr.f32.mxu0 0.0
  %672 = vmatmul.mubr.f32.gmra.mrb[0].mxu0 %v584
  %v673 = vpop.f32.mrb[0].mxu0
  %v674 = vadd.f32 0.0, %v673
  %v675 = vpop.f32.mrb[0].mxu0
  %v676 = vadd.f32 0.0, %v675
  %677 = vmatprep.mubr.f32.mxu0 0.0
  %678 = vmatmul.mubr.f32.gmra.mrb[0].mxu0 %v587
  %v679 = vpop.f32.mrb[0].mxu0
  %v680 = vadd.f32 0.0, %v679
  %v681 = vpop.f32.mrb[0].mxu0
  %v682 = vadd.f32 0.0, %v681
  %683 = vmatprep.mubr.f32.mxu0 0.0
  %684 = vmatmul.mubr.f32.gmra.mrb[0].mxu0 %v590
  %v685 = vpop.f32.mrb[0].mxu0
  %v686 = vadd.f32 0.0, %v685
  %v687 = vpop.f32.mrb[0].mxu0
  %v688 = vadd.f32 0.0, %v687
  %689 = vmatprep.mubr.f32.mxu0 0.0
  %690 = vmatmul.mubr.f32.gmra.mrb[0].mxu0 %v593
  %v691 = vpop.f32.mrb[0].mxu0
  %v692 = vadd.f32 0.0, %v691
  %v693 = vpop.f32.mrb[0].mxu0
  %v694 = vadd.f32 0.0, %v693
  %695 = vmatprep.mubr.f32.mxu0 0.0
  %696 = vmatmul.mubr.f32.gmra.mrb[0].mxu0 %v596
  %v697 = vpop.f32.mrb[0].mxu0
  %v698 = vadd.f32 0.0, %v697
  %v699 = vpop.f32.mrb[0].mxu0
  %v700 = vadd.f32 0.0, %v699
  %701 = vmatprep.mubr.f32.mxu0 0.0
  %702 = vmatmul.mubr.f32.gmra.mrb[0].mxu0 %v599
  %v703 = vpop.f32.mrb[0].mxu0
  %v704 = vadd.f32 0.0, %v703
  %v705 = vpop.f32.mrb[0].mxu0
  %v706 = vadd.f32 0.0, %v705
  %707 = vdwg.mxu0
  %708 = vmatprep.subr.mxu0 %v41
  %709 = vmatpush1.msra.mxu0 %v40
  %710 = vmatprep.subr.mxu0 %v43
  %711 = vmatpush1.msra.mxu0 %v42
  %712 = vmatprep.subr.mxu0 %v45
  %713 = vmatpush1.msra.mxu0 %v44
  %714 = vmatprep.subr.mxu0 %v47
  %715 = vmatpush1.msra.mxu0 %v46
  %716 = vmatprep.subr.mxu0 0.0
  %717 = vmatpush1.msra.mxu0 0.0
  %718 = vmatprep.subr.mxu0 0.0
  %719 = vmatpush1.msra.mxu0 0.0
  %720 = vmatprep.subr.mxu0 0.0
  %721 = vmatpush1.msra.mxu0 0.0
  %722 = vmatprep.subr.mxu0 0.0
  %723 = vmatpush1.msra.mxu0 0.0
  %724 = vmatprep.subr.mxu0 0.0
  %725 = vmatpush1.msra.mxu0 0.0
  %726 = vmatprep.subr.mxu0 0.0
  %727 = vmatpush1.msra.mxu0 0.0
  %728 = vmatprep.subr.mxu0 0.0
  %729 = vmatpush1.msra.mxu0 0.0
  %730 = vmatprep.subr.mxu0 0.0
  %731 = vmatpush1.msra.mxu0 0.0
  %732 = vmatprep.subr.mxu0 0.0
  %733 = vmatpush1.msra.mxu0 0.0
  %734 = vmatprep.subr.mxu0 0.0
  %735 = vmatpush1.msra.mxu0 0.0
  %736 = vmatprep.subr.mxu0 0.0
  %737 = vmatpush1.msra.mxu0 0.0
  %738 = vmatprep.subr.mxu0 0.0
  %739 = vmatpush1.msra.mxu0 0.0
  %740 = vmatprep.subr.mxu0 0.0
  %741 = vmatpush1.msra.mxu0 0.0
  %742 = vmatprep.subr.mxu0 0.0
  %743 = vmatpush1.msra.mxu0 0.0
  %744 = vmatprep.subr.mxu0 0.0
  %745 = vmatpush1.msra.mxu0 0.0
  %746 = vmatprep.subr.mxu0 0.0
  %747 = vmatpush1.msra.mxu0 0.0
  %748 = vmatprep.subr.mxu0 0.0
  %749 = vmatpush1.msra.mxu0 0.0
  %750 = vmatprep.subr.mxu0 0.0
  %751 = vmatpush1.msra.mxu0 0.0
  %752 = vmatprep.subr.mxu0 0.0
  %753 = vmatpush1.msra.mxu0 0.0
  %754 = vmatprep.subr.mxu0 0.0
  %755 = vmatpush1.msra.mxu0 0.0
  %756 = vmatprep.subr.mxu0 0.0
  %757 = vmatpush1.msra.mxu0 0.0
  %758 = vmatprep.subr.mxu0 0.0
  %759 = vmatpush1.msra.mxu0 0.0
  %760 = vmatprep.subr.mxu0 0.0
  %761 = vmatpush1.msra.mxu0 0.0
  %762 = vmatprep.subr.mxu0 0.0
  %763 = vmatpush1.msra.mxu0 0.0
  %764 = vmatprep.subr.mxu0 0.0
  %765 = vmatpush1.msra.mxu0 0.0
  %766 = vmatprep.subr.mxu0 0.0
  %767 = vmatpush1.msra.mxu0 0.0
  %768 = vmatprep.subr.mxu0 0.0
  %769 = vmatpush1.msra.mxu0 0.0
  %770 = vmatprep.subr.mxu0 0.0
  %771 = vmatpush1.msra.mxu0 0.0
  %772 = vmatprep.mubr.f32.mxu0 0.0
  %773 = vmatmul.mubr.f32.gmra.mrb[0].mxu0 %v346
  %v774 = vpop.f32.mrb[0].mxu0
  %v775 = vadd.f32 %v668, %v774
  %v776 = vpop.f32.mrb[0].mxu0
  %v777 = vadd.f32 %v670, %v776
  %778 = vmatprep.mubr.f32.mxu0 0.0
  %779 = vmatmul.mubr.f32.gmra.mrb[0].mxu0 %v349
  %v780 = vpop.f32.mrb[0].mxu0
  %v781 = vadd.f32 %v674, %v780
  %v782 = vpop.f32.mrb[0].mxu0
  %v783 = vadd.f32 %v676, %v782
  %784 = vmatprep.mubr.f32.mxu0 0.0
  %785 = vmatmul.mubr.f32.gmra.mrb[0].mxu0 %v352
  %v786 = vpop.f32.mrb[0].mxu0
  %v787 = vadd.f32 %v680, %v786
  %v788 = vpop.f32.mrb[0].mxu0
  %v789 = vadd.f32 %v682, %v788
  %790 = vmatprep.mubr.f32.mxu0 0.0
  %791 = vmatmul.mubr.f32.gmra.mrb[0].mxu0 %v355
  %v792 = vpop.f32.mrb[0].mxu0
  %v793 = vadd.f32 %v686, %v792
  %v794 = vpop.f32.mrb[0].mxu0
  %v795 = vadd.f32 %v688, %v794
  %796 = vmatprep.mubr.f32.mxu0 0.0
  %797 = vmatmul.mubr.f32.gmra.mrb[0].mxu0 %v358
  %v798 = vpop.f32.mrb[0].mxu0
  %v799 = vadd.f32 %v692, %v798
  %v800 = vpop.f32.mrb[0].mxu0
  %v801 = vadd.f32 %v694, %v800
  %802 = vmatprep.mubr.f32.mxu0 0.0
  %803 = vmatmul.mubr.f32.gmra.mrb[0].mxu0 %v361
  %v804 = vpop.f32.mrb[0].mxu0
  %v805 = vadd.f32 %v698, %v804
  %v806 = vpop.f32.mrb[0].mxu0
  %v807 = vadd.f32 %v700, %v806
  %808 = vmatprep.mubr.f32.mxu0 0.0
  %809 = vmatmul.mubr.f32.gmra.mrb[0].mxu0 %v364
  %v810 = vpop.f32.mrb[0].mxu0
  %v811 = vadd.f32 %v704, %v810
  %v812 = vpop.f32.mrb[0].mxu0
  %v813 = vadd.f32 %v706, %v812
  %814 = vdwg.mxu0
  %v815 = vld [vmem:[%s0 + $0x8] sm:$0xff]
  %v816 = vld [vmem:[%s0 + $0x10] sm:$0xff]
  %v817 = vld [vmem:[%s0 + $0x18] sm:$0xff]
  %v818 = vld [vmem:[%s0 + $0x20] sm:$0xff]
  %v819 = vld [vmem:[%s0 + $0x28] sm:$0xff]
  %v820 = vld [vmem:[%s0 + $0x30] sm:$0xff]
  %v821 = vld [vmem:[%s0 + $0x38] sm:$0xff]
  %v823 = vsel %vm88, %v815, 0
  %v826 = vsel %vm88, %v816, 0
  %v829 = vsel %vm88, %v817, 0
  %v832 = vsel %vm88, %v818, 0
  %v835 = vsel %vm88, %v819, 0
  %v838 = vsel %vm88, %v820, 0
  %v841 = vsel %vm88, %v821, 0
  %843 = vmatprep.subr.mxu0 %v81
  %844 = vmatpush1.msra.mxu0 %v80
  %845 = vmatprep.subr.mxu0 %v83
  %846 = vmatpush1.msra.mxu0 %v82
  %847 = vmatprep.subr.mxu0 %v85
  %848 = vmatpush1.msra.mxu0 %v84
  %849 = vmatprep.subr.mxu0 %v87
  %850 = vmatpush1.msra.mxu0 %v86
  %851 = vmatprep.subr.mxu0 0.0
  %852 = vmatpush1.msra.mxu0 0.0
  %853 = vmatprep.subr.mxu0 0.0
  %854 = vmatpush1.msra.mxu0 0.0
  %855 = vmatprep.subr.mxu0 0.0
  %856 = vmatpush1.msra.mxu0 0.0
  %857 = vmatprep.subr.mxu0 0.0
  %858 = vmatpush1.msra.mxu0 0.0
  %859 = vmatprep.subr.mxu0 0.0
  %860 = vmatpush1.msra.mxu0 0.0
  %861 = vmatprep.subr.mxu0 0.0
  %862 = vmatpush1.msra.mxu0 0.0
  %863 = vmatprep.subr.mxu0 0.0
  %864 = vmatpush1.msra.mxu0 0.0
  %865 = vmatprep.subr.mxu0 0.0
  %866 = vmatpush1.msra.mxu0 0.0
  %867 = vmatprep.subr.mxu0 0.0
  %868 = vmatpush1.msra.mxu0 0.0
  %869 = vmatprep.subr.mxu0 0.0
  %870 = vmatpush1.msra.mxu0 0.0
  %871 = vmatprep.subr.mxu0 0.0
  %872 = vmatpush1.msra.mxu0 0.0
  %873 = vmatprep.subr.mxu0 0.0
  %874 = vmatpush1.msra.mxu0 0.0
  %875 = vmatprep.subr.mxu0 0.0
  %876 = vmatpush1.msra.mxu0 0.0
  %877 = vmatprep.subr.mxu0 0.0
  %878 = vmatpush1.msra.mxu0 0.0
  %879 = vmatprep.subr.mxu0 0.0
  %880 = vmatpush1.msra.mxu0 0.0
  %881 = vmatprep.subr.mxu0 0.0
  %882 = vmatpush1.msra.mxu0 0.0
  %883 = vmatprep.subr.mxu0 0.0
  %884 = vmatpush1.msra.mxu0 0.0
  %885 = vmatprep.subr.mxu0 0.0
  %886 = vmatpush1.msra.mxu0 0.0
  %887 = vmatprep.subr.mxu0 0.0
  %888 = vmatpush1.msra.mxu0 0.0
  %889 = vmatprep.subr.mxu0 0.0
  %890 = vmatpush1.msra.mxu0 0.0
  %891 = vmatprep.subr.mxu0 0.0
  %892 = vmatpush1.msra.mxu0 0.0
  %893 = vmatprep.subr.mxu0 0.0
  %894 = vmatpush1.msra.mxu0 0.0
  %895 = vmatprep.subr.mxu0 0.0
  %896 = vmatpush1.msra.mxu0 0.0
  %897 = vmatprep.subr.mxu0 0.0
  %898 = vmatpush1.msra.mxu0 0.0
  %899 = vmatprep.subr.mxu0 0.0
  %900 = vmatpush1.msra.mxu0 0.0
  %901 = vmatprep.subr.mxu0 0.0
  %902 = vmatpush1.msra.mxu0 0.0
  %903 = vmatprep.subr.mxu0 0.0
  %904 = vmatpush1.msra.mxu0 0.0
  %905 = vmatprep.subr.mxu0 0.0
  %906 = vmatpush1.msra.mxu0 0.0
  %907 = vmatprep.mubr.f32.mxu0 0.0
  %908 = vmatmul.mubr.f32.gmra.mrb[0].mxu0 %v823
  %v909 = vpop.f32.mrb[0].mxu0
  %v910 = vadd.f32 0.0, %v909
  %v911 = vpop.f32.mrb[0].mxu0
  %v912 = vadd.f32 0.0, %v911
  %913 = vmatprep.mubr.f32.mxu0 0.0
  %914 = vmatmul.mubr.f32.gmra.mrb[0].mxu0 %v826
  %v915 = vpop.f32.mrb[0].mxu0
  %v916 = vadd.f32 0.0, %v915
  %v917 = vpop.f32.mrb[0].mxu0
  %v918 = vadd.f32 0.0, %v917
  %919 = vmatprep.mubr.f32.mxu0 0.0
  %920 = vmatmul.mubr.f32.gmra.mrb[0].mxu0 %v829
  %v921 = vpop.f32.mrb[0].mxu0
  %v922 = vadd.f32 0.0, %v921
  %v923 = vpop.f32.mrb[0].mxu0
  %v924 = vadd.f32 0.0, %v923
  %925 = vmatprep.mubr.f32.mxu0 0.0
  %926 = vmatmul.mubr.f32.gmra.mrb[0].mxu0 %v832
  %v927 = vpop.f32.mrb[0].mxu0
  %v928 = vadd.f32 0.0, %v927
  %v929 = vpop.f32.mrb[0].mxu0
  %v930 = vadd.f32 0.0, %v929
  %931 = vmatprep.mubr.f32.mxu0 0.0
  %932 = vmatmul.mubr.f32.gmra.mrb[0].mxu0 %v835
  %v933 = vpop.f32.mrb[0].mxu0
  %v934 = vadd.f32 0.0, %v933
  %v935 = vpop.f32.mrb[0].mxu0
  %v936 = vadd.f32 0.0, %v935
  %937 = vmatprep.mubr.f32.mxu0 0.0
  %938 = vmatmul.mubr.f32.gmra.mrb[0].mxu0 %v838
  %v939 = vpop.f32.mrb[0].mxu0
  %v940 = vadd.f32 0.0, %v939
  %v941 = vpop.f32.mrb[0].mxu0
  %v942 = vadd.f32 0.0, %v941
  %943 = vmatprep.mubr.f32.mxu0 0.0
  %944 = vmatmul.mubr.f32.gmra.mrb[0].mxu0 %v841
  %v945 = vpop.f32.mrb[0].mxu0
  %v946 = vadd.f32 0.0, %v945
  %v947 = vpop.f32.mrb[0].mxu0
  %v948 = vadd.f32 0.0, %v947
  %949 = vdwg.mxu0
  %950 = vmatprep.subr.mxu0 %v41
  %951 = vmatpush1.msra.mxu0 %v40
  %952 = vmatprep.subr.mxu0 %v43
  %953 = vmatpush1.msra.mxu0 %v42
  %954 = vmatprep.subr.mxu0 %v45
  %955 = vmatpush1.msra.mxu0 %v44
  %956 = vmatprep.subr.mxu0 %v47
  %957 = vmatpush1.msra.mxu0 %v46
  %958 = vmatprep.subr.mxu0 0.0
  %959 = vmatpush1.msra.mxu0 0.0
  %960 = vmatprep.subr.mxu0 0.0
  %961 = vmatpush1.msra.mxu0 0.0
  %962 = vmatprep.subr.mxu0 0.0
  %963 = vmatpush1.msra.mxu0 0.0
  %964 = vmatprep.subr.mxu0 0.0
  %965 = vmatpush1.msra.mxu0 0.0
  %966 = vmatprep.subr.mxu0 0.0
  %967 = vmatpush1.msra.mxu0 0.0
  %968 = vmatprep.subr.mxu0 0.0
  %969 = vmatpush1.msra.mxu0 0.0
  %970 = vmatprep.subr.mxu0 0.0
  %971 = vmatpush1.msra.mxu0 0.0
  %972 = vmatprep.subr.mxu0 0.0
  %973 = vmatpush1.msra.mxu0 0.0
  %974 = vmatprep.subr.mxu0 0.0
  %975 = vmatpush1.msra.mxu0 0.0
  %976 = vmatprep.subr.mxu0 0.0
  %977 = vmatpush1.msra.mxu0 0.0
  %978 = vmatprep.subr.mxu0 0.0
  %979 = vmatpush1.msra.mxu0 0.0
  %980 = vmatprep.subr.mxu0 0.0
  %981 = vmatpush1.msra.mxu0 0.0
  %982 = vmatprep.subr.mxu0 0.0
  %983 = vmatpush1.msra.mxu0 0.0
  %984 = vmatprep.subr.mxu0 0.0
  %985 = vmatpush1.msra.mxu0 0.0
  %986 = vmatprep.subr.mxu0 0.0
  %987 = vmatpush1.msra.mxu0 0.0
  %988 = vmatprep.subr.mxu0 0.0
  %989 = vmatpush1.msra.mxu0 0.0
  %990 = vmatprep.subr.mxu0 0.0
  %991 = vmatpush1.msra.mxu0 0.0
  %992 = vmatprep.subr.mxu0 0.0
  %993 = vmatpush1.msra.mxu0 0.0
  %994 = vmatprep.subr.mxu0 0.0
  %995 = vmatpush1.msra.mxu0 0.0
  %996 = vmatprep.subr.mxu0 0.0
  %997 = vmatpush1.msra.mxu0 0.0
  %998 = vmatprep.subr.mxu0 0.0
  %999 = vmatpush1.msra.mxu0 0.0
  %1000 = vmatprep.subr.mxu0 0.0
  %1001 = vmatpush1.msra.mxu0 0.0
  %1002 = vmatprep.subr.mxu0 0.0
  %1003 = vmatpush1.msra.mxu0 0.0
  %1004 = vmatprep.subr.mxu0 0.0
  %1005 = vmatpush1.msra.mxu0 0.0
  %1006 = vmatprep.subr.mxu0 0.0
  %1007 = vmatpush1.msra.mxu0 0.0
  %1008 = vmatprep.subr.mxu0 0.0
  %1009 = vmatpush1.msra.mxu0 0.0
  %1010 = vmatprep.subr.mxu0 0.0
  %1011 = vmatpush1.msra.mxu0 0.0
  %1012 = vmatprep.subr.mxu0 0.0
  %1013 = vmatpush1.msra.mxu0 0.0
  %1014 = vmatprep.mubr.f32.mxu0 0.0
  %1015 = vmatmul.mubr.f32.gmra.mrb[0].mxu0 %v581
  %v1016 = vpop.f32.mrb[0].mxu0
  %v1017 = vadd.f32 %v910, %v1016
  %v1018 = vpop.f32.mrb[0].mxu0
  %v1019 = vadd.f32 %v912, %v1018
  %1020 = vmatprep.mubr.f32.mxu0 0.0
  %1021 = vmatmul.mubr.f32.gmra.mrb[0].mxu0 %v584
  %v1022 = vpop.f32.mrb[0].mxu0
  %v1023 = vadd.f32 %v916, %v1022
  %v1024 = vpop.f32.mrb[0].mxu0
  %v1025 = vadd.f32 %v918, %v1024
  %1026 = vmatprep.mubr.f32.mxu0 0.0
  %1027 = vmatmul.mubr.f32.gmra.mrb[0].mxu0 %v587
  %v1028 = vpop.f32.mrb[0].mxu0
  %v1029 = vadd.f32 %v922, %v1028
  %v1030 = vpop.f32.mrb[0].mxu0
  %v1031 = vadd.f32 %v924, %v1030
  %1032 = vmatprep.mubr.f32.mxu0 0.0
  %1033 = vmatmul.mubr.f32.gmra.mrb[0].mxu0 %v590
  %v1034 = vpop.f32.mrb[0].mxu0
  %v1035 = vadd.f32 %v928, %v1034
  %v1036 = vpop.f32.mrb[0].mxu0
  %v1037 = vadd.f32 %v930, %v1036
  %1038 = vmatprep.mubr.f32.mxu0 0.0
  %1039 = vmatmul.mubr.f32.gmra.mrb[0].mxu0 %v593
  %v1040 = vpop.f32.mrb[0].mxu0
  %v1041 = vadd.f32 %v934, %v1040
  %v1042 = vpop.f32.mrb[0].mxu0
  %v1043 = vadd.f32 %v936, %v1042
  %1044 = vmatprep.mubr.f32.mxu0 0.0
  %1045 = vmatmul.mubr.f32.gmra.mrb[0].mxu0 %v596
  %v1046 = vpop.f32.mrb[0].mxu0
  %v1047 = vadd.f32 %v940, %v1046
  %v1048 = vpop.f32.mrb[0].mxu0
  %v1049 = vadd.f32 %v942, %v1048
  %1050 = vmatprep.mubr.f32.mxu0 0.0
  %1051 = vmatmul.mubr.f32.gmra.mrb[0].mxu0 %v599
  %v1052 = vpop.f32.mrb[0].mxu0
  %v1053 = vadd.f32 %v946, %v1052
  %v1054 = vpop.f32.mrb[0].mxu0
  %v1055 = vadd.f32 %v948, %v1054
  %1056 = vdwg.mxu0
  %s1057 = scalar_lea.vmem %s1, 128
  %v1058 = vld [vmem:[%s1057] sm:$0xff]
  %v1059 = vld [vmem:[%s1057 + $0x8] sm:$0xff]
  %v1060 = vld [vmem:[%s1057 + $0x10] sm:$0xff]
  %v1061 = vld [vmem:[%s1057 + $0x18] sm:$0xff]
  %v1062 = vld [vmem:[%s1057 + $0x20] sm:$0xff]
  %v1063 = vld [vmem:[%s1057 + $0x28] sm:$0xff]
  %v1064 = vld [vmem:[%s1057 + $0x30] sm:$0xff]
  %v1065 = vld [vmem:[%s1057 + $0x38] sm:$0xff]
  %1066 = vmatprep.subr.mxu0 %v1059
  %1067 = vmatpush1.msra.mxu0 %v1058
  %1068 = vmatprep.subr.mxu0 %v1061
  %1069 = vmatpush1.msra.mxu0 %v1060
  %1070 = vmatprep.subr.mxu0 %v1063
  %1071 = vmatpush1.msra.mxu0 %v1062
  %1072 = vmatprep.subr.mxu0 %v1065
  %1073 = vmatpush1.msra.mxu0 %v1064
  %1074 = vmatprep.subr.mxu0 0.0
  %1075 = vmatpush1.msra.mxu0 0.0
  %1076 = vmatprep.subr.mxu0 0.0
  %1077 = vmatpush1.msra.mxu0 0.0
  %1078 = vmatprep.subr.mxu0 0.0
  %1079 = vmatpush1.msra.mxu0 0.0
  %1080 = vmatprep.subr.mxu0 0.0
  %1081 = vmatpush1.msra.mxu0 0.0
  %1082 = vmatprep.subr.mxu0 0.0
  %1083 = vmatpush1.msra.mxu0 0.0
  %1084 = vmatprep.subr.mxu0 0.0
  %1085 = vmatpush1.msra.mxu0 0.0
  %1086 = vmatprep.subr.mxu0 0.0
  %1087 = vmatpush1.msra.mxu0 0.0
  %1088 = vmatprep.subr.mxu0 0.0
  %1089 = vmatpush1.msra.mxu0 0.0
  %1090 = vmatprep.subr.mxu0 0.0
  %1091 = vmatpush1.msra.mxu0 0.0
  %1092 = vmatprep.subr.mxu0 0.0
  %1093 = vmatpush1.msra.mxu0 0.0
  %1094 = vmatprep.subr.mxu0 0.0
  %1095 = vmatpush1.msra.mxu0 0.0
  %1096 = vmatprep.subr.mxu0 0.0
  %1097 = vmatpush1.msra.mxu0 0.0
  %1098 = vmatprep.subr.mxu0 0.0
  %1099 = vmatpush1.msra.mxu0 0.0
  %1100 = vmatprep.subr.mxu0 0.0
  %1101 = vmatpush1.msra.mxu0 0.0
  %1102 = vmatprep.subr.mxu0 0.0
  %1103 = vmatpush1.msra.mxu0 0.0
  %1104 = vmatprep.subr.mxu0 0.0
  %1105 = vmatpush1.msra.mxu0 0.0
  %1106 = vmatprep.subr.mxu0 0.0
  %1107 = vmatpush1.msra.mxu0 0.0
  %1108 = vmatprep.subr.mxu0 0.0
  %1109 = vmatpush1.msra.mxu0 0.0
  %1110 = vmatprep.subr.mxu0 0.0
  %1111 = vmatpush1.msra.mxu0 0.0
  %1112 = vmatprep.subr.mxu0 0.0
  %1113 = vmatpush1.msra.mxu0 0.0
  %1114 = vmatprep.subr.mxu0 0.0
  %1115 = vmatpush1.msra.mxu0 0.0
  %1116 = vmatprep.subr.mxu0 0.0
  %1117 = vmatpush1.msra.mxu0 0.0
  %1118 = vmatprep.subr.mxu0 0.0
  %1119 = vmatpush1.msra.mxu0 0.0
  %1120 = vmatprep.subr.mxu0 0.0
  %1121 = vmatpush1.msra.mxu0 0.0
  %1122 = vmatprep.subr.mxu0 0.0
  %1123 = vmatpush1.msra.mxu0 0.0
  %1124 = vmatprep.subr.mxu0 0.0
  %1125 = vmatpush1.msra.mxu0 0.0
  %1126 = vmatprep.subr.mxu0 0.0
  %1127 = vmatpush1.msra.mxu0 0.0
  %1128 = vmatprep.subr.mxu0 0.0
  %1129 = vmatpush1.msra.mxu0 0.0
  %1130 = vmatprep.mubr.f32.mxu0 0.0
  %1131 = vmatmul.mubr.f32.gmra.mrb[0].mxu0 %v346
  %v1132 = vpop.f32.mrb[0].mxu0
  %v1133 = vadd.f32 0.0, %v1132
  %v1134 = vpop.f32.mrb[0].mxu0
  %v1135 = vadd.f32 0.0, %v1134
  %1136 = vmatprep.mubr.f32.mxu0 0.0
  %1137 = vmatmul.mubr.f32.gmra.mrb[0].mxu0 %v349
  %v1138 = vpop.f32.mrb[0].mxu0
  %v1139 = vadd.f32 0.0, %v1138
  %v1140 = vpop.f32.mrb[0].mxu0
  %v1141 = vadd.f32 0.0, %v1140
  %1142 = vmatprep.mubr.f32.mxu0 0.0
  %1143 = vmatmul.mubr.f32.gmra.mrb[0].mxu0 %v352
  %v1144 = vpop.f32.mrb[0].mxu0
  %v1145 = vadd.f32 0.0, %v1144
  %v1146 = vpop.f32.mrb[0].mxu0
  %v1147 = vadd.f32 0.0, %v1146
  %1148 = vmatprep.mubr.f32.mxu0 0.0
  %1149 = vmatmul.mubr.f32.gmra.mrb[0].mxu0 %v355
  %v1150 = vpop.f32.mrb[0].mxu0
  %v1151 = vadd.f32 0.0, %v1150
  %v1152 = vpop.f32.mrb[0].mxu0
  %v1153 = vadd.f32 0.0, %v1152
  %1154 = vmatprep.mubr.f32.mxu0 0.0
  %1155 = vmatmul.mubr.f32.gmra.mrb[0].mxu0 %v358
  %v1156 = vpop.f32.mrb[0].mxu0
  %v1157 = vadd.f32 0.0, %v1156
  %v1158 = vpop.f32.mrb[0].mxu0
  %v1159 = vadd.f32 0.0, %v1158
  %1160 = vmatprep.mubr.f32.mxu0 0.0
  %1161 = vmatmul.mubr.f32.gmra.mrb[0].mxu0 %v361
  %v1162 = vpop.f32.mrb[0].mxu0
  %v1163 = vadd.f32 0.0, %v1162
  %v1164 = vpop.f32.mrb[0].mxu0
  %v1165 = vadd.f32 0.0, %v1164
  %1166 = vmatprep.mubr.f32.mxu0 0.0
  %1167 = vmatmul.mubr.f32.gmra.mrb[0].mxu0 %v364
  %v1168 = vpop.f32.mrb[0].mxu0
  %v1169 = vadd.f32 0.0, %v1168
  %v1170 = vpop.f32.mrb[0].mxu0
  %v1171 = vadd.f32 0.0, %v1170
  %1172 = vdwg.mxu0
  %v1173 = vadd.f32 %v305, %v1133
  %v1174 = vadd.f32 %v307, %v1135
  %v1175 = vadd.f32 %v311, %v1139
  %v1176 = vadd.f32 %v313, %v1141
  %v1177 = vadd.f32 %v317, %v1145
  %v1178 = vadd.f32 %v319, %v1147
  %v1179 = vadd.f32 %v323, %v1151
  %v1180 = vadd.f32 %v325, %v1153
  %v1181 = vadd.f32 %v329, %v1157
  %v1182 = vadd.f32 %v331, %v1159
  %v1183 = vadd.f32 %v335, %v1163
  %v1184 = vadd.f32 %v337, %v1165
  %v1185 = vadd.f32 %v341, %v1169
  %v1186 = vadd.f32 %v343, %v1171
  %1187 = vmatprep.subr.mxu0 %v1059
  %1188 = vmatpush1.msra.mxu0 %v1058
  %1189 = vmatprep.subr.mxu0 %v1061
  %1190 = vmatpush1.msra.mxu0 %v1060
  %1191 = vmatprep.subr.mxu0 %v1063
  %1192 = vmatpush1.msra.mxu0 %v1062
  %1193 = vmatprep.subr.mxu0 %v1065
  %1194 = vmatpush1.msra.mxu0 %v1064
  %1195 = vmatprep.subr.mxu0 0.0
  %1196 = vmatpush1.msra.mxu0 0.0
  %1197 = vmatprep.subr.mxu0 0.0
  %1198 = vmatpush1.msra.mxu0 0.0
  %1199 = vmatprep.subr.mxu0 0.0
  %1200 = vmatpush1.msra.mxu0 0.0
  %1201 = vmatprep.subr.mxu0 0.0
  %1202 = vmatpush1.msra.mxu0 0.0
  %1203 = vmatprep.subr.mxu0 0.0
  %1204 = vmatpush1.msra.mxu0 0.0
  %1205 = vmatprep.subr.mxu0 0.0
  %1206 = vmatpush1.msra.mxu0 0.0
  %1207 = vmatprep.subr.mxu0 0.0
  %1208 = vmatpush1.msra.mxu0 0.0
  %1209 = vmatprep.subr.mxu0 0.0
  %1210 = vmatpush1.msra.mxu0 0.0
  %1211 = vmatprep.subr.mxu0 0.0
  %1212 = vmatpush1.msra.mxu0 0.0
  %1213 = vmatprep.subr.mxu0 0.0
  %1214 = vmatpush1.msra.mxu0 0.0
  %1215 = vmatprep.subr.mxu0 0.0
  %1216 = vmatpush1.msra.mxu0 0.0
  %1217 = vmatprep.subr.mxu0 0.0
  %1218 = vmatpush1.msra.mxu0 0.0
  %1219 = vmatprep.subr.mxu0 0.0
  %1220 = vmatpush1.msra.mxu0 0.0
  %1221 = vmatprep.subr.mxu0 0.0
  %1222 = vmatpush1.msra.mxu0 0.0
  %1223 = vmatprep.subr.mxu0 0.0
  %1224 = vmatpush1.msra.mxu0 0.0
  %1225 = vmatprep.subr.mxu0 0.0
  %1226 = vmatpush1.msra.mxu0 0.0
  %1227 = vmatprep.subr.mxu0 0.0
  %1228 = vmatpush1.msra.mxu0 0.0
  %1229 = vmatprep.subr.mxu0 0.0
  %1230 = vmatpush1.msra.mxu0 0.0
  %1231 = vmatprep.subr.mxu0 0.0
  %1232 = vmatpush1.msra.mxu0 0.0
  %1233 = vmatprep.subr.mxu0 0.0
  %1234 = vmatpush1.msra.mxu0 0.0
  %1235 = vmatprep.subr.mxu0 0.0
  %1236 = vmatpush1.msra.mxu0 0.0
  %1237 = vmatprep.subr.mxu0 0.0
  %1238 = vmatpush1.msra.mxu0 0.0
  %1239 = vmatprep.subr.mxu0 0.0
  %1240 = vmatpush1.msra.mxu0 0.0
  %1241 = vmatprep.subr.mxu0 0.0
  %1242 = vmatpush1.msra.mxu0 0.0
  %1243 = vmatprep.subr.mxu0 0.0
  %1244 = vmatpush1.msra.mxu0 0.0
  %1245 = vmatprep.subr.mxu0 0.0
  %1246 = vmatpush1.msra.mxu0 0.0
  %1247 = vmatprep.subr.mxu0 0.0
  %1248 = vmatpush1.msra.mxu0 0.0
  %1249 = vmatprep.subr.mxu0 0.0
  %1250 = vmatpush1.msra.mxu0 0.0
  %1251 = vmatprep.mubr.f32.mxu0 0.0
  %1252 = vmatmul.mubr.f32.gmra.mrb[0].mxu0 %v581
  %v1253 = vpop.f32.mrb[0].mxu0
  %v1254 = vadd.f32 0.0, %v1253
  %v1255 = vpop.f32.mrb[0].mxu0
  %v1256 = vadd.f32 0.0, %v1255
  %1257 = vmatprep.mubr.f32.mxu0 0.0
  %1258 = vmatmul.mubr.f32.gmra.mrb[0].mxu0 %v584
  %v1259 = vpop.f32.mrb[0].mxu0
  %v1260 = vadd.f32 0.0, %v1259
  %v1261 = vpop.f32.mrb[0].mxu0
  %v1262 = vadd.f32 0.0, %v1261
  %1263 = vmatprep.mubr.f32.mxu0 0.0
  %1264 = vmatmul.mubr.f32.gmra.mrb[0].mxu0 %v587
  %v1265 = vpop.f32.mrb[0].mxu0
  %v1266 = vadd.f32 0.0, %v1265
  %v1267 = vpop.f32.mrb[0].mxu0
  %v1268 = vadd.f32 0.0, %v1267
  %1269 = vmatprep.mubr.f32.mxu0 0.0
  %1270 = vmatmul.mubr.f32.gmra.mrb[0].mxu0 %v590
  %v1271 = vpop.f32.mrb[0].mxu0
  %v1272 = vadd.f32 0.0, %v1271
  %v1273 = vpop.f32.mrb[0].mxu0
  %v1274 = vadd.f32 0.0, %v1273
  %1275 = vmatprep.mubr.f32.mxu0 0.0
  %1276 = vmatmul.mubr.f32.gmra.mrb[0].mxu0 %v593
  %v1277 = vpop.f32.mrb[0].mxu0
  %v1278 = vadd.f32 0.0, %v1277
  %v1279 = vpop.f32.mrb[0].mxu0
  %v1280 = vadd.f32 0.0, %v1279
  %1281 = vmatprep.mubr.f32.mxu0 0.0
  %1282 = vmatmul.mubr.f32.gmra.mrb[0].mxu0 %v596
  %v1283 = vpop.f32.mrb[0].mxu0
  %v1284 = vadd.f32 0.0, %v1283
  %v1285 = vpop.f32.mrb[0].mxu0
  %v1286 = vadd.f32 0.0, %v1285
  %1287 = vmatprep.mubr.f32.mxu0 0.0
  %1288 = vmatmul.mubr.f32.gmra.mrb[0].mxu0 %v599
  %v1289 = vpop.f32.mrb[0].mxu0
  %v1290 = vadd.f32 0.0, %v1289
  %v1291 = vpop.f32.mrb[0].mxu0
  %v1292 = vadd.f32 0.0, %v1291
  %1293 = vdwg.mxu0
  %v1294 = vadd.f32 %v540, %v1254
  %v1295 = vadd.f32 %v542, %v1256
  %v1296 = vadd.f32 %v546, %v1260
  %v1297 = vadd.f32 %v548, %v1262
  %v1298 = vadd.f32 %v552, %v1266
  %v1299 = vadd.f32 %v554, %v1268
  %v1300 = vadd.f32 %v558, %v1272
  %v1301 = vadd.f32 %v560, %v1274
  %v1302 = vadd.f32 %v564, %v1278
  %v1303 = vadd.f32 %v566, %v1280
  %v1304 = vadd.f32 %v570, %v1284
  %v1305 = vadd.f32 %v572, %v1286
  %v1306 = vadd.f32 %v576, %v1290
  %v1307 = vadd.f32 %v578, %v1292
  %1308 = vmatprep.subr.mxu0 %v1059
  %1309 = vmatpush1.msra.mxu0 %v1058
  %1310 = vmatprep.subr.mxu0 %v1061
  %1311 = vmatpush1.msra.mxu0 %v1060
  %1312 = vmatprep.subr.mxu0 %v1063
  %1313 = vmatpush1.msra.mxu0 %v1062
  %1314 = vmatprep.subr.mxu0 %v1065
  %1315 = vmatpush1.msra.mxu0 %v1064
  %1316 = vmatprep.subr.mxu0 0.0
  %1317 = vmatpush1.msra.mxu0 0.0
  %1318 = vmatprep.subr.mxu0 0.0
  %1319 = vmatpush1.msra.mxu0 0.0
  %1320 = vmatprep.subr.mxu0 0.0
  %1321 = vmatpush1.msra.mxu0 0.0
  %1322 = vmatprep.subr.mxu0 0.0
  %1323 = vmatpush1.msra.mxu0 0.0
  %1324 = vmatprep.subr.mxu0 0.0
  %1325 = vmatpush1.msra.mxu0 0.0
  %1326 = vmatprep.subr.mxu0 0.0
  %1327 = vmatpush1.msra.mxu0 0.0
  %1328 = vmatprep.subr.mxu0 0.0
  %1329 = vmatpush1.msra.mxu0 0.0
  %1330 = vmatprep.subr.mxu0 0.0
  %1331 = vmatpush1.msra.mxu0 0.0
  %1332 = vmatprep.subr.mxu0 0.0
  %1333 = vmatpush1.msra.mxu0 0.0
  %1334 = vmatprep.subr.mxu0 0.0
  %1335 = vmatpush1.msra.mxu0 0.0
  %1336 = vmatprep.subr.mxu0 0.0
  %1337 = vmatpush1.msra.mxu0 0.0
  %1338 = vmatprep.subr.mxu0 0.0
  %1339 = vmatpush1.msra.mxu0 0.0
  %1340 = vmatprep.subr.mxu0 0.0
  %1341 = vmatpush1.msra.mxu0 0.0
  %1342 = vmatprep.subr.mxu0 0.0
  %1343 = vmatpush1.msra.mxu0 0.0
  %1344 = vmatprep.subr.mxu0 0.0
  %1345 = vmatpush1.msra.mxu0 0.0
  %1346 = vmatprep.subr.mxu0 0.0
  %1347 = vmatpush1.msra.mxu0 0.0
  %1348 = vmatprep.subr.mxu0 0.0
  %1349 = vmatpush1.msra.mxu0 0.0
  %1350 = vmatprep.subr.mxu0 0.0
  %1351 = vmatpush1.msra.mxu0 0.0
  %1352 = vmatprep.subr.mxu0 0.0
  %1353 = vmatpush1.msra.mxu0 0.0
  %1354 = vmatprep.subr.mxu0 0.0
  %1355 = vmatpush1.msra.mxu0 0.0
  %1356 = vmatprep.subr.mxu0 0.0
  %1357 = vmatpush1.msra.mxu0 0.0
  %1358 = vmatprep.subr.mxu0 0.0
  %1359 = vmatpush1.msra.mxu0 0.0
  %1360 = vmatprep.subr.mxu0 0.0
  %1361 = vmatpush1.msra.mxu0 0.0
  %1362 = vmatprep.subr.mxu0 0.0
  %1363 = vmatpush1.msra.mxu0 0.0
  %1364 = vmatprep.subr.mxu0 0.0
  %1365 = vmatpush1.msra.mxu0 0.0
  %1366 = vmatprep.subr.mxu0 0.0
  %1367 = vmatpush1.msra.mxu0 0.0
  %1368 = vmatprep.subr.mxu0 0.0
  %1369 = vmatpush1.msra.mxu0 0.0
  %1370 = vmatprep.subr.mxu0 0.0
  %1371 = vmatpush1.msra.mxu0 0.0
  %1372 = vmatprep.mubr.f32.mxu0 0.0
  %1373 = vmatmul.mubr.f32.gmra.mrb[0].mxu0 %v823
  %v1374 = vpop.f32.mrb[0].mxu0
  %v1375 = vadd.f32 0.0, %v1374
  %v1376 = vpop.f32.mrb[0].mxu0
  %v1377 = vadd.f32 0.0, %v1376
  %1378 = vmatprep.mubr.f32.mxu0 0.0
  %1379 = vmatmul.mubr.f32.gmra.mrb[0].mxu0 %v826
  %v1380 = vpop.f32.mrb[0].mxu0
  %v1381 = vadd.f32 0.0, %v1380
  %v1382 = vpop.f32.mrb[0].mxu0
  %v1383 = vadd.f32 0.0, %v1382
  %1384 = vmatprep.mubr.f32.mxu0 0.0
  %1385 = vmatmul.mubr.f32.gmra.mrb[0].mxu0 %v829
  %v1386 = vpop.f32.mrb[0].mxu0
  %v1387 = vadd.f32 0.0, %v1386
  %v1388 = vpop.f32.mrb[0].mxu0
  %v1389 = vadd.f32 0.0, %v1388
  %1390 = vmatprep.mubr.f32.mxu0 0.0
  %1391 = vmatmul.mubr.f32.gmra.mrb[0].mxu0 %v832
  %v1392 = vpop.f32.mrb[0].mxu0
  %v1393 = vadd.f32 0.0, %v1392
  %v1394 = vpop.f32.mrb[0].mxu0
  %v1395 = vadd.f32 0.0, %v1394
  %1396 = vmatprep.mubr.f32.mxu0 0.0
  %1397 = vmatmul.mubr.f32.gmra.mrb[0].mxu0 %v835
  %v1398 = vpop.f32.mrb[0].mxu0
  %v1399 = vadd.f32 0.0, %v1398
  %v1400 = vpop.f32.mrb[0].mxu0
  %v1401 = vadd.f32 0.0, %v1400
  %1402 = vmatprep.mubr.f32.mxu0 0.0
  %1403 = vmatmul.mubr.f32.gmra.mrb[0].mxu0 %v838
  %v1404 = vpop.f32.mrb[0].mxu0
  %v1405 = vadd.f32 0.0, %v1404
  %v1406 = vpop.f32.mrb[0].mxu0
  %v1407 = vadd.f32 0.0, %v1406
  %1408 = vmatprep.mubr.f32.mxu0 0.0
  %1409 = vmatmul.mubr.f32.gmra.mrb[0].mxu0 %v841
  %v1410 = vpop.f32.mrb[0].mxu0
  %v1411 = vadd.f32 0.0, %v1410
  %v1412 = vpop.f32.mrb[0].mxu0
  %v1413 = vadd.f32 0.0, %v1412
  %1414 = vdwg.mxu0
  %v1415 = vadd.f32 %v775, %v1375
  %v1416 = vadd.f32 %v777, %v1377
  %v1417 = vadd.f32 %v781, %v1381
  %v1418 = vadd.f32 %v783, %v1383
  %v1419 = vadd.f32 %v787, %v1387
  %v1420 = vadd.f32 %v789, %v1389
  %v1421 = vadd.f32 %v793, %v1393
  %v1422 = vadd.f32 %v795, %v1395
  %v1423 = vadd.f32 %v799, %v1399
  %v1424 = vadd.f32 %v801, %v1401
  %v1425 = vadd.f32 %v805, %v1405
  %v1426 = vadd.f32 %v807, %v1407
  %v1427 = vadd.f32 %v811, %v1411
  %v1428 = vadd.f32 %v813, %v1413
  %v1429 = vld [vmem:[%s55 + $0x8] sm:$0xff]
  %v1430 = vld [vmem:[%s55 + $0x10] sm:$0xff]
  %v1431 = vld [vmem:[%s55 + $0x18] sm:$0xff]
  %v1432 = vld [vmem:[%s55 + $0x20] sm:$0xff]
  %v1433 = vld [vmem:[%s55 + $0x28] sm:$0xff]
  %v1434 = vld [vmem:[%s55 + $0x30] sm:$0xff]
  %v1435 = vld [vmem:[%s55 + $0x38] sm:$0xff]
  %v1437 = vsel %vm88, %v1429, 0
  %v1440 = vsel %vm88, %v1430, 0
  %v1443 = vsel %vm88, %v1431, 0
  %v1446 = vsel %vm88, %v1432, 0
  %v1449 = vsel %vm88, %v1433, 0
  %v1452 = vsel %vm88, %v1434, 0
  %v1455 = vsel %vm88, %v1435, 0
  %1457 = vmatprep.subr.mxu0 %v1059
  %1458 = vmatpush1.msra.mxu0 %v1058
  %1459 = vmatprep.subr.mxu0 %v1061
  %1460 = vmatpush1.msra.mxu0 %v1060
  %1461 = vmatprep.subr.mxu0 %v1063
  %1462 = vmatpush1.msra.mxu0 %v1062
  %1463 = vmatprep.subr.mxu0 %v1065
  %1464 = vmatpush1.msra.mxu0 %v1064
  %1465 = vmatprep.subr.mxu0 0.0
  %1466 = vmatpush1.msra.mxu0 0.0
  %1467 = vmatprep.subr.mxu0 0.0
  %1468 = vmatpush1.msra.mxu0 0.0
  %1469 = vmatprep.subr.mxu0 0.0
  %1470 = vmatpush1.msra.mxu0 0.0
  %1471 = vmatprep.subr.mxu0 0.0
  %1472 = vmatpush1.msra.mxu0 0.0
  %1473 = vmatprep.subr.mxu0 0.0
  %1474 = vmatpush1.msra.mxu0 0.0
  %1475 = vmatprep.subr.mxu0 0.0
  %1476 = vmatpush1.msra.mxu0 0.0
  %1477 = vmatprep.subr.mxu0 0.0
  %1478 = vmatpush1.msra.mxu0 0.0
  %1479 = vmatprep.subr.mxu0 0.0
  %1480 = vmatpush1.msra.mxu0 0.0
  %1481 = vmatprep.subr.mxu0 0.0
  %1482 = vmatpush1.msra.mxu0 0.0
  %1483 = vmatprep.subr.mxu0 0.0
  %1484 = vmatpush1.msra.mxu0 0.0
  %1485 = vmatprep.subr.mxu0 0.0
  %1486 = vmatpush1.msra.mxu0 0.0
  %1487 = vmatprep.subr.mxu0 0.0
  %1488 = vmatpush1.msra.mxu0 0.0
  %1489 = vmatprep.subr.mxu0 0.0
  %1490 = vmatpush1.msra.mxu0 0.0
  %1491 = vmatprep.subr.mxu0 0.0
  %1492 = vmatpush1.msra.mxu0 0.0
  %1493 = vmatprep.subr.mxu0 0.0
  %1494 = vmatpush1.msra.mxu0 0.0
  %1495 = vmatprep.subr.mxu0 0.0
  %1496 = vmatpush1.msra.mxu0 0.0
  %1497 = vmatprep.subr.mxu0 0.0
  %1498 = vmatpush1.msra.mxu0 0.0
  %1499 = vmatprep.subr.mxu0 0.0
  %1500 = vmatpush1.msra.mxu0 0.0
  %1501 = vmatprep.subr.mxu0 0.0
  %1502 = vmatpush1.msra.mxu0 0.0
  %1503 = vmatprep.subr.mxu0 0.0
  %1504 = vmatpush1.msra.mxu0 0.0
  %1505 = vmatprep.subr.mxu0 0.0
  %1506 = vmatpush1.msra.mxu0 0.0
  %1507 = vmatprep.subr.mxu0 0.0
  %1508 = vmatpush1.msra.mxu0 0.0
  %1509 = vmatprep.subr.mxu0 0.0
  %1510 = vmatpush1.msra.mxu0 0.0
  %1511 = vmatprep.subr.mxu0 0.0
  %1512 = vmatpush1.msra.mxu0 0.0
  %1513 = vmatprep.subr.mxu0 0.0
  %1514 = vmatpush1.msra.mxu0 0.0
  %1515 = vmatprep.subr.mxu0 0.0
  %1516 = vmatpush1.msra.mxu0 0.0
  %1517 = vmatprep.subr.mxu0 0.0
  %1518 = vmatpush1.msra.mxu0 0.0
  %1519 = vmatprep.subr.mxu0 0.0
  %1520 = vmatpush1.msra.mxu0 0.0
  %1521 = vmatprep.mubr.f32.mxu0 0.0
  %1522 = vmatmul.mubr.f32.gmra.mrb[0].mxu0 %v1437
  %v1523 = vpop.f32.mrb[0].mxu0
  %v1524 = vadd.f32 0.0, %v1523
  %v1525 = vpop.f32.mrb[0].mxu0
  %v1526 = vadd.f32 0.0, %v1525
  %1527 = vmatprep.mubr.f32.mxu0 0.0
  %1528 = vmatmul.mubr.f32.gmra.mrb[0].mxu0 %v1440
  %v1529 = vpop.f32.mrb[0].mxu0
  %v1530 = vadd.f32 0.0, %v1529
  %v1531 = vpop.f32.mrb[0].mxu0
  %v1532 = vadd.f32 0.0, %v1531
  %1533 = vmatprep.mubr.f32.mxu0 0.0
  %1534 = vmatmul.mubr.f32.gmra.mrb[0].mxu0 %v1443
  %v1535 = vpop.f32.mrb[0].mxu0
  %v1536 = vadd.f32 0.0, %v1535
  %v1537 = vpop.f32.mrb[0].mxu0
  %v1538 = vadd.f32 0.0, %v1537
  %1539 = vmatprep.mubr.f32.mxu0 0.0
  %1540 = vmatmul.mubr.f32.gmra.mrb[0].mxu0 %v1446
  %v1541 = vpop.f32.mrb[0].mxu0
  %v1542 = vadd.f32 0.0, %v1541
  %v1543 = vpop.f32.mrb[0].mxu0
  %v1544 = vadd.f32 0.0, %v1543
  %1545 = vmatprep.mubr.f32.mxu0 0.0
  %1546 = vmatmul.mubr.f32.gmra.mrb[0].mxu0 %v1449
  %v1547 = vpop.f32.mrb[0].mxu0
  %v1548 = vadd.f32 0.0, %v1547
  %v1549 = vpop.f32.mrb[0].mxu0
  %v1550 = vadd.f32 0.0, %v1549
  %1551 = vmatprep.mubr.f32.mxu0 0.0
  %1552 = vmatmul.mubr.f32.gmra.mrb[0].mxu0 %v1452
  %v1553 = vpop.f32.mrb[0].mxu0
  %v1554 = vadd.f32 0.0, %v1553
  %v1555 = vpop.f32.mrb[0].mxu0
  %v1556 = vadd.f32 0.0, %v1555
  %1557 = vmatprep.mubr.f32.mxu0 0.0
  %1558 = vmatmul.mubr.f32.gmra.mrb[0].mxu0 %v1455
  %v1559 = vpop.f32.mrb[0].mxu0
  %v1560 = vadd.f32 0.0, %v1559
  %v1561 = vpop.f32.mrb[0].mxu0
  %v1562 = vadd.f32 0.0, %v1561
  %1563 = vdwg.mxu0
  %v1564 = vadd.f32 %v1017, %v1524
  %v1565 = vadd.f32 %v1019, %v1526
  %v1566 = vadd.f32 %v1023, %v1530
  %v1567 = vadd.f32 %v1025, %v1532
  %v1568 = vadd.f32 %v1029, %v1536
  %v1569 = vadd.f32 %v1031, %v1538
  %v1570 = vadd.f32 %v1035, %v1542
  %v1571 = vadd.f32 %v1037, %v1544
  %v1572 = vadd.f32 %v1041, %v1548
  %v1573 = vadd.f32 %v1043, %v1550
  %v1574 = vadd.f32 %v1047, %v1554
  %v1575 = vadd.f32 %v1049, %v1556
  %v1576 = vadd.f32 %v1053, %v1560
  %v1577 = vadd.f32 %v1055, %v1562
  %s1578 = scalar_lea.vmem %s1, 192
  %v1579 = vld [vmem:[%s1578] sm:$0xff]
  %v1580 = vld [vmem:[%s1578 + $0x8] sm:$0xff]
  %v1581 = vld [vmem:[%s1578 + $0x10] sm:$0xff]
  %v1582 = vld [vmem:[%s1578 + $0x18] sm:$0xff]
  %v1583 = vld [vmem:[%s1578 + $0x20] sm:$0xff]
  %v1584 = vld [vmem:[%s1578 + $0x28] sm:$0xff]
  %v1585 = vld [vmem:[%s1578 + $0x30] sm:$0xff]
  %v1586 = vld [vmem:[%s1578 + $0x38] sm:$0xff]
  %1587 = vmatprep.subr.mxu0 %v1580
  %1588 = vmatpush1.msra.mxu0 %v1579
  %1589 = vmatprep.subr.mxu0 %v1582
  %1590 = vmatpush1.msra.mxu0 %v1581
  %1591 = vmatprep.subr.mxu0 %v1584
  %1592 = vmatpush1.msra.mxu0 %v1583
  %1593 = vmatprep.subr.mxu0 %v1586
  %1594 = vmatpush1.msra.mxu0 %v1585
  %1595 = vmatprep.subr.mxu0 0.0
  %1596 = vmatpush1.msra.mxu0 0.0
  %1597 = vmatprep.subr.mxu0 0.0
  %1598 = vmatpush1.msra.mxu0 0.0
  %1599 = vmatprep.subr.mxu0 0.0
  %1600 = vmatpush1.msra.mxu0 0.0
  %1601 = vmatprep.subr.mxu0 0.0
  %1602 = vmatpush1.msra.mxu0 0.0
  %1603 = vmatprep.subr.mxu0 0.0
  %1604 = vmatpush1.msra.mxu0 0.0
  %1605 = vmatprep.subr.mxu0 0.0
  %1606 = vmatpush1.msra.mxu0 0.0
  %1607 = vmatprep.subr.mxu0 0.0
  %1608 = vmatpush1.msra.mxu0 0.0
  %1609 = vmatprep.subr.mxu0 0.0
  %1610 = vmatpush1.msra.mxu0 0.0
  %1611 = vmatprep.subr.mxu0 0.0
  %1612 = vmatpush1.msra.mxu0 0.0
  %1613 = vmatprep.subr.mxu0 0.0
  %1614 = vmatpush1.msra.mxu0 0.0
  %1615 = vmatprep.subr.mxu0 0.0
  %1616 = vmatpush1.msra.mxu0 0.0
  %1617 = vmatprep.subr.mxu0 0.0
  %1618 = vmatpush1.msra.mxu0 0.0
  %1619 = vmatprep.subr.mxu0 0.0
  %1620 = vmatpush1.msra.mxu0 0.0
  %1621 = vmatprep.subr.mxu0 0.0
  %1622 = vmatpush1.msra.mxu0 0.0
  %1623 = vmatprep.subr.mxu0 0.0
  %1624 = vmatpush1.msra.mxu0 0.0
  %1625 = vmatprep.subr.mxu0 0.0
  %1626 = vmatpush1.msra.mxu0 0.0
  %1627 = vmatprep.subr.mxu0 0.0
  %1628 = vmatpush1.msra.mxu0 0.0
  %1629 = vmatprep.subr.mxu0 0.0
  %1630 = vmatpush1.msra.mxu0 0.0
  %1631 = vmatprep.subr.mxu0 0.0
  %1632 = vmatpush1.msra.mxu0 0.0
  %1633 = vmatprep.subr.mxu0 0.0
  %1634 = vmatpush1.msra.mxu0 0.0
  %1635 = vmatprep.subr.mxu0 0.0
  %1636 = vmatpush1.msra.mxu0 0.0
  %1637 = vmatprep.subr.mxu0 0.0
  %1638 = vmatpush1.msra.mxu0 0.0
  %1639 = vmatprep.subr.mxu0 0.0
  %1640 = vmatpush1.msra.mxu0 0.0
  %1641 = vmatprep.subr.mxu0 0.0
  %1642 = vmatpush1.msra.mxu0 0.0
  %1643 = vmatprep.subr.mxu0 0.0
  %1644 = vmatpush1.msra.mxu0 0.0
  %1645 = vmatprep.subr.mxu0 0.0
  %1646 = vmatpush1.msra.mxu0 0.0
  %1647 = vmatprep.subr.mxu0 0.0
  %1648 = vmatpush1.msra.mxu0 0.0
  %1649 = vmatprep.subr.mxu0 0.0
  %1650 = vmatpush1.msra.mxu0 0.0
  %1651 = vmatprep.mubr.f32.mxu0 0.0
  %1652 = vmatmul.mubr.f32.gmra.mrb[0].mxu0 %v581
  %v1653 = vpop.f32.mrb[0].mxu0
  %v1654 = vadd.f32 0.0, %v1653
  %v1655 = vpop.f32.mrb[0].mxu0
  %v1656 = vadd.f32 0.0, %v1655
  %1657 = vmatprep.mubr.f32.mxu0 0.0
  %1658 = vmatmul.mubr.f32.gmra.mrb[0].mxu0 %v584
  %v1659 = vpop.f32.mrb[0].mxu0
  %v1660 = vadd.f32 0.0, %v1659
  %v1661 = vpop.f32.mrb[0].mxu0
  %v1662 = vadd.f32 0.0, %v1661
  %1663 = vmatprep.mubr.f32.mxu0 0.0
  %1664 = vmatmul.mubr.f32.gmra.mrb[0].mxu0 %v587
  %v1665 = vpop.f32.mrb[0].mxu0
  %v1666 = vadd.f32 0.0, %v1665
  %v1667 = vpop.f32.mrb[0].mxu0
  %v1668 = vadd.f32 0.0, %v1667
  %1669 = vmatprep.mubr.f32.mxu0 0.0
  %1670 = vmatmul.mubr.f32.gmra.mrb[0].mxu0 %v590
  %v1671 = vpop.f32.mrb[0].mxu0
  %v1672 = vadd.f32 0.0, %v1671
  %v1673 = vpop.f32.mrb[0].mxu0
  %v1674 = vadd.f32 0.0, %v1673
  %1675 = vmatprep.mubr.f32.mxu0 0.0
  %1676 = vmatmul.mubr.f32.gmra.mrb[0].mxu0 %v593
  %v1677 = vpop.f32.mrb[0].mxu0
  %v1678 = vadd.f32 0.0, %v1677
  %v1679 = vpop.f32.mrb[0].mxu0
  %v1680 = vadd.f32 0.0, %v1679
  %1681 = vmatprep.mubr.f32.mxu0 0.0
  %1682 = vmatmul.mubr.f32.gmra.mrb[0].mxu0 %v596
  %v1683 = vpop.f32.mrb[0].mxu0
  %v1684 = vadd.f32 0.0, %v1683
  %v1685 = vpop.f32.mrb[0].mxu0
  %v1686 = vadd.f32 0.0, %v1685
  %1687 = vmatprep.mubr.f32.mxu0 0.0
  %1688 = vmatmul.mubr.f32.gmra.mrb[0].mxu0 %v599
  %v1689 = vpop.f32.mrb[0].mxu0
  %v1690 = vadd.f32 0.0, %v1689
  %v1691 = vpop.f32.mrb[0].mxu0
  %v1692 = vadd.f32 0.0, %v1691
  %1693 = vdwg.mxu0
  %v1694 = vadd.f32 %v1173, %v1654
  %v1695 = vadd.f32 %v1174, %v1656
  %v1696 = vadd.f32 %v1175, %v1660
  %v1697 = vadd.f32 %v1176, %v1662
  %v1698 = vadd.f32 %v1177, %v1666
  %v1699 = vadd.f32 %v1178, %v1668
  %v1700 = vadd.f32 %v1179, %v1672
  %v1701 = vadd.f32 %v1180, %v1674
  %v1702 = vadd.f32 %v1181, %v1678
  %v1703 = vadd.f32 %v1182, %v1680
  %v1704 = vadd.f32 %v1183, %v1684
  %v1705 = vadd.f32 %v1184, %v1686
  %v1706 = vadd.f32 %v1185, %v1690
  %v1707 = vadd.f32 %v1186, %v1692
  %1708 = vmatprep.subr.mxu0 %v1580
  %1709 = vmatpush1.msra.mxu0 %v1579
  %1710 = vmatprep.subr.mxu0 %v1582
  %1711 = vmatpush1.msra.mxu0 %v1581
  %1712 = vmatprep.subr.mxu0 %v1584
  %1713 = vmatpush1.msra.mxu0 %v1583
  %1714 = vmatprep.subr.mxu0 %v1586
  %1715 = vmatpush1.msra.mxu0 %v1585
  %1716 = vmatprep.subr.mxu0 0.0
  %1717 = vmatpush1.msra.mxu0 0.0
  %1718 = vmatprep.subr.mxu0 0.0
  %1719 = vmatpush1.msra.mxu0 0.0
  %1720 = vmatprep.subr.mxu0 0.0
  %1721 = vmatpush1.msra.mxu0 0.0
  %1722 = vmatprep.subr.mxu0 0.0
  %1723 = vmatpush1.msra.mxu0 0.0
  %1724 = vmatprep.subr.mxu0 0.0
  %1725 = vmatpush1.msra.mxu0 0.0
  %1726 = vmatprep.subr.mxu0 0.0
  %1727 = vmatpush1.msra.mxu0 0.0
  %1728 = vmatprep.subr.mxu0 0.0
  %1729 = vmatpush1.msra.mxu0 0.0
  %1730 = vmatprep.subr.mxu0 0.0
  %1731 = vmatpush1.msra.mxu0 0.0
  %1732 = vmatprep.subr.mxu0 0.0
  %1733 = vmatpush1.msra.mxu0 0.0
  %1734 = vmatprep.subr.mxu0 0.0
  %1735 = vmatpush1.msra.mxu0 0.0
  %1736 = vmatprep.subr.mxu0 0.0
  %1737 = vmatpush1.msra.mxu0 0.0
  %1738 = vmatprep.subr.mxu0 0.0
  %1739 = vmatpush1.msra.mxu0 0.0
  %1740 = vmatprep.subr.mxu0 0.0
  %1741 = vmatpush1.msra.mxu0 0.0
  %1742 = vmatprep.subr.mxu0 0.0
  %1743 = vmatpush1.msra.mxu0 0.0
  %1744 = vmatprep.subr.mxu0 0.0
  %1745 = vmatpush1.msra.mxu0 0.0
  %1746 = vmatprep.subr.mxu0 0.0
  %1747 = vmatpush1.msra.mxu0 0.0
  %1748 = vmatprep.subr.mxu0 0.0
  %1749 = vmatpush1.msra.mxu0 0.0
  %1750 = vmatprep.subr.mxu0 0.0
  %1751 = vmatpush1.msra.mxu0 0.0
  %1752 = vmatprep.subr.mxu0 0.0
  %1753 = vmatpush1.msra.mxu0 0.0
  %1754 = vmatprep.subr.mxu0 0.0
  %1755 = vmatpush1.msra.mxu0 0.0
  %1756 = vmatprep.subr.mxu0 0.0
  %1757 = vmatpush1.msra.mxu0 0.0
  %1758 = vmatprep.subr.mxu0 0.0
  %1759 = vmatpush1.msra.mxu0 0.0
  %1760 = vmatprep.subr.mxu0 0.0
  %1761 = vmatpush1.msra.mxu0 0.0
  %1762 = vmatprep.subr.mxu0 0.0
  %1763 = vmatpush1.msra.mxu0 0.0
  %1764 = vmatprep.subr.mxu0 0.0
  %1765 = vmatpush1.msra.mxu0 0.0
  %1766 = vmatprep.subr.mxu0 0.0
  %1767 = vmatpush1.msra.mxu0 0.0
  %1768 = vmatprep.subr.mxu0 0.0
  %1769 = vmatpush1.msra.mxu0 0.0
  %1770 = vmatprep.subr.mxu0 0.0
  %1771 = vmatpush1.msra.mxu0 0.0
  %1772 = vmatprep.mubr.f32.mxu0 0.0
  %1773 = vmatmul.mubr.f32.gmra.mrb[0].mxu0 %v823
  %v1774 = vpop.f32.mrb[0].mxu0
  %v1775 = vadd.f32 0.0, %v1774
  %v1776 = vpop.f32.mrb[0].mxu0
  %v1777 = vadd.f32 0.0, %v1776
  %1778 = vmatprep.mubr.f32.mxu0 0.0
  %1779 = vmatmul.mubr.f32.gmra.mrb[0].mxu0 %v826
  %v1780 = vpop.f32.mrb[0].mxu0
  %v1781 = vadd.f32 0.0, %v1780
  %v1782 = vpop.f32.mrb[0].mxu0
  %v1783 = vadd.f32 0.0, %v1782
  %1784 = vmatprep.mubr.f32.mxu0 0.0
  %1785 = vmatmul.mubr.f32.gmra.mrb[0].mxu0 %v829
  %v1786 = vpop.f32.mrb[0].mxu0
  %v1787 = vadd.f32 0.0, %v1786
  %v1788 = vpop.f32.mrb[0].mxu0
  %v1789 = vadd.f32 0.0, %v1788
  %1790 = vmatprep.mubr.f32.mxu0 0.0
  %1791 = vmatmul.mubr.f32.gmra.mrb[0].mxu0 %v832
  %v1792 = vpop.f32.mrb[0].mxu0
  %v1793 = vadd.f32 0.0, %v1792
  %v1794 = vpop.f32.mrb[0].mxu0
  %v1795 = vadd.f32 0.0, %v1794
  %1796 = vmatprep.mubr.f32.mxu0 0.0
  %1797 = vmatmul.mubr.f32.gmra.mrb[0].mxu0 %v835
  %v1798 = vpop.f32.mrb[0].mxu0
  %v1799 = vadd.f32 0.0, %v1798
  %v1800 = vpop.f32.mrb[0].mxu0
  %v1801 = vadd.f32 0.0, %v1800
  %1802 = vmatprep.mubr.f32.mxu0 0.0
  %1803 = vmatmul.mubr.f32.gmra.mrb[0].mxu0 %v838
  %v1804 = vpop.f32.mrb[0].mxu0
  %v1805 = vadd.f32 0.0, %v1804
  %v1806 = vpop.f32.mrb[0].mxu0
  %v1807 = vadd.f32 0.0, %v1806
  %1808 = vmatprep.mubr.f32.mxu0 0.0
  %1809 = vmatmul.mubr.f32.gmra.mrb[0].mxu0 %v841
  %v1810 = vpop.f32.mrb[0].mxu0
  %v1811 = vadd.f32 0.0, %v1810
  %v1812 = vpop.f32.mrb[0].mxu0
  %v1813 = vadd.f32 0.0, %v1812
  %1814 = vdwg.mxu0
  %v1815 = vadd.f32 %v1294, %v1775
  %v1816 = vadd.f32 %v1295, %v1777
  %v1817 = vadd.f32 %v1296, %v1781
  %v1818 = vadd.f32 %v1297, %v1783
  %v1819 = vadd.f32 %v1298, %v1787
  %v1820 = vadd.f32 %v1299, %v1789
  %v1821 = vadd.f32 %v1300, %v1793
  %v1822 = vadd.f32 %v1301, %v1795
  %v1823 = vadd.f32 %v1302, %v1799
  %v1824 = vadd.f32 %v1303, %v1801
  %v1825 = vadd.f32 %v1304, %v1805
  %v1826 = vadd.f32 %v1305, %v1807
  %v1827 = vadd.f32 %v1306, %v1811
  %v1828 = vadd.f32 %v1307, %v1813
  %1829 = vmatprep.subr.mxu0 %v1580
  %1830 = vmatpush1.msra.mxu0 %v1579
  %1831 = vmatprep.subr.mxu0 %v1582
  %1832 = vmatpush1.msra.mxu0 %v1581
  %1833 = vmatprep.subr.mxu0 %v1584
  %1834 = vmatpush1.msra.mxu0 %v1583
  %1835 = vmatprep.subr.mxu0 %v1586
  %1836 = vmatpush1.msra.mxu0 %v1585
  %1837 = vmatprep.subr.mxu0 0.0
  %1838 = vmatpush1.msra.mxu0 0.0
  %1839 = vmatprep.subr.mxu0 0.0
  %1840 = vmatpush1.msra.mxu0 0.0
  %1841 = vmatprep.subr.mxu0 0.0
  %1842 = vmatpush1.msra.mxu0 0.0
  %1843 = vmatprep.subr.mxu0 0.0
  %1844 = vmatpush1.msra.mxu0 0.0
  %1845 = vmatprep.subr.mxu0 0.0
  %1846 = vmatpush1.msra.mxu0 0.0
  %1847 = vmatprep.subr.mxu0 0.0
  %1848 = vmatpush1.msra.mxu0 0.0
  %1849 = vmatprep.subr.mxu0 0.0
  %1850 = vmatpush1.msra.mxu0 0.0
  %1851 = vmatprep.subr.mxu0 0.0
  %1852 = vmatpush1.msra.mxu0 0.0
  %1853 = vmatprep.subr.mxu0 0.0
  %1854 = vmatpush1.msra.mxu0 0.0
  %1855 = vmatprep.subr.mxu0 0.0
  %1856 = vmatpush1.msra.mxu0 0.0
  %1857 = vmatprep.subr.mxu0 0.0
  %1858 = vmatpush1.msra.mxu0 0.0
  %1859 = vmatprep.subr.mxu0 0.0
  %1860 = vmatpush1.msra.mxu0 0.0
  %1861 = vmatprep.subr.mxu0 0.0
  %1862 = vmatpush1.msra.mxu0 0.0
  %1863 = vmatprep.subr.mxu0 0.0
  %1864 = vmatpush1.msra.mxu0 0.0
  %1865 = vmatprep.subr.mxu0 0.0
  %1866 = vmatpush1.msra.mxu0 0.0
  %1867 = vmatprep.subr.mxu0 0.0
  %1868 = vmatpush1.msra.mxu0 0.0
  %1869 = vmatprep.subr.mxu0 0.0
  %1870 = vmatpush1.msra.mxu0 0.0
  %1871 = vmatprep.subr.mxu0 0.0
  %1872 = vmatpush1.msra.mxu0 0.0
  %1873 = vmatprep.subr.mxu0 0.0
  %1874 = vmatpush1.msra.mxu0 0.0
  %1875 = vmatprep.subr.mxu0 0.0
  %1876 = vmatpush1.msra.mxu0 0.0
  %1877 = vmatprep.subr.mxu0 0.0
  %1878 = vmatpush1.msra.mxu0 0.0
  %1879 = vmatprep.subr.mxu0 0.0
  %1880 = vmatpush1.msra.mxu0 0.0
  %1881 = vmatprep.subr.mxu0 0.0
  %1882 = vmatpush1.msra.mxu0 0.0
  %1883 = vmatprep.subr.mxu0 0.0
  %1884 = vmatpush1.msra.mxu0 0.0
  %1885 = vmatprep.subr.mxu0 0.0
  %1886 = vmatpush1.msra.mxu0 0.0
  %1887 = vmatprep.subr.mxu0 0.0
  %1888 = vmatpush1.msra.mxu0 0.0
  %1889 = vmatprep.subr.mxu0 0.0
  %1890 = vmatpush1.msra.mxu0 0.0
  %1891 = vmatprep.subr.mxu0 0.0
  %1892 = vmatpush1.msra.mxu0 0.0
  %1893 = vmatprep.mubr.f32.mxu0 0.0
  %1894 = vmatmul.mubr.f32.gmra.mrb[0].mxu0 %v1437
  %v1895 = vpop.f32.mrb[0].mxu0
  %v1896 = vadd.f32 0.0, %v1895
  %v1897 = vpop.f32.mrb[0].mxu0
  %v1898 = vadd.f32 0.0, %v1897
  %1899 = vmatprep.mubr.f32.mxu0 0.0
  %1900 = vmatmul.mubr.f32.gmra.mrb[0].mxu0 %v1440
  %v1901 = vpop.f32.mrb[0].mxu0
  %v1902 = vadd.f32 0.0, %v1901
  %v1903 = vpop.f32.mrb[0].mxu0
  %v1904 = vadd.f32 0.0, %v1903
  %1905 = vmatprep.mubr.f32.mxu0 0.0
  %1906 = vmatmul.mubr.f32.gmra.mrb[0].mxu0 %v1443
  %v1907 = vpop.f32.mrb[0].mxu0
  %v1908 = vadd.f32 0.0, %v1907
  %v1909 = vpop.f32.mrb[0].mxu0
  %v1910 = vadd.f32 0.0, %v1909
  %1911 = vmatprep.mubr.f32.mxu0 0.0
  %1912 = vmatmul.mubr.f32.gmra.mrb[0].mxu0 %v1446
  %v1913 = vpop.f32.mrb[0].mxu0
  %v1914 = vadd.f32 0.0, %v1913
  %v1915 = vpop.f32.mrb[0].mxu0
  %v1916 = vadd.f32 0.0, %v1915
  %1917 = vmatprep.mubr.f32.mxu0 0.0
  %1918 = vmatmul.mubr.f32.gmra.mrb[0].mxu0 %v1449
  %v1919 = vpop.f32.mrb[0].mxu0
  %v1920 = vadd.f32 0.0, %v1919
  %v1921 = vpop.f32.mrb[0].mxu0
  %v1922 = vadd.f32 0.0, %v1921
  %1923 = vmatprep.mubr.f32.mxu0 0.0
  %1924 = vmatmul.mubr.f32.gmra.mrb[0].mxu0 %v1452
  %v1925 = vpop.f32.mrb[0].mxu0
  %v1926 = vadd.f32 0.0, %v1925
  %v1927 = vpop.f32.mrb[0].mxu0
  %v1928 = vadd.f32 0.0, %v1927
  %1929 = vmatprep.mubr.f32.mxu0 0.0
  %1930 = vmatmul.mubr.f32.gmra.mrb[0].mxu0 %v1455
  %v1931 = vpop.f32.mrb[0].mxu0
  %v1932 = vadd.f32 0.0, %v1931
  %v1933 = vpop.f32.mrb[0].mxu0
  %v1934 = vadd.f32 0.0, %v1933
  %1935 = vdwg.mxu0
  %v1936 = vadd.f32 %v1415, %v1896
  %v1937 = vadd.f32 %v1416, %v1898
  %v1938 = vadd.f32 %v1417, %v1902
  %v1939 = vadd.f32 %v1418, %v1904
  %v1940 = vadd.f32 %v1419, %v1908
  %v1941 = vadd.f32 %v1420, %v1910
  %v1942 = vadd.f32 %v1421, %v1914
  %v1943 = vadd.f32 %v1422, %v1916
  %v1944 = vadd.f32 %v1423, %v1920
  %v1945 = vadd.f32 %v1424, %v1922
  %v1946 = vadd.f32 %v1425, %v1926
  %v1947 = vadd.f32 %v1426, %v1928
  %v1948 = vadd.f32 %v1427, %v1932
  %v1949 = vadd.f32 %v1428, %v1934
  %v1950 = vld [vmem:[%s63 + $0x8] sm:$0xff]
  %v1951 = vld [vmem:[%s63 + $0x10] sm:$0xff]
  %v1952 = vld [vmem:[%s63 + $0x18] sm:$0xff]
  %v1953 = vld [vmem:[%s63 + $0x20] sm:$0xff]
  %v1954 = vld [vmem:[%s63 + $0x28] sm:$0xff]
  %v1955 = vld [vmem:[%s63 + $0x30] sm:$0xff]
  %v1956 = vld [vmem:[%s63 + $0x38] sm:$0xff]
  %v1958 = vsel %vm88, %v1950, 0
  %v1961 = vsel %vm88, %v1951, 0
  %v1964 = vsel %vm88, %v1952, 0
  %v1967 = vsel %vm88, %v1953, 0
  %v1970 = vsel %vm88, %v1954, 0
  %v1973 = vsel %vm88, %v1955, 0
  %v1976 = vsel %vm88, %v1956, 0
  %1978 = vmatprep.subr.mxu0 %v1580
  %1979 = vmatpush1.msra.mxu0 %v1579
  %1980 = vmatprep.subr.mxu0 %v1582
  %1981 = vmatpush1.msra.mxu0 %v1581
  %1982 = vmatprep.subr.mxu0 %v1584
  %1983 = vmatpush1.msra.mxu0 %v1583
  %1984 = vmatprep.subr.mxu0 %v1586
  %1985 = vmatpush1.msra.mxu0 %v1585
  %1986 = vmatprep.subr.mxu0 0.0
  %1987 = vmatpush1.msra.mxu0 0.0
  %1988 = vmatprep.subr.mxu0 0.0
  %1989 = vmatpush1.msra.mxu0 0.0
  %1990 = vmatprep.subr.mxu0 0.0
  %1991 = vmatpush1.msra.mxu0 0.0
  %1992 = vmatprep.subr.mxu0 0.0
  %1993 = vmatpush1.msra.mxu0 0.0
  %1994 = vmatprep.subr.mxu0 0.0
  %1995 = vmatpush1.msra.mxu0 0.0
  %1996 = vmatprep.subr.mxu0 0.0
  %1997 = vmatpush1.msra.mxu0 0.0
  %1998 = vmatprep.subr.mxu0 0.0
  %1999 = vmatpush1.msra.mxu0 0.0
  %2000 = vmatprep.subr.mxu0 0.0
  %2001 = vmatpush1.msra.mxu0 0.0
  %2002 = vmatprep.subr.mxu0 0.0
  %2003 = vmatpush1.msra.mxu0 0.0
  %2004 = vmatprep.subr.mxu0 0.0
  %2005 = vmatpush1.msra.mxu0 0.0
  %2006 = vmatprep.subr.mxu0 0.0
  %2007 = vmatpush1.msra.mxu0 0.0
  %2008 = vmatprep.subr.mxu0 0.0
  %2009 = vmatpush1.msra.mxu0 0.0
  %2010 = vmatprep.subr.mxu0 0.0
  %2011 = vmatpush1.msra.mxu0 0.0
  %2012 = vmatprep.subr.mxu0 0.0
  %2013 = vmatpush1.msra.mxu0 0.0
  %2014 = vmatprep.subr.mxu0 0.0
  %2015 = vmatpush1.msra.mxu0 0.0
  %2016 = vmatprep.subr.mxu0 0.0
  %2017 = vmatpush1.msra.mxu0 0.0
  %2018 = vmatprep.subr.mxu0 0.0
  %2019 = vmatpush1.msra.mxu0 0.0
  %2020 = vmatprep.subr.mxu0 0.0
  %2021 = vmatpush1.msra.mxu0 0.0
  %2022 = vmatprep.subr.mxu0 0.0
  %2023 = vmatpush1.msra.mxu0 0.0
  %2024 = vmatprep.subr.mxu0 0.0
  %2025 = vmatpush1.msra.mxu0 0.0
  %2026 = vmatprep.subr.mxu0 0.0
  %2027 = vmatpush1.msra.mxu0 0.0
  %2028 = vmatprep.subr.mxu0 0.0
  %2029 = vmatpush1.msra.mxu0 0.0
  %2030 = vmatprep.subr.mxu0 0.0
  %2031 = vmatpush1.msra.mxu0 0.0
  %2032 = vmatprep.subr.mxu0 0.0
  %2033 = vmatpush1.msra.mxu0 0.0
  %2034 = vmatprep.subr.mxu0 0.0
  %2035 = vmatpush1.msra.mxu0 0.0
  %2036 = vmatprep.subr.mxu0 0.0
  %2037 = vmatpush1.msra.mxu0 0.0
  %2038 = vmatprep.subr.mxu0 0.0
  %2039 = vmatpush1.msra.mxu0 0.0
  %2040 = vmatprep.subr.mxu0 0.0
  %2041 = vmatpush1.msra.mxu0 0.0
  %2042 = vmatprep.mubr.f32.mxu0 0.0
  %2043 = vmatmul.mubr.f32.gmra.mrb[0].mxu0 %v1958
  %v2044 = vpop.f32.mrb[0].mxu0
  %v2045 = vadd.f32 0.0, %v2044
  %v2046 = vpop.f32.mrb[0].mxu0
  %v2047 = vadd.f32 0.0, %v2046
  %2048 = vmatprep.mubr.f32.mxu0 0.0
  %2049 = vmatmul.mubr.f32.gmra.mrb[0].mxu0 %v1961
  %v2050 = vpop.f32.mrb[0].mxu0
  %v2051 = vadd.f32 0.0, %v2050
  %v2052 = vpop.f32.mrb[0].mxu0
  %v2053 = vadd.f32 0.0, %v2052
  %2054 = vmatprep.mubr.f32.mxu0 0.0
  %2055 = vmatmul.mubr.f32.gmra.mrb[0].mxu0 %v1964
  %v2056 = vpop.f32.mrb[0].mxu0
  %v2057 = vadd.f32 0.0, %v2056
  %v2058 = vpop.f32.mrb[0].mxu0
  %v2059 = vadd.f32 0.0, %v2058
  %2060 = vmatprep.mubr.f32.mxu0 0.0
  %2061 = vmatmul.mubr.f32.gmra.mrb[0].mxu0 %v1967
  %v2062 = vpop.f32.mrb[0].mxu0
  %v2063 = vadd.f32 0.0, %v2062
  %v2064 = vpop.f32.mrb[0].mxu0
  %v2065 = vadd.f32 0.0, %v2064
  %2066 = vmatprep.mubr.f32.mxu0 0.0
  %2067 = vmatmul.mubr.f32.gmra.mrb[0].mxu0 %v1970
  %v2068 = vpop.f32.mrb[0].mxu0
  %v2069 = vadd.f32 0.0, %v2068
  %v2070 = vpop.f32.mrb[0].mxu0
  %v2071 = vadd.f32 0.0, %v2070
  %2072 = vmatprep.mubr.f32.mxu0 0.0
  %2073 = vmatmul.mubr.f32.gmra.mrb[0].mxu0 %v1973
  %v2074 = vpop.f32.mrb[0].mxu0
  %v2075 = vadd.f32 0.0, %v2074
  %v2076 = vpop.f32.mrb[0].mxu0
  %v2077 = vadd.f32 0.0, %v2076
  %2078 = vmatprep.mubr.f32.mxu0 0.0
  %2079 = vmatmul.mubr.f32.gmra.mrb[0].mxu0 %v1976
  %v2080 = vpop.f32.mrb[0].mxu0
  %v2081 = vadd.f32 0.0, %v2080
  %v2082 = vpop.f32.mrb[0].mxu0
  %v2083 = vadd.f32 0.0, %v2082
  %2084 = vdwg.mxu0
  %v2085 = vadd.f32 %v1564, %v2045
  %v2086 = vadd.f32 %v1565, %v2047
  %v2087 = vadd.f32 %v1566, %v2051
  %v2088 = vadd.f32 %v1567, %v2053
  %v2089 = vadd.f32 %v1568, %v2057
  %v2090 = vadd.f32 %v1569, %v2059
  %v2091 = vadd.f32 %v1570, %v2063
  %v2092 = vadd.f32 %v1571, %v2065
  %v2093 = vadd.f32 %v1572, %v2069
  %v2094 = vadd.f32 %v1573, %v2071
  %v2095 = vadd.f32 %v1574, %v2075
  %v2096 = vadd.f32 %v1575, %v2077
  %v2097 = vadd.f32 %v1576, %v2081
  %v2098 = vadd.f32 %v1577, %v2083
  %s2099 = scalar_lea.vmem %s1, 256
  %v2100 = vld [vmem:[%s2099] sm:$0xff]
  %v2101 = vld [vmem:[%s2099 + $0x8] sm:$0xff]
  %v2102 = vld [vmem:[%s2099 + $0x10] sm:$0xff]
  %v2103 = vld [vmem:[%s2099 + $0x18] sm:$0xff]
  %v2104 = vld [vmem:[%s2099 + $0x20] sm:$0xff]
  %v2105 = vld [vmem:[%s2099 + $0x28] sm:$0xff]
  %v2106 = vld [vmem:[%s2099 + $0x30] sm:$0xff]
  %v2107 = vld [vmem:[%s2099 + $0x38] sm:$0xff]
  %2108 = vmatprep.subr.mxu0 %v2101
  %2109 = vmatpush1.msra.mxu0 %v2100
  %2110 = vmatprep.subr.mxu0 %v2103
  %2111 = vmatpush1.msra.mxu0 %v2102
  %2112 = vmatprep.subr.mxu0 %v2105
  %2113 = vmatpush1.msra.mxu0 %v2104
  %2114 = vmatprep.subr.mxu0 %v2107
  %2115 = vmatpush1.msra.mxu0 %v2106
  %2116 = vmatprep.subr.mxu0 0.0
  %2117 = vmatpush1.msra.mxu0 0.0
  %2118 = vmatprep.subr.mxu0 0.0
  %2119 = vmatpush1.msra.mxu0 0.0
  %2120 = vmatprep.subr.mxu0 0.0
  %2121 = vmatpush1.msra.mxu0 0.0
  %2122 = vmatprep.subr.mxu0 0.0
  %2123 = vmatpush1.msra.mxu0 0.0
  %2124 = vmatprep.subr.mxu0 0.0
  %2125 = vmatpush1.msra.mxu0 0.0
  %2126 = vmatprep.subr.mxu0 0.0
  %2127 = vmatpush1.msra.mxu0 0.0
  %2128 = vmatprep.subr.mxu0 0.0
  %2129 = vmatpush1.msra.mxu0 0.0
  %2130 = vmatprep.subr.mxu0 0.0
  %2131 = vmatpush1.msra.mxu0 0.0
  %2132 = vmatprep.subr.mxu0 0.0
  %2133 = vmatpush1.msra.mxu0 0.0
  %2134 = vmatprep.subr.mxu0 0.0
  %2135 = vmatpush1.msra.mxu0 0.0
  %2136 = vmatprep.subr.mxu0 0.0
  %2137 = vmatpush1.msra.mxu0 0.0
  %2138 = vmatprep.subr.mxu0 0.0
  %2139 = vmatpush1.msra.mxu0 0.0
  %2140 = vmatprep.subr.mxu0 0.0
  %2141 = vmatpush1.msra.mxu0 0.0
  %2142 = vmatprep.subr.mxu0 0.0
  %2143 = vmatpush1.msra.mxu0 0.0
  %2144 = vmatprep.subr.mxu0 0.0
  %2145 = vmatpush1.msra.mxu0 0.0
  %2146 = vmatprep.subr.mxu0 0.0
  %2147 = vmatpush1.msra.mxu0 0.0
  %2148 = vmatprep.subr.mxu0 0.0
  %2149 = vmatpush1.msra.mxu0 0.0
  %2150 = vmatprep.subr.mxu0 0.0
  %2151 = vmatpush1.msra.mxu0 0.0
  %2152 = vmatprep.subr.mxu0 0.0
  %2153 = vmatpush1.msra.mxu0 0.0
  %2154 = vmatprep.subr.mxu0 0.0
  %2155 = vmatpush1.msra.mxu0 0.0
  %2156 = vmatprep.subr.mxu0 0.0
  %2157 = vmatpush1.msra.mxu0 0.0
  %2158 = vmatprep.subr.mxu0 0.0
  %2159 = vmatpush1.msra.mxu0 0.0
  %2160 = vmatprep.subr.mxu0 0.0
  %2161 = vmatpush1.msra.mxu0 0.0
  %2162 = vmatprep.subr.mxu0 0.0
  %2163 = vmatpush1.msra.mxu0 0.0
  %2164 = vmatprep.subr.mxu0 0.0
  %2165 = vmatpush1.msra.mxu0 0.0
  %2166 = vmatprep.subr.mxu0 0.0
  %2167 = vmatpush1.msra.mxu0 0.0
  %2168 = vmatprep.subr.mxu0 0.0
  %2169 = vmatpush1.msra.mxu0 0.0
  %2170 = vmatprep.subr.mxu0 0.0
  %2171 = vmatpush1.msra.mxu0 0.0
  %2172 = vmatprep.mubr.f32.mxu0 0.0
  %2173 = vmatmul.mubr.f32.gmra.mrb[0].mxu0 %v823
  %v2174 = vpop.f32.mrb[0].mxu0
  %v2175 = vadd.f32 0.0, %v2174
  %v2176 = vpop.f32.mrb[0].mxu0
  %v2177 = vadd.f32 0.0, %v2176
  %2178 = vmatprep.mubr.f32.mxu0 0.0
  %2179 = vmatmul.mubr.f32.gmra.mrb[0].mxu0 %v826
  %v2180 = vpop.f32.mrb[0].mxu0
  %v2181 = vadd.f32 0.0, %v2180
  %v2182 = vpop.f32.mrb[0].mxu0
  %v2183 = vadd.f32 0.0, %v2182
  %2184 = vmatprep.mubr.f32.mxu0 0.0
  %2185 = vmatmul.mubr.f32.gmra.mrb[0].mxu0 %v829
  %v2186 = vpop.f32.mrb[0].mxu0
  %v2187 = vadd.f32 0.0, %v2186
  %v2188 = vpop.f32.mrb[0].mxu0
  %v2189 = vadd.f32 0.0, %v2188
  %2190 = vmatprep.mubr.f32.mxu0 0.0
  %2191 = vmatmul.mubr.f32.gmra.mrb[0].mxu0 %v832
  %v2192 = vpop.f32.mrb[0].mxu0
  %v2193 = vadd.f32 0.0, %v2192
  %v2194 = vpop.f32.mrb[0].mxu0
  %v2195 = vadd.f32 0.0, %v2194
  %2196 = vmatprep.mubr.f32.mxu0 0.0
  %2197 = vmatmul.mubr.f32.gmra.mrb[0].mxu0 %v835
  %v2198 = vpop.f32.mrb[0].mxu0
  %v2199 = vadd.f32 0.0, %v2198
  %v2200 = vpop.f32.mrb[0].mxu0
  %v2201 = vadd.f32 0.0, %v2200
  %2202 = vmatprep.mubr.f32.mxu0 0.0
  %2203 = vmatmul.mubr.f32.gmra.mrb[0].mxu0 %v838
  %v2204 = vpop.f32.mrb[0].mxu0
  %v2205 = vadd.f32 0.0, %v2204
  %v2206 = vpop.f32.mrb[0].mxu0
  %v2207 = vadd.f32 0.0, %v2206
  %2208 = vmatprep.mubr.f32.mxu0 0.0
  %2209 = vmatmul.mubr.f32.gmra.mrb[0].mxu0 %v841
  %v2210 = vpop.f32.mrb[0].mxu0
  %v2211 = vadd.f32 0.0, %v2210
  %v2212 = vpop.f32.mrb[0].mxu0
  %v2213 = vadd.f32 0.0, %v2212
  %2214 = vdwg.mxu0
  %v2215 = vadd.f32 %v1694, %v2175
  %v2216 = vadd.f32 %v1695, %v2177
  %v2217 = vadd.f32 %v1696, %v2181
  %v2218 = vadd.f32 %v1697, %v2183
  %v2219 = vadd.f32 %v1698, %v2187
  %v2220 = vadd.f32 %v1699, %v2189
  %v2221 = vadd.f32 %v1700, %v2193
  %v2222 = vadd.f32 %v1701, %v2195
  %v2223 = vadd.f32 %v1702, %v2199
  %v2224 = vadd.f32 %v1703, %v2201
  %v2225 = vadd.f32 %v1704, %v2205
  %v2226 = vadd.f32 %v1705, %v2207
  %v2227 = vadd.f32 %v1706, %v2211
  %v2228 = vadd.f32 %v1707, %v2213
  %2229 = vmatprep.subr.mxu0 %v2101
  %2230 = vmatpush1.msra.mxu0 %v2100
  %2231 = vmatprep.subr.mxu0 %v2103
  %2232 = vmatpush1.msra.mxu0 %v2102
  %2233 = vmatprep.subr.mxu0 %v2105
  %2234 = vmatpush1.msra.mxu0 %v2104
  %2235 = vmatprep.subr.mxu0 %v2107
  %2236 = vmatpush1.msra.mxu0 %v2106
  %2237 = vmatprep.subr.mxu0 0.0
  %2238 = vmatpush1.msra.mxu0 0.0
  %2239 = vmatprep.subr.mxu0 0.0
  %2240 = vmatpush1.msra.mxu0 0.0
  %2241 = vmatprep.subr.mxu0 0.0
  %2242 = vmatpush1.msra.mxu0 0.0
  %2243 = vmatprep.subr.mxu0 0.0
  %2244 = vmatpush1.msra.mxu0 0.0
  %2245 = vmatprep.subr.mxu0 0.0
  %2246 = vmatpush1.msra.mxu0 0.0
  %2247 = vmatprep.subr.mxu0 0.0
  %2248 = vmatpush1.msra.mxu0 0.0
  %2249 = vmatprep.subr.mxu0 0.0
  %2250 = vmatpush1.msra.mxu0 0.0
  %2251 = vmatprep.subr.mxu0 0.0
  %2252 = vmatpush1.msra.mxu0 0.0
  %2253 = vmatprep.subr.mxu0 0.0
  %2254 = vmatpush1.msra.mxu0 0.0
  %2255 = vmatprep.subr.mxu0 0.0
  %2256 = vmatpush1.msra.mxu0 0.0
  %2257 = vmatprep.subr.mxu0 0.0
  %2258 = vmatpush1.msra.mxu0 0.0
  %2259 = vmatprep.subr.mxu0 0.0
  %2260 = vmatpush1.msra.mxu0 0.0
  %2261 = vmatprep.subr.mxu0 0.0
  %2262 = vmatpush1.msra.mxu0 0.0
  %2263 = vmatprep.subr.mxu0 0.0
  %2264 = vmatpush1.msra.mxu0 0.0
  %2265 = vmatprep.subr.mxu0 0.0
  %2266 = vmatpush1.msra.mxu0 0.0
  %2267 = vmatprep.subr.mxu0 0.0
  %2268 = vmatpush1.msra.mxu0 0.0
  %2269 = vmatprep.subr.mxu0 0.0
  %2270 = vmatpush1.msra.mxu0 0.0
  %2271 = vmatprep.subr.mxu0 0.0
  %2272 = vmatpush1.msra.mxu0 0.0
  %2273 = vmatprep.subr.mxu0 0.0
  %2274 = vmatpush1.msra.mxu0 0.0
  %2275 = vmatprep.subr.mxu0 0.0
  %2276 = vmatpush1.msra.mxu0 0.0
  %2277 = vmatprep.subr.mxu0 0.0
  %2278 = vmatpush1.msra.mxu0 0.0
  %2279 = vmatprep.subr.mxu0 0.0
  %2280 = vmatpush1.msra.mxu0 0.0
  %2281 = vmatprep.subr.mxu0 0.0
  %2282 = vmatpush1.msra.mxu0 0.0
  %2283 = vmatprep.subr.mxu0 0.0
  %2284 = vmatpush1.msra.mxu0 0.0
  %2285 = vmatprep.subr.mxu0 0.0
  %2286 = vmatpush1.msra.mxu0 0.0
  %2287 = vmatprep.subr.mxu0 0.0
  %2288 = vmatpush1.msra.mxu0 0.0
  %2289 = vmatprep.subr.mxu0 0.0
  %2290 = vmatpush1.msra.mxu0 0.0
  %2291 = vmatprep.subr.mxu0 0.0
  %2292 = vmatpush1.msra.mxu0 0.0
  %2293 = vmatprep.mubr.f32.mxu0 0.0
  %2294 = vmatmul.mubr.f32.gmra.mrb[0].mxu0 %v1437
  %v2295 = vpop.f32.mrb[0].mxu0
  %v2296 = vadd.f32 0.0, %v2295
  %v2297 = vpop.f32.mrb[0].mxu0
  %v2298 = vadd.f32 0.0, %v2297
  %2299 = vmatprep.mubr.f32.mxu0 0.0
  %2300 = vmatmul.mubr.f32.gmra.mrb[0].mxu0 %v1440
  %v2301 = vpop.f32.mrb[0].mxu0
  %v2302 = vadd.f32 0.0, %v2301
  %v2303 = vpop.f32.mrb[0].mxu0
  %v2304 = vadd.f32 0.0, %v2303
  %2305 = vmatprep.mubr.f32.mxu0 0.0
  %2306 = vmatmul.mubr.f32.gmra.mrb[0].mxu0 %v1443
  %v2307 = vpop.f32.mrb[0].mxu0
  %v2308 = vadd.f32 0.0, %v2307
  %v2309 = vpop.f32.mrb[0].mxu0
  %v2310 = vadd.f32 0.0, %v2309
  %2311 = vmatprep.mubr.f32.mxu0 0.0
  %2312 = vmatmul.mubr.f32.gmra.mrb[0].mxu0 %v1446
  %v2313 = vpop.f32.mrb[0].mxu0
  %v2314 = vadd.f32 0.0, %v2313
  %v2315 = vpop.f32.mrb[0].mxu0
  %v2316 = vadd.f32 0.0, %v2315
  %2317 = vmatprep.mubr.f32.mxu0 0.0
  %2318 = vmatmul.mubr.f32.gmra.mrb[0].mxu0 %v1449
  %v2319 = vpop.f32.mrb[0].mxu0
  %v2320 = vadd.f32 0.0, %v2319
  %v2321 = vpop.f32.mrb[0].mxu0
  %v2322 = vadd.f32 0.0, %v2321
  %2323 = vmatprep.mubr.f32.mxu0 0.0
  %2324 = vmatmul.mubr.f32.gmra.mrb[0].mxu0 %v1452
  %v2325 = vpop.f32.mrb[0].mxu0
  %v2326 = vadd.f32 0.0, %v2325
  %v2327 = vpop.f32.mrb[0].mxu0
  %v2328 = vadd.f32 0.0, %v2327
  %2329 = vmatprep.mubr.f32.mxu0 0.0
  %2330 = vmatmul.mubr.f32.gmra.mrb[0].mxu0 %v1455
  %v2331 = vpop.f32.mrb[0].mxu0
  %v2332 = vadd.f32 0.0, %v2331
  %v2333 = vpop.f32.mrb[0].mxu0
  %v2334 = vadd.f32 0.0, %v2333
  %2335 = vdwg.mxu0
  %v2336 = vadd.f32 %v1815, %v2296
  %v2337 = vadd.f32 %v1816, %v2298
  %v2338 = vadd.f32 %v1817, %v2302
  %v2339 = vadd.f32 %v1818, %v2304
  %v2340 = vadd.f32 %v1819, %v2308
  %v2341 = vadd.f32 %v1820, %v2310
  %v2342 = vadd.f32 %v1821, %v2314
  %v2343 = vadd.f32 %v1822, %v2316
  %v2344 = vadd.f32 %v1823, %v2320
  %v2345 = vadd.f32 %v1824, %v2322
  %v2346 = vadd.f32 %v1825, %v2326
  %v2347 = vadd.f32 %v1826, %v2328
  %v2348 = vadd.f32 %v1827, %v2332
  %v2349 = vadd.f32 %v1828, %v2334
  %2350 = vmatprep.subr.mxu0 %v2101
  %2351 = vmatpush1.msra.mxu0 %v2100
  %2352 = vmatprep.subr.mxu0 %v2103
  %2353 = vmatpush1.msra.mxu0 %v2102
  %2354 = vmatprep.subr.mxu0 %v2105
  %2355 = vmatpush1.msra.mxu0 %v2104
  %2356 = vmatprep.subr.mxu0 %v2107
  %2357 = vmatpush1.msra.mxu0 %v2106
  %2358 = vmatprep.subr.mxu0 0.0
  %2359 = vmatpush1.msra.mxu0 0.0
  %2360 = vmatprep.subr.mxu0 0.0
  %2361 = vmatpush1.msra.mxu0 0.0
  %2362 = vmatprep.subr.mxu0 0.0
  %2363 = vmatpush1.msra.mxu0 0.0
  %2364 = vmatprep.subr.mxu0 0.0
  %2365 = vmatpush1.msra.mxu0 0.0
  %2366 = vmatprep.subr.mxu0 0.0
  %2367 = vmatpush1.msra.mxu0 0.0
  %2368 = vmatprep.subr.mxu0 0.0
  %2369 = vmatpush1.msra.mxu0 0.0
  %2370 = vmatprep.subr.mxu0 0.0
  %2371 = vmatpush1.msra.mxu0 0.0
  %2372 = vmatprep.subr.mxu0 0.0
  %2373 = vmatpush1.msra.mxu0 0.0
  %2374 = vmatprep.subr.mxu0 0.0
  %2375 = vmatpush1.msra.mxu0 0.0
  %2376 = vmatprep.subr.mxu0 0.0
  %2377 = vmatpush1.msra.mxu0 0.0
  %2378 = vmatprep.subr.mxu0 0.0
  %2379 = vmatpush1.msra.mxu0 0.0
  %2380 = vmatprep.subr.mxu0 0.0
  %2381 = vmatpush1.msra.mxu0 0.0
  %2382 = vmatprep.subr.mxu0 0.0
  %2383 = vmatpush1.msra.mxu0 0.0
  %2384 = vmatprep.subr.mxu0 0.0
  %2385 = vmatpush1.msra.mxu0 0.0
  %2386 = vmatprep.subr.mxu0 0.0
  %2387 = vmatpush1.msra.mxu0 0.0
  %2388 = vmatprep.subr.mxu0 0.0
  %2389 = vmatpush1.msra.mxu0 0.0
  %2390 = vmatprep.subr.mxu0 0.0
  %2391 = vmatpush1.msra.mxu0 0.0
  %2392 = vmatprep.subr.mxu0 0.0
  %2393 = vmatpush1.msra.mxu0 0.0
  %2394 = vmatprep.subr.mxu0 0.0
  %2395 = vmatpush1.msra.mxu0 0.0
  %2396 = vmatprep.subr.mxu0 0.0
  %2397 = vmatpush1.msra.mxu0 0.0
  %2398 = vmatprep.subr.mxu0 0.0
  %2399 = vmatpush1.msra.mxu0 0.0
  %2400 = vmatprep.subr.mxu0 0.0
  %2401 = vmatpush1.msra.mxu0 0.0
  %2402 = vmatprep.subr.mxu0 0.0
  %2403 = vmatpush1.msra.mxu0 0.0
  %2404 = vmatprep.subr.mxu0 0.0
  %2405 = vmatpush1.msra.mxu0 0.0
  %2406 = vmatprep.subr.mxu0 0.0
  %2407 = vmatpush1.msra.mxu0 0.0
  %2408 = vmatprep.subr.mxu0 0.0
  %2409 = vmatpush1.msra.mxu0 0.0
  %2410 = vmatprep.subr.mxu0 0.0
  %2411 = vmatpush1.msra.mxu0 0.0
  %2412 = vmatprep.subr.mxu0 0.0
  %2413 = vmatpush1.msra.mxu0 0.0
  %2414 = vmatprep.mubr.f32.mxu0 0.0
  %2415 = vmatmul.mubr.f32.gmra.mrb[0].mxu0 %v1958
  %v2416 = vpop.f32.mrb[0].mxu0
  %v2417 = vadd.f32 0.0, %v2416
  %v2418 = vpop.f32.mrb[0].mxu0
  %v2419 = vadd.f32 0.0, %v2418
  %2420 = vmatprep.mubr.f32.mxu0 0.0
  %2421 = vmatmul.mubr.f32.gmra.mrb[0].mxu0 %v1961
  %v2422 = vpop.f32.mrb[0].mxu0
  %v2423 = vadd.f32 0.0, %v2422
  %v2424 = vpop.f32.mrb[0].mxu0
  %v2425 = vadd.f32 0.0, %v2424
  %2426 = vmatprep.mubr.f32.mxu0 0.0
  %2427 = vmatmul.mubr.f32.gmra.mrb[0].mxu0 %v1964
  %v2428 = vpop.f32.mrb[0].mxu0
  %v2429 = vadd.f32 0.0, %v2428
  %v2430 = vpop.f32.mrb[0].mxu0
  %v2431 = vadd.f32 0.0, %v2430
  %2432 = vmatprep.mubr.f32.mxu0 0.0
  %2433 = vmatmul.mubr.f32.gmra.mrb[0].mxu0 %v1967
  %v2434 = vpop.f32.mrb[0].mxu0
  %v2435 = vadd.f32 0.0, %v2434
  %v2436 = vpop.f32.mrb[0].mxu0
  %v2437 = vadd.f32 0.0, %v2436
  %2438 = vmatprep.mubr.f32.mxu0 0.0
  %2439 = vmatmul.mubr.f32.gmra.mrb[0].mxu0 %v1970
  %v2440 = vpop.f32.mrb[0].mxu0
  %v2441 = vadd.f32 0.0, %v2440
  %v2442 = vpop.f32.mrb[0].mxu0
  %v2443 = vadd.f32 0.0, %v2442
  %2444 = vmatprep.mubr.f32.mxu0 0.0
  %2445 = vmatmul.mubr.f32.gmra.mrb[0].mxu0 %v1973
  %v2446 = vpop.f32.mrb[0].mxu0
  %v2447 = vadd.f32 0.0, %v2446
  %v2448 = vpop.f32.mrb[0].mxu0
  %v2449 = vadd.f32 0.0, %v2448
  %2450 = vmatprep.mubr.f32.mxu0 0.0
  %2451 = vmatmul.mubr.f32.gmra.mrb[0].mxu0 %v1976
  %v2452 = vpop.f32.mrb[0].mxu0
  %v2453 = vadd.f32 0.0, %v2452
  %v2454 = vpop.f32.mrb[0].mxu0
  %v2455 = vadd.f32 0.0, %v2454
  %2456 = vdwg.mxu0
  %v2457 = vadd.f32 %v1936, %v2417
  %v2458 = vadd.f32 %v1937, %v2419
  %v2459 = vadd.f32 %v1938, %v2423
  %v2460 = vadd.f32 %v1939, %v2425
  %v2461 = vadd.f32 %v1940, %v2429
  %v2462 = vadd.f32 %v1941, %v2431
  %v2463 = vadd.f32 %v1942, %v2435
  %v2464 = vadd.f32 %v1943, %v2437
  %v2465 = vadd.f32 %v1944, %v2441
  %v2466 = vadd.f32 %v1945, %v2443
  %v2467 = vadd.f32 %v1946, %v2447
  %v2468 = vadd.f32 %v1947, %v2449
  %v2469 = vadd.f32 %v1948, %v2453
  %v2470 = vadd.f32 %v1949, %v2455
  %v2471 = vld [vmem:[%s71 + $0x8] sm:$0xff]
  %v2472 = vld [vmem:[%s71 + $0x10] sm:$0xff]
  %v2473 = vld [vmem:[%s71 + $0x18] sm:$0xff]
  %v2474 = vld [vmem:[%s71 + $0x20] sm:$0xff]
  %v2475 = vld [vmem:[%s71 + $0x28] sm:$0xff]
  %v2476 = vld [vmem:[%s71 + $0x30] sm:$0xff]
  %v2477 = vld [vmem:[%s71 + $0x38] sm:$0xff]
  %v2479 = vsel %vm88, %v2471, 0
  %v2482 = vsel %vm88, %v2472, 0
  %v2485 = vsel %vm88, %v2473, 0
  %v2488 = vsel %vm88, %v2474, 0
  %v2491 = vsel %vm88, %v2475, 0
  %v2494 = vsel %vm88, %v2476, 0
  %v2497 = vsel %vm88, %v2477, 0
  %2499 = vmatprep.subr.mxu0 %v2101
  %2500 = vmatpush1.msra.mxu0 %v2100
  %2501 = vmatprep.subr.mxu0 %v2103
  %2502 = vmatpush1.msra.mxu0 %v2102
  %2503 = vmatprep.subr.mxu0 %v2105
  %2504 = vmatpush1.msra.mxu0 %v2104
  %2505 = vmatprep.subr.mxu0 %v2107
  %2506 = vmatpush1.msra.mxu0 %v2106
  %2507 = vmatprep.subr.mxu0 0.0
  %2508 = vmatpush1.msra.mxu0 0.0
  %2509 = vmatprep.subr.mxu0 0.0
  %2510 = vmatpush1.msra.mxu0 0.0
  %2511 = vmatprep.subr.mxu0 0.0
  %2512 = vmatpush1.msra.mxu0 0.0
  %2513 = vmatprep.subr.mxu0 0.0
  %2514 = vmatpush1.msra.mxu0 0.0
  %2515 = vmatprep.subr.mxu0 0.0
  %2516 = vmatpush1.msra.mxu0 0.0
  %2517 = vmatprep.subr.mxu0 0.0
  %2518 = vmatpush1.msra.mxu0 0.0
  %2519 = vmatprep.subr.mxu0 0.0
  %2520 = vmatpush1.msra.mxu0 0.0
  %2521 = vmatprep.subr.mxu0 0.0
  %2522 = vmatpush1.msra.mxu0 0.0
  %2523 = vmatprep.subr.mxu0 0.0
  %2524 = vmatpush1.msra.mxu0 0.0
  %2525 = vmatprep.subr.mxu0 0.0
  %2526 = vmatpush1.msra.mxu0 0.0
  %2527 = vmatprep.subr.mxu0 0.0
  %2528 = vmatpush1.msra.mxu0 0.0
  %2529 = vmatprep.subr.mxu0 0.0
  %2530 = vmatpush1.msra.mxu0 0.0
  %2531 = vmatprep.subr.mxu0 0.0
  %2532 = vmatpush1.msra.mxu0 0.0
  %2533 = vmatprep.subr.mxu0 0.0
  %2534 = vmatpush1.msra.mxu0 0.0
  %2535 = vmatprep.subr.mxu0 0.0
  %2536 = vmatpush1.msra.mxu0 0.0
  %2537 = vmatprep.subr.mxu0 0.0
  %2538 = vmatpush1.msra.mxu0 0.0
  %2539 = vmatprep.subr.mxu0 0.0
  %2540 = vmatpush1.msra.mxu0 0.0
  %2541 = vmatprep.subr.mxu0 0.0
  %2542 = vmatpush1.msra.mxu0 0.0
  %2543 = vmatprep.subr.mxu0 0.0
  %2544 = vmatpush1.msra.mxu0 0.0
  %2545 = vmatprep.subr.mxu0 0.0
  %2546 = vmatpush1.msra.mxu0 0.0
  %2547 = vmatprep.subr.mxu0 0.0
  %2548 = vmatpush1.msra.mxu0 0.0
  %2549 = vmatprep.subr.mxu0 0.0
  %2550 = vmatpush1.msra.mxu0 0.0
  %2551 = vmatprep.subr.mxu0 0.0
  %2552 = vmatpush1.msra.mxu0 0.0
  %2553 = vmatprep.subr.mxu0 0.0
  %2554 = vmatpush1.msra.mxu0 0.0
  %2555 = vmatprep.subr.mxu0 0.0
  %2556 = vmatpush1.msra.mxu0 0.0
  %2557 = vmatprep.subr.mxu0 0.0
  %2558 = vmatpush1.msra.mxu0 0.0
  %2559 = vmatprep.subr.mxu0 0.0
  %2560 = vmatpush1.msra.mxu0 0.0
  %2561 = vmatprep.subr.mxu0 0.0
  %2562 = vmatpush1.msra.mxu0 0.0
  %2563 = vmatprep.mubr.f32.mxu0 0.0
  %2564 = vmatmul.mubr.f32.gmra.mrb[0].mxu0 %v2479
  %v2565 = vpop.f32.mrb[0].mxu0
  %v2566 = vadd.f32 0.0, %v2565
  %v2567 = vpop.f32.mrb[0].mxu0
  %v2568 = vadd.f32 0.0, %v2567
  %2569 = vmatprep.mubr.f32.mxu0 0.0
  %2570 = vmatmul.mubr.f32.gmra.mrb[0].mxu0 %v2482
  %v2571 = vpop.f32.mrb[0].mxu0
  %v2572 = vadd.f32 0.0, %v2571
  %v2573 = vpop.f32.mrb[0].mxu0
  %v2574 = vadd.f32 0.0, %v2573
  %2575 = vmatprep.mubr.f32.mxu0 0.0
  %2576 = vmatmul.mubr.f32.gmra.mrb[0].mxu0 %v2485
  %v2577 = vpop.f32.mrb[0].mxu0
  %v2578 = vadd.f32 0.0, %v2577
  %v2579 = vpop.f32.mrb[0].mxu0
  %v2580 = vadd.f32 0.0, %v2579
  %2581 = vmatprep.mubr.f32.mxu0 0.0
  %2582 = vmatmul.mubr.f32.gmra.mrb[0].mxu0 %v2488
  %v2583 = vpop.f32.mrb[0].mxu0
  %v2584 = vadd.f32 0.0, %v2583
  %v2585 = vpop.f32.mrb[0].mxu0
  %v2586 = vadd.f32 0.0, %v2585
  %2587 = vmatprep.mubr.f32.mxu0 0.0
  %2588 = vmatmul.mubr.f32.gmra.mrb[0].mxu0 %v2491
  %v2589 = vpop.f32.mrb[0].mxu0
  %v2590 = vadd.f32 0.0, %v2589
  %v2591 = vpop.f32.mrb[0].mxu0
  %v2592 = vadd.f32 0.0, %v2591
  %2593 = vmatprep.mubr.f32.mxu0 0.0
  %2594 = vmatmul.mubr.f32.gmra.mrb[0].mxu0 %v2494
  %v2595 = vpop.f32.mrb[0].mxu0
  %v2596 = vadd.f32 0.0, %v2595
  %v2597 = vpop.f32.mrb[0].mxu0
  %v2598 = vadd.f32 0.0, %v2597
  %2599 = vmatprep.mubr.f32.mxu0 0.0
  %2600 = vmatmul.mubr.f32.gmra.mrb[0].mxu0 %v2497
  %v2601 = vpop.f32.mrb[0].mxu0
  %v2602 = vadd.f32 0.0, %v2601
  %v2603 = vpop.f32.mrb[0].mxu0
  %v2604 = vadd.f32 0.0, %v2603
  %2605 = vdwg.mxu0
  %v2606 = vadd.f32 %v2085, %v2566
  %v2607 = vadd.f32 %v2086, %v2568
  %v2608 = vadd.f32 %v2087, %v2572
  %v2609 = vadd.f32 %v2088, %v2574
  %v2610 = vadd.f32 %v2089, %v2578
  %v2611 = vadd.f32 %v2090, %v2580
  %v2612 = vadd.f32 %v2091, %v2584
  %v2613 = vadd.f32 %v2092, %v2586
  %v2614 = vadd.f32 %v2093, %v2590
  %v2615 = vadd.f32 %v2094, %v2592
  %v2616 = vadd.f32 %v2095, %v2596
  %v2617 = vadd.f32 %v2096, %v2598
  %v2618 = vadd.f32 %v2097, %v2602
  %v2619 = vadd.f32 %v2098, %v2604
  %2634 = vrot.lane.b32.xlu0 %v2215, 44
  %v2635 = vpop.permute.xlu0 %2634
  %2636 = vrot.lane.b32.xlu0 %v2216, 44
  %v2637 = vpop.permute.xlu0 %2636
  %2638 = vrot.lane.b32.xlu0 %v2217, 44
  %v2639 = vpop.permute.xlu0 %2638
  %2640 = vrot.lane.b32.xlu0 %v2218, 44
  %v2641 = vpop.permute.xlu0 %2640
  %2642 = vrot.lane.b32.xlu0 %v2219, 44
  %v2643 = vpop.permute.xlu0 %2642
  %2644 = vrot.lane.b32.xlu0 %v2220, 44
  %v2645 = vpop.permute.xlu0 %2644
  %2646 = vrot.lane.b32.xlu0 %v2221, 44
  %v2647 = vpop.permute.xlu0 %2646
  %2648 = vrot.lane.b32.xlu0 %v2222, 44
  %v2649 = vpop.permute.xlu0 %2648
  %2650 = vrot.lane.b32.xlu0 %v2223, 44
  %v2651 = vpop.permute.xlu0 %2650
  %2652 = vrot.lane.b32.xlu0 %v2224, 44
  %v2653 = vpop.permute.xlu0 %2652
  %2654 = vrot.lane.b32.xlu0 %v2225, 44
  %v2655 = vpop.permute.xlu0 %2654
  %2656 = vrot.lane.b32.xlu0 %v2226, 44
  %v2657 = vpop.permute.xlu0 %2656
  %2658 = vrot.lane.b32.xlu0 %v2227, 44
  %v2659 = vpop.permute.xlu0 %2658
  %2660 = vrot.lane.b32.xlu0 %v2228, 44
  %v2661 = vpop.permute.xlu0 %2660
  %vm2662 = vcmask 359424
  %v2663 = vsel %vm2662, %v2635, %v2637
  %v2664 = vsel %vm2662, %v2639, %v2641
  %v2665 = vsel %vm2662, %v2643, %v2645
  %v2666 = vsel %vm2662, %v2647, %v2649
  %v2667 = vsel %vm2662, %v2651, %v2653
  %v2668 = vsel %vm2662, %v2655, %v2657
  %v2669 = vsel %vm2662, %v2659, %v2661
  %v2677 = vmax.f32 %v2215, %v2663
  %v2678 = vmax.f32 %v2217, %v2664
  %v2679 = vmax.f32 %v2219, %v2665
  %v2680 = vmax.f32 %v2221, %v2666
  %v2681 = vmax.f32 %v2223, %v2667
  %v2682 = vmax.f32 %v2225, %v2668
  %v2683 = vmax.f32 %v2227, %v2669
  %2698 = vrot.lane.b32.xlu0 %v2336, 44
  %v2699 = vpop.permute.xlu0 %2698
  %2700 = vrot.lane.b32.xlu0 %v2337, 44
  %v2701 = vpop.permute.xlu0 %2700
  %2702 = vrot.lane.b32.xlu0 %v2338, 44
  %v2703 = vpop.permute.xlu0 %2702
  %2704 = vrot.lane.b32.xlu0 %v2339, 44
  %v2705 = vpop.permute.xlu0 %2704
  %2706 = vrot.lane.b32.xlu0 %v2340, 44
  %v2707 = vpop.permute.xlu0 %2706
  %2708 = vrot.lane.b32.xlu0 %v2341, 44
  %v2709 = vpop.permute.xlu0 %2708
  %2710 = vrot.lane.b32.xlu0 %v2342, 44
  %v2711 = vpop.permute.xlu0 %2710
  %2712 = vrot.lane.b32.xlu0 %v2343, 44
  %v2713 = vpop.permute.xlu0 %2712
  %2714 = vrot.lane.b32.xlu0 %v2344, 44
  %v2715 = vpop.permute.xlu0 %2714
  %2716 = vrot.lane.b32.xlu0 %v2345, 44
  %v2717 = vpop.permute.xlu0 %2716
  %2718 = vrot.lane.b32.xlu0 %v2346, 44
  %v2719 = vpop.permute.xlu0 %2718
  %2720 = vrot.lane.b32.xlu0 %v2347, 44
  %v2721 = vpop.permute.xlu0 %2720
  %2722 = vrot.lane.b32.xlu0 %v2348, 44
  %v2723 = vpop.permute.xlu0 %2722
  %2724 = vrot.lane.b32.xlu0 %v2349, 44
  %v2725 = vpop.permute.xlu0 %2724
  %v2726 = vsel %vm2662, %v2699, %v2701
  %v2727 = vsel %vm2662, %v2703, %v2705
  %v2728 = vsel %vm2662, %v2707, %v2709
  %v2729 = vsel %vm2662, %v2711, %v2713
  %v2730 = vsel %vm2662, %v2715, %v2717
  %v2731 = vsel %vm2662, %v2719, %v2721
  %v2732 = vsel %vm2662, %v2723, %v2725
  %v2740 = vmax.f32 %v2336, %v2726
  %v2741 = vmax.f32 %v2338, %v2727
  %v2742 = vmax.f32 %v2340, %v2728
  %v2743 = vmax.f32 %v2342, %v2729
  %v2744 = vmax.f32 %v2344, %v2730
  %v2745 = vmax.f32 %v2346, %v2731
  %v2746 = vmax.f32 %v2348, %v2732
  %v2747 = vmax.f32 %v2677, %v2740
  %v2748 = vmax.f32 %v2678, %v2741
  %v2749 = vmax.f32 %v2679, %v2742
  %v2750 = vmax.f32 %v2680, %v2743
  %v2751 = vmax.f32 %v2681, %v2744
  %v2752 = vmax.f32 %v2682, %v2745
  %v2753 = vmax.f32 %v2683, %v2746
  %v2755 = vlaneseq
  %v2756 = vshrl.u32 %v2755, 7
  %v2757 = vsub.s32 0, %v2756
  %v2758 = vrot.slane %v38, %v2757
  %v2760 = vadd.f32 %v2747, %v2758
  %v2761 = vadd.f32 %v2748, %v2758
  %v2762 = vadd.f32 %v2749, %v2758
  %v2763 = vadd.f32 %v2750, %v2758
  %v2764 = vadd.f32 %v2751, %v2758
  %v2765 = vadd.f32 %v2752, %v2758
  %v2766 = vadd.f32 %v2753, %v2758
  %v2767 = vmax.f32 %v2760, 0.0
  %v2768 = vmax.f32 %v2761, 0.0
  %v2769 = vmax.f32 %v2762, 0.0
  %v2770 = vmax.f32 %v2763, 0.0
  %v2771 = vmax.f32 %v2764, 0.0
  %v2772 = vmax.f32 %v2765, 0.0
  %v2773 = vmax.f32 %v2766, 0.0
  %2788 = vrot.lane.b32.xlu0 %v2457, 44
  %v2789 = vpop.permute.xlu0 %2788
  %2790 = vrot.lane.b32.xlu0 %v2458, 44
  %v2791 = vpop.permute.xlu0 %2790
  %2792 = vrot.lane.b32.xlu0 %v2459, 44
  %v2793 = vpop.permute.xlu0 %2792
  %2794 = vrot.lane.b32.xlu0 %v2460, 44
  %v2795 = vpop.permute.xlu0 %2794
  %2796 = vrot.lane.b32.xlu0 %v2461, 44
  %v2797 = vpop.permute.xlu0 %2796
  %2798 = vrot.lane.b32.xlu0 %v2462, 44
  %v2799 = vpop.permute.xlu0 %2798
  %2800 = vrot.lane.b32.xlu0 %v2463, 44
  %v2801 = vpop.permute.xlu0 %2800
  %2802 = vrot.lane.b32.xlu0 %v2464, 44
  %v2803 = vpop.permute.xlu0 %2802
  %2804 = vrot.lane.b32.xlu0 %v2465, 44
  %v2805 = vpop.permute.xlu0 %2804
  %2806 = vrot.lane.b32.xlu0 %v2466, 44
  %v2807 = vpop.permute.xlu0 %2806
  %2808 = vrot.lane.b32.xlu0 %v2467, 44
  %v2809 = vpop.permute.xlu0 %2808
  %2810 = vrot.lane.b32.xlu0 %v2468, 44
  %v2811 = vpop.permute.xlu0 %2810
  %2812 = vrot.lane.b32.xlu0 %v2469, 44
  %v2813 = vpop.permute.xlu0 %2812
  %2814 = vrot.lane.b32.xlu0 %v2470, 44
  %v2815 = vpop.permute.xlu0 %2814
  %v2816 = vsel %vm2662, %v2789, %v2791
  %v2817 = vsel %vm2662, %v2793, %v2795
  %v2818 = vsel %vm2662, %v2797, %v2799
  %v2819 = vsel %vm2662, %v2801, %v2803
  %v2820 = vsel %vm2662, %v2805, %v2807
  %v2821 = vsel %vm2662, %v2809, %v2811
  %v2822 = vsel %vm2662, %v2813, %v2815
  %v2830 = vmax.f32 %v2457, %v2816
  %v2831 = vmax.f32 %v2459, %v2817
  %v2832 = vmax.f32 %v2461, %v2818
  %v2833 = vmax.f32 %v2463, %v2819
  %v2834 = vmax.f32 %v2465, %v2820
  %v2835 = vmax.f32 %v2467, %v2821
  %v2836 = vmax.f32 %v2469, %v2822
  %2851 = vrot.lane.b32.xlu0 %v2606, 44
  %v2852 = vpop.permute.xlu0 %2851
  %2853 = vrot.lane.b32.xlu0 %v2607, 44
  %v2854 = vpop.permute.xlu0 %2853
  %2855 = vrot.lane.b32.xlu0 %v2608, 44
  %v2856 = vpop.permute.xlu0 %2855
  %2857 = vrot.lane.b32.xlu0 %v2609, 44
  %v2858 = vpop.permute.xlu0 %2857
  %2859 = vrot.lane.b32.xlu0 %v2610, 44
  %v2860 = vpop.permute.xlu0 %2859
  %2861 = vrot.lane.b32.xlu0 %v2611, 44
  %v2862 = vpop.permute.xlu0 %2861
  %2863 = vrot.lane.b32.xlu0 %v2612, 44
  %v2864 = vpop.permute.xlu0 %2863
  %2865 = vrot.lane.b32.xlu0 %v2613, 44
  %v2866 = vpop.permute.xlu0 %2865
  %2867 = vrot.lane.b32.xlu0 %v2614, 44
  %v2868 = vpop.permute.xlu0 %2867
  %2869 = vrot.lane.b32.xlu0 %v2615, 44
  %v2870 = vpop.permute.xlu0 %2869
  %2871 = vrot.lane.b32.xlu0 %v2616, 44
  %v2872 = vpop.permute.xlu0 %2871
  %2873 = vrot.lane.b32.xlu0 %v2617, 44
  %v2874 = vpop.permute.xlu0 %2873
  %2875 = vrot.lane.b32.xlu0 %v2618, 44
  %v2876 = vpop.permute.xlu0 %2875
  %2877 = vrot.lane.b32.xlu0 %v2619, 44
  %v2878 = vpop.permute.xlu0 %2877
  %v2879 = vsel %vm2662, %v2852, %v2854
  %v2880 = vsel %vm2662, %v2856, %v2858
  %v2881 = vsel %vm2662, %v2860, %v2862
  %v2882 = vsel %vm2662, %v2864, %v2866
  %v2883 = vsel %vm2662, %v2868, %v2870
  %v2884 = vsel %vm2662, %v2872, %v2874
  %v2885 = vsel %vm2662, %v2876, %v2878
  %v2893 = vmax.f32 %v2606, %v2879
  %v2894 = vmax.f32 %v2608, %v2880
  %v2895 = vmax.f32 %v2610, %v2881
  %v2896 = vmax.f32 %v2612, %v2882
  %v2897 = vmax.f32 %v2614, %v2883
  %v2898 = vmax.f32 %v2616, %v2884
  %v2899 = vmax.f32 %v2618, %v2885
  %v2900 = vmax.f32 %v2830, %v2893
  %v2901 = vmax.f32 %v2831, %v2894
  %v2902 = vmax.f32 %v2832, %v2895
  %v2903 = vmax.f32 %v2833, %v2896
  %v2904 = vmax.f32 %v2834, %v2897
  %v2905 = vmax.f32 %v2835, %v2898
  %v2906 = vmax.f32 %v2836, %v2899
  %v2907 = vadd.f32 %v2900, %v2758
  %v2908 = vadd.f32 %v2901, %v2758
  %v2909 = vadd.f32 %v2902, %v2758
  %v2910 = vadd.f32 %v2903, %v2758
  %v2911 = vadd.f32 %v2904, %v2758
  %v2912 = vadd.f32 %v2905, %v2758
  %v2913 = vadd.f32 %v2906, %v2758
  %v2914 = vmax.f32 %v2907, 0.0
  %v2915 = vmax.f32 %v2908, 0.0
  %v2916 = vmax.f32 %v2909, 0.0
  %v2917 = vmax.f32 %v2910, 0.0
  %v2918 = vmax.f32 %v2911, 0.0
  %v2919 = vmax.f32 %v2912, 0.0
  %v2920 = vmax.f32 %v2913, 0.0
  %v2921 = vld [vmem:[%s3] sm:$0xff]
  %v2922 = vld [vmem:[%s3 + $0x8] sm:$0xff]
  %v2923 = vld [vmem:[%s3 + $0x10] sm:$0xff]
  %v2924 = vld [vmem:[%s3 + $0x18] sm:$0xff]
  %v2925 = vld [vmem:[%s3 + $0x20] sm:$0xff]
  %v2926 = vld [vmem:[%s3 + $0x28] sm:$0xff]
  %v2927 = vld [vmem:[%s3 + $0x30] sm:$0xff]
  %v2928 = vld [vmem:[%s3 + $0x38] sm:$0xff]
  %v2929 = vld [vmem:[%s3 + $0x40] sm:$0xff]
  %v2930 = vld [vmem:[%s3 + $0x48] sm:$0xff]
  %v2931 = vld [vmem:[%s3 + $0x50] sm:$0xff]
  %v2932 = vld [vmem:[%s3 + $0x58] sm:$0xff]
  %v2933 = vld [vmem:[%s3 + $0x60] sm:$0xff]
  %v2934 = vld [vmem:[%s3 + $0x68] sm:$0xff]
  %v2935 = vld [vmem:[%s3 + $0x70] sm:$0xff]
  %v2936 = vld [vmem:[%s3 + $0x78] sm:$0xff]
  %v2937 = vld [vmem:[%s3 + $0x80] sm:$0xff]
  %v2938 = vld [vmem:[%s3 + $0x88] sm:$0xff]
  %v2939 = vld [vmem:[%s3 + $0x90] sm:$0xff]
  %v2940 = vld [vmem:[%s3 + $0x98] sm:$0xff]
  %v2941 = vld [vmem:[%s3 + $0xa0] sm:$0xf]
  %v2942 = vld [vmem:[%s3 + $0xa8] sm:$0xf]
  %s2943 = scalar_lea.vmem %s3, 176
  %v2944 = vld [vmem:[%s2943] sm:$0xff]
  %v2945 = vld [vmem:[%s2943 + $0x8] sm:$0xff]
  %v2946 = vld [vmem:[%s2943 + $0x10] sm:$0xff]
  %v2947 = vld [vmem:[%s2943 + $0x18] sm:$0xff]
  %v2948 = vld [vmem:[%s2943 + $0x20] sm:$0xff]
  %v2949 = vld [vmem:[%s2943 + $0x28] sm:$0xff]
  %v2950 = vld [vmem:[%s2943 + $0x30] sm:$0xff]
  %v2951 = vld [vmem:[%s2943 + $0x38] sm:$0xff]
  %v2952 = vld [vmem:[%s2943 + $0x40] sm:$0xff]
  %v2953 = vld [vmem:[%s2943 + $0x48] sm:$0xff]
  %v2954 = vld [vmem:[%s2943 + $0x50] sm:$0xff]
  %v2955 = vld [vmem:[%s2943 + $0x58] sm:$0xff]
  %v2956 = vld [vmem:[%s2943 + $0x60] sm:$0xff]
  %v2957 = vld [vmem:[%s2943 + $0x68] sm:$0xff]
  %v2958 = vld [vmem:[%s2943 + $0x70] sm:$0xff]
  %v2959 = vld [vmem:[%s2943 + $0x78] sm:$0xff]
  %v2960 = vld [vmem:[%s2943 + $0x80] sm:$0xff]
  %v2961 = vld [vmem:[%s2943 + $0x88] sm:$0xff]
  %v2962 = vld [vmem:[%s2943 + $0x90] sm:$0xff]
  %v2963 = vld [vmem:[%s2943 + $0x98] sm:$0xff]
  %v2964 = vld [vmem:[%s2943 + $0xa0] sm:$0xf]
  %v2965 = vld [vmem:[%s2943 + $0xa8] sm:$0xf]
  %vm2966 = vcmask 687104
  %v2968 = vsel %vm2966, %v2914, 0
  %v2971 = vsel %vm2966, %v2915, 0
  %v2974 = vsel %vm2966, %v2916, 0
  %v2977 = vsel %vm2966, %v2917, 0
  %v2980 = vsel %vm2966, %v2918, 0
  %vm2982 = vcmask 1043456
  %v2984 = vsel %vm2982, %v2964, 0
  %v2987 = vsel %vm2982, %v2965, 0
  %2989 = vmatprep.subr.mxu0 %v2945
  %2990 = vmatpush1.msra.mxu0 %v2944
  %2991 = vmatprep.subr.mxu0 %v2947
  %2992 = vmatpush1.msra.mxu0 %v2946
  %2993 = vmatprep.subr.mxu0 %v2949
  %2994 = vmatpush1.msra.mxu0 %v2948
  %2995 = vmatprep.subr.mxu0 %v2951
  %2996 = vmatpush1.msra.mxu0 %v2950
  %2997 = vmatprep.subr.mxu0 %v2953
  %2998 = vmatpush1.msra.mxu0 %v2952
  %2999 = vmatprep.subr.mxu0 %v2955
  %3000 = vmatpush1.msra.mxu0 %v2954
  %3001 = vmatprep.subr.mxu0 %v2957
  %3002 = vmatpush1.msra.mxu0 %v2956
  %3003 = vmatprep.subr.mxu0 %v2959
  %3004 = vmatpush1.msra.mxu0 %v2958
  %3005 = vmatprep.subr.mxu0 %v2961
  %3006 = vmatpush1.msra.mxu0 %v2960
  %3007 = vmatprep.subr.mxu0 %v2963
  %3008 = vmatpush1.msra.mxu0 %v2962
  %3009 = vmatprep.subr.mxu0 %v2987
  %3010 = vmatpush1.msra.mxu0 %v2984
  %3011 = vmatprep.subr.mxu0 0.0
  %3012 = vmatpush1.msra.mxu0 0.0
  %3013 = vmatprep.subr.mxu0 0.0
  %3014 = vmatpush1.msra.mxu0 0.0
  %3015 = vmatprep.subr.mxu0 0.0
  %3016 = vmatpush1.msra.mxu0 0.0
  %3017 = vmatprep.subr.mxu0 0.0
  %3018 = vmatpush1.msra.mxu0 0.0
  %3019 = vmatprep.subr.mxu0 0.0
  %3020 = vmatpush1.msra.mxu0 0.0
  %3021 = vmatprep.subr.mxu0 0.0
  %3022 = vmatpush1.msra.mxu0 0.0
  %3023 = vmatprep.subr.mxu0 0.0
  %3024 = vmatpush1.msra.mxu0 0.0
  %3025 = vmatprep.subr.mxu0 0.0
  %3026 = vmatpush1.msra.mxu0 0.0
  %3027 = vmatprep.subr.mxu0 0.0
  %3028 = vmatpush1.msra.mxu0 0.0
  %3029 = vmatprep.subr.mxu0 0.0
  %3030 = vmatpush1.msra.mxu0 0.0
  %3031 = vmatprep.subr.mxu0 0.0
  %3032 = vmatpush1.msra.mxu0 0.0
  %3033 = vmatprep.subr.mxu0 0.0
  %3034 = vmatpush1.msra.mxu0 0.0
  %3035 = vmatprep.subr.mxu0 0.0
  %3036 = vmatpush1.msra.mxu0 0.0
  %3037 = vmatprep.subr.mxu0 0.0
  %3038 = vmatpush1.msra.mxu0 0.0
  %3039 = vmatprep.subr.mxu0 0.0
  %3040 = vmatpush1.msra.mxu0 0.0
  %3041 = vmatprep.subr.mxu0 0.0
  %3042 = vmatpush1.msra.mxu0 0.0
  %3043 = vmatprep.subr.mxu0 0.0
  %3044 = vmatpush1.msra.mxu0 0.0
  %3045 = vmatprep.subr.mxu0 0.0
  %3046 = vmatpush1.msra.mxu0 0.0
  %3047 = vmatprep.subr.mxu0 0.0
  %3048 = vmatpush1.msra.mxu0 0.0
  %3049 = vmatprep.subr.mxu0 0.0
  %3050 = vmatpush1.msra.mxu0 0.0
  %3051 = vmatprep.subr.mxu0 0.0
  %3052 = vmatpush1.msra.mxu0 0.0
  %3053 = vmatprep.mubr.f32.mxu0 0.0
  %3054 = vmatmul.mubr.f32.gmra.mrb[0].mxu0 %v2968
  %v3055 = vpop.f32.mrb[0].mxu0
  %v3056 = vadd.f32 0.0, %v3055
  %v3057 = vpop.f32.mrb[0].mxu0
  %v3058 = vadd.f32 0.0, %v3057
  %3059 = vmatprep.mubr.f32.mxu0 0.0
  %3060 = vmatmul.mubr.f32.gmra.mrb[0].mxu0 %v2971
  %v3061 = vpop.f32.mrb[0].mxu0
  %v3062 = vadd.f32 0.0, %v3061
  %v3063 = vpop.f32.mrb[0].mxu0
  %v3064 = vadd.f32 0.0, %v3063
  %3065 = vmatprep.mubr.f32.mxu0 0.0
  %3066 = vmatmul.mubr.f32.gmra.mrb[0].mxu0 %v2974
  %v3067 = vpop.f32.mrb[0].mxu0
  %v3068 = vadd.f32 0.0, %v3067
  %v3069 = vpop.f32.mrb[0].mxu0
  %v3070 = vadd.f32 0.0, %v3069
  %3071 = vmatprep.mubr.f32.mxu0 0.0
  %3072 = vmatmul.mubr.f32.gmra.mrb[0].mxu0 %v2977
  %v3073 = vpop.f32.mrb[0].mxu0
  %v3074 = vadd.f32 0.0, %v3073
  %v3075 = vpop.f32.mrb[0].mxu0
  %v3076 = vadd.f32 0.0, %v3075
  %3077 = vmatprep.mubr.f32.mxu0 0.0
  %3078 = vmatmul.mubr.f32.gmra.mrb[0].mxu0 %v2980
  %v3079 = vpop.f32.mrb[0].mxu0
  %v3080 = vadd.f32 0.0, %v3079
  %v3081 = vpop.f32.mrb[0].mxu0
  %v3082 = vadd.f32 0.0, %v3081
  %3083 = vdwg.mxu0
  %v3085 = vsel %vm2966, %v2767, 0
  %v3088 = vsel %vm2966, %v2768, 0
  %v3091 = vsel %vm2966, %v2769, 0
  %v3094 = vsel %vm2966, %v2770, 0
  %v3097 = vsel %vm2966, %v2771, 0
  %v3100 = vsel %vm2982, %v2941, 0
  %v3103 = vsel %vm2982, %v2942, 0
  %3105 = vmatprep.subr.mxu0 %v2922
  %3106 = vmatpush1.msra.mxu0 %v2921
  %3107 = vmatprep.subr.mxu0 %v2924
  %3108 = vmatpush1.msra.mxu0 %v2923
  %3109 = vmatprep.subr.mxu0 %v2926
  %3110 = vmatpush1.msra.mxu0 %v2925
  %3111 = vmatprep.subr.mxu0 %v2928
  %3112 = vmatpush1.msra.mxu0 %v2927
  %3113 = vmatprep.subr.mxu0 %v2930
  %3114 = vmatpush1.msra.mxu0 %v2929
  %3115 = vmatprep.subr.mxu0 %v2932
  %3116 = vmatpush1.msra.mxu0 %v2931
  %3117 = vmatprep.subr.mxu0 %v2934
  %3118 = vmatpush1.msra.mxu0 %v2933
  %3119 = vmatprep.subr.mxu0 %v2936
  %3120 = vmatpush1.msra.mxu0 %v2935
  %3121 = vmatprep.subr.mxu0 %v2938
  %3122 = vmatpush1.msra.mxu0 %v2937
  %3123 = vmatprep.subr.mxu0 %v2940
  %3124 = vmatpush1.msra.mxu0 %v2939
  %3125 = vmatprep.subr.mxu0 %v3103
  %3126 = vmatpush1.msra.mxu0 %v3100
  %3127 = vmatprep.subr.mxu0 0.0
  %3128 = vmatpush1.msra.mxu0 0.0
  %3129 = vmatprep.subr.mxu0 0.0
  %3130 = vmatpush1.msra.mxu0 0.0
  %3131 = vmatprep.subr.mxu0 0.0
  %3132 = vmatpush1.msra.mxu0 0.0
  %3133 = vmatprep.subr.mxu0 0.0
  %3134 = vmatpush1.msra.mxu0 0.0
  %3135 = vmatprep.subr.mxu0 0.0
  %3136 = vmatpush1.msra.mxu0 0.0
  %3137 = vmatprep.subr.mxu0 0.0
  %3138 = vmatpush1.msra.mxu0 0.0
  %3139 = vmatprep.subr.mxu0 0.0
  %3140 = vmatpush1.msra.mxu0 0.0
  %3141 = vmatprep.subr.mxu0 0.0
  %3142 = vmatpush1.msra.mxu0 0.0
  %3143 = vmatprep.subr.mxu0 0.0
  %3144 = vmatpush1.msra.mxu0 0.0
  %3145 = vmatprep.subr.mxu0 0.0
  %3146 = vmatpush1.msra.mxu0 0.0
  %3147 = vmatprep.subr.mxu0 0.0
  %3148 = vmatpush1.msra.mxu0 0.0
  %3149 = vmatprep.subr.mxu0 0.0
  %3150 = vmatpush1.msra.mxu0 0.0
  %3151 = vmatprep.subr.mxu0 0.0
  %3152 = vmatpush1.msra.mxu0 0.0
  %3153 = vmatprep.subr.mxu0 0.0
  %3154 = vmatpush1.msra.mxu0 0.0
  %3155 = vmatprep.subr.mxu0 0.0
  %3156 = vmatpush1.msra.mxu0 0.0
  %3157 = vmatprep.subr.mxu0 0.0
  %3158 = vmatpush1.msra.mxu0 0.0
  %3159 = vmatprep.subr.mxu0 0.0
  %3160 = vmatpush1.msra.mxu0 0.0
  %3161 = vmatprep.subr.mxu0 0.0
  %3162 = vmatpush1.msra.mxu0 0.0
  %3163 = vmatprep.subr.mxu0 0.0
  %3164 = vmatpush1.msra.mxu0 0.0
  %3165 = vmatprep.subr.mxu0 0.0
  %3166 = vmatpush1.msra.mxu0 0.0
  %3167 = vmatprep.subr.mxu0 0.0
  %3168 = vmatpush1.msra.mxu0 0.0
  %3169 = vmatprep.mubr.f32.mxu0 0.0
  %3170 = vmatmul.mubr.f32.gmra.mrb[0].mxu0 %v3085
  %v3171 = vpop.f32.mrb[0].mxu0
  %v3172 = vadd.f32 %v3056, %v3171
  %v3173 = vpop.f32.mrb[0].mxu0
  %v3174 = vadd.f32 %v3058, %v3173
  %3175 = vmatprep.mubr.f32.mxu0 0.0
  %3176 = vmatmul.mubr.f32.gmra.mrb[0].mxu0 %v3088
  %v3177 = vpop.f32.mrb[0].mxu0
  %v3178 = vadd.f32 %v3062, %v3177
  %v3179 = vpop.f32.mrb[0].mxu0
  %v3180 = vadd.f32 %v3064, %v3179
  %3181 = vmatprep.mubr.f32.mxu0 0.0
  %3182 = vmatmul.mubr.f32.gmra.mrb[0].mxu0 %v3091
  %v3183 = vpop.f32.mrb[0].mxu0
  %v3184 = vadd.f32 %v3068, %v3183
  %v3185 = vpop.f32.mrb[0].mxu0
  %v3186 = vadd.f32 %v3070, %v3185
  %3187 = vmatprep.mubr.f32.mxu0 0.0
  %3188 = vmatmul.mubr.f32.gmra.mrb[0].mxu0 %v3094
  %v3189 = vpop.f32.mrb[0].mxu0
  %v3190 = vadd.f32 %v3074, %v3189
  %v3191 = vpop.f32.mrb[0].mxu0
  %v3192 = vadd.f32 %v3076, %v3191
  %3193 = vmatprep.mubr.f32.mxu0 0.0
  %3194 = vmatmul.mubr.f32.gmra.mrb[0].mxu0 %v3097
  %v3195 = vpop.f32.mrb[0].mxu0
  %v3196 = vadd.f32 %v3080, %v3195
  %v3197 = vpop.f32.mrb[0].mxu0
  %v3198 = vadd.f32 %v3082, %v3197
  %3199 = vdwg.mxu0
  %v3201 = vsel %vm2966, %v2772, 0
  %3203 = vmatprep.subr.mxu0 %v2945
  %3204 = vmatpush1.msra.mxu0 %v2944
  %3205 = vmatprep.subr.mxu0 %v2947
  %3206 = vmatpush1.msra.mxu0 %v2946
  %3207 = vmatprep.subr.mxu0 %v2949
  %3208 = vmatpush1.msra.mxu0 %v2948
  %3209 = vmatprep.subr.mxu0 %v2951
  %3210 = vmatpush1.msra.mxu0 %v2950
  %3211 = vmatprep.subr.mxu0 %v2953
  %3212 = vmatpush1.msra.mxu0 %v2952
  %3213 = vmatprep.subr.mxu0 %v2955
  %3214 = vmatpush1.msra.mxu0 %v2954
  %3215 = vmatprep.subr.mxu0 %v2957
  %3216 = vmatpush1.msra.mxu0 %v2956
  %3217 = vmatprep.subr.mxu0 %v2959
  %3218 = vmatpush1.msra.mxu0 %v2958
  %3219 = vmatprep.subr.mxu0 %v2961
  %3220 = vmatpush1.msra.mxu0 %v2960
  %3221 = vmatprep.subr.mxu0 %v2963
  %3222 = vmatpush1.msra.mxu0 %v2962
  %3223 = vmatprep.subr.mxu0 %v2987
  %3224 = vmatpush1.msra.mxu0 %v2984
  %3225 = vmatprep.subr.mxu0 0.0
  %3226 = vmatpush1.msra.mxu0 0.0
  %3227 = vmatprep.subr.mxu0 0.0
  %3228 = vmatpush1.msra.mxu0 0.0
  %3229 = vmatprep.subr.mxu0 0.0
  %3230 = vmatpush1.msra.mxu0 0.0
  %3231 = vmatprep.subr.mxu0 0.0
  %3232 = vmatpush1.msra.mxu0 0.0
  %3233 = vmatprep.subr.mxu0 0.0
  %3234 = vmatpush1.msra.mxu0 0.0
  %3235 = vmatprep.subr.mxu0 0.0
  %3236 = vmatpush1.msra.mxu0 0.0
  %3237 = vmatprep.subr.mxu0 0.0
  %3238 = vmatpush1.msra.mxu0 0.0
  %3239 = vmatprep.subr.mxu0 0.0
  %3240 = vmatpush1.msra.mxu0 0.0
  %3241 = vmatprep.subr.mxu0 0.0
  %3242 = vmatpush1.msra.mxu0 0.0
  %3243 = vmatprep.subr.mxu0 0.0
  %3244 = vmatpush1.msra.mxu0 0.0
  %3245 = vmatprep.subr.mxu0 0.0
  %3246 = vmatpush1.msra.mxu0 0.0
  %3247 = vmatprep.subr.mxu0 0.0
  %3248 = vmatpush1.msra.mxu0 0.0
  %3249 = vmatprep.subr.mxu0 0.0
  %3250 = vmatpush1.msra.mxu0 0.0
  %3251 = vmatprep.subr.mxu0 0.0
  %3252 = vmatpush1.msra.mxu0 0.0
  %3253 = vmatprep.subr.mxu0 0.0
  %3254 = vmatpush1.msra.mxu0 0.0
  %3255 = vmatprep.subr.mxu0 0.0
  %3256 = vmatpush1.msra.mxu0 0.0
  %3257 = vmatprep.subr.mxu0 0.0
  %3258 = vmatpush1.msra.mxu0 0.0
  %3259 = vmatprep.subr.mxu0 0.0
  %3260 = vmatpush1.msra.mxu0 0.0
  %3261 = vmatprep.subr.mxu0 0.0
  %3262 = vmatpush1.msra.mxu0 0.0
  %3263 = vmatprep.subr.mxu0 0.0
  %3264 = vmatpush1.msra.mxu0 0.0
  %3265 = vmatprep.subr.mxu0 0.0
  %3266 = vmatpush1.msra.mxu0 0.0
  %3267 = vmatprep.mubr.f32.mxu0 0.0
  %3268 = vmatmul.mubr.f32.gmra.mrb[0].mxu0 %v3088
  %v3269 = vpop.f32.mrb[0].mxu0
  %v3270 = vadd.f32 0.0, %v3269
  %v3271 = vpop.f32.mrb[0].mxu0
  %v3272 = vadd.f32 0.0, %v3271
  %3273 = vmatprep.mubr.f32.mxu0 0.0
  %3274 = vmatmul.mubr.f32.gmra.mrb[0].mxu0 %v3091
  %v3275 = vpop.f32.mrb[0].mxu0
  %v3276 = vadd.f32 0.0, %v3275
  %v3277 = vpop.f32.mrb[0].mxu0
  %v3278 = vadd.f32 0.0, %v3277
  %3279 = vmatprep.mubr.f32.mxu0 0.0
  %3280 = vmatmul.mubr.f32.gmra.mrb[0].mxu0 %v3094
  %v3281 = vpop.f32.mrb[0].mxu0
  %v3282 = vadd.f32 0.0, %v3281
  %v3283 = vpop.f32.mrb[0].mxu0
  %v3284 = vadd.f32 0.0, %v3283
  %3285 = vmatprep.mubr.f32.mxu0 0.0
  %3286 = vmatmul.mubr.f32.gmra.mrb[0].mxu0 %v3097
  %v3287 = vpop.f32.mrb[0].mxu0
  %v3288 = vadd.f32 0.0, %v3287
  %v3289 = vpop.f32.mrb[0].mxu0
  %v3290 = vadd.f32 0.0, %v3289
  %3291 = vmatprep.mubr.f32.mxu0 0.0
  %3292 = vmatmul.mubr.f32.gmra.mrb[0].mxu0 %v3201
  %v3293 = vpop.f32.mrb[0].mxu0
  %v3294 = vadd.f32 0.0, %v3293
  %v3295 = vpop.f32.mrb[0].mxu0
  %v3296 = vadd.f32 0.0, %v3295
  %3297 = vdwg.mxu0
  %3298 = vmatprep.subr.mxu0 %v2922
  %3299 = vmatpush1.msra.mxu0 %v2921
  %3300 = vmatprep.subr.mxu0 %v2924
  %3301 = vmatpush1.msra.mxu0 %v2923
  %3302 = vmatprep.subr.mxu0 %v2926
  %3303 = vmatpush1.msra.mxu0 %v2925
  %3304 = vmatprep.subr.mxu0 %v2928
  %3305 = vmatpush1.msra.mxu0 %v2927
  %3306 = vmatprep.subr.mxu0 %v2930
  %3307 = vmatpush1.msra.mxu0 %v2929
  %3308 = vmatprep.subr.mxu0 %v2932
  %3309 = vmatpush1.msra.mxu0 %v2931
  %3310 = vmatprep.subr.mxu0 %v2934
  %3311 = vmatpush1.msra.mxu0 %v2933
  %3312 = vmatprep.subr.mxu0 %v2936
  %3313 = vmatpush1.msra.mxu0 %v2935
  %3314 = vmatprep.subr.mxu0 %v2938
  %3315 = vmatpush1.msra.mxu0 %v2937
  %3316 = vmatprep.subr.mxu0 %v2940
  %3317 = vmatpush1.msra.mxu0 %v2939
  %3318 = vmatprep.subr.mxu0 %v3103
  %3319 = vmatpush1.msra.mxu0 %v3100
  %3320 = vmatprep.subr.mxu0 0.0
  %3321 = vmatpush1.msra.mxu0 0.0
  %3322 = vmatprep.subr.mxu0 0.0
  %3323 = vmatpush1.msra.mxu0 0.0
  %3324 = vmatprep.subr.mxu0 0.0
  %3325 = vmatpush1.msra.mxu0 0.0
  %3326 = vmatprep.subr.mxu0 0.0
  %3327 = vmatpush1.msra.mxu0 0.0
  %3328 = vmatprep.subr.mxu0 0.0
  %3329 = vmatpush1.msra.mxu0 0.0
  %3330 = vmatprep.subr.mxu0 0.0
  %3331 = vmatpush1.msra.mxu0 0.0
  %3332 = vmatprep.subr.mxu0 0.0
  %3333 = vmatpush1.msra.mxu0 0.0
  %3334 = vmatprep.subr.mxu0 0.0
  %3335 = vmatpush1.msra.mxu0 0.0
  %3336 = vmatprep.subr.mxu0 0.0
  %3337 = vmatpush1.msra.mxu0 0.0
  %3338 = vmatprep.subr.mxu0 0.0
  %3339 = vmatpush1.msra.mxu0 0.0
  %3340 = vmatprep.subr.mxu0 0.0
  %3341 = vmatpush1.msra.mxu0 0.0
  %3342 = vmatprep.subr.mxu0 0.0
  %3343 = vmatpush1.msra.mxu0 0.0
  %3344 = vmatprep.subr.mxu0 0.0
  %3345 = vmatpush1.msra.mxu0 0.0
  %3346 = vmatprep.subr.mxu0 0.0
  %3347 = vmatpush1.msra.mxu0 0.0
  %3348 = vmatprep.subr.mxu0 0.0
  %3349 = vmatpush1.msra.mxu0 0.0
  %3350 = vmatprep.subr.mxu0 0.0
  %3351 = vmatpush1.msra.mxu0 0.0
  %3352 = vmatprep.subr.mxu0 0.0
  %3353 = vmatpush1.msra.mxu0 0.0
  %3354 = vmatprep.subr.mxu0 0.0
  %3355 = vmatpush1.msra.mxu0 0.0
  %3356 = vmatprep.subr.mxu0 0.0
  %3357 = vmatpush1.msra.mxu0 0.0
  %3358 = vmatprep.subr.mxu0 0.0
  %3359 = vmatpush1.msra.mxu0 0.0
  %3360 = vmatprep.subr.mxu0 0.0
  %3361 = vmatpush1.msra.mxu0 0.0
  %3362 = vmatprep.mubr.f32.mxu0 0.0
  %3363 = vmatmul.mubr.f32.gmra.mrb[0].mxu0 %v2968
  %v3364 = vpop.f32.mrb[0].mxu0
  %v3365 = vadd.f32 %v3270, %v3364
  %v3366 = vpop.f32.mrb[0].mxu0
  %v3367 = vadd.f32 %v3272, %v3366
  %3368 = vmatprep.mubr.f32.mxu0 0.0
  %3369 = vmatmul.mubr.f32.gmra.mrb[0].mxu0 %v2971
  %v3370 = vpop.f32.mrb[0].mxu0
  %v3371 = vadd.f32 %v3276, %v3370
  %v3372 = vpop.f32.mrb[0].mxu0
  %v3373 = vadd.f32 %v3278, %v3372
  %3374 = vmatprep.mubr.f32.mxu0 0.0
  %3375 = vmatmul.mubr.f32.gmra.mrb[0].mxu0 %v2974
  %v3376 = vpop.f32.mrb[0].mxu0
  %v3377 = vadd.f32 %v3282, %v3376
  %v3378 = vpop.f32.mrb[0].mxu0
  %v3379 = vadd.f32 %v3284, %v3378
  %3380 = vmatprep.mubr.f32.mxu0 0.0
  %3381 = vmatmul.mubr.f32.gmra.mrb[0].mxu0 %v2977
  %v3382 = vpop.f32.mrb[0].mxu0
  %v3383 = vadd.f32 %v3288, %v3382
  %v3384 = vpop.f32.mrb[0].mxu0
  %v3385 = vadd.f32 %v3290, %v3384
  %3386 = vmatprep.mubr.f32.mxu0 0.0
  %3387 = vmatmul.mubr.f32.gmra.mrb[0].mxu0 %v2980
  %v3388 = vpop.f32.mrb[0].mxu0
  %v3389 = vadd.f32 %v3294, %v3388
  %v3390 = vpop.f32.mrb[0].mxu0
  %v3391 = vadd.f32 %v3296, %v3390
  %3392 = vdwg.mxu0
  %s3393 = scalar_lea.vmem %s3, 352
  %v3394 = vld [vmem:[%s3393] sm:$0xff]
  %v3395 = vld [vmem:[%s3393 + $0x8] sm:$0xff]
  %v3396 = vld [vmem:[%s3393 + $0x10] sm:$0xff]
  %v3397 = vld [vmem:[%s3393 + $0x18] sm:$0xff]
  %v3398 = vld [vmem:[%s3393 + $0x20] sm:$0xff]
  %v3399 = vld [vmem:[%s3393 + $0x28] sm:$0xff]
  %v3400 = vld [vmem:[%s3393 + $0x30] sm:$0xff]
  %v3401 = vld [vmem:[%s3393 + $0x38] sm:$0xff]
  %v3402 = vld [vmem:[%s3393 + $0x40] sm:$0xff]
  %v3403 = vld [vmem:[%s3393 + $0x48] sm:$0xff]
  %v3404 = vld [vmem:[%s3393 + $0x50] sm:$0xff]
  %v3405 = vld [vmem:[%s3393 + $0x58] sm:$0xff]
  %v3406 = vld [vmem:[%s3393 + $0x60] sm:$0xff]
  %v3407 = vld [vmem:[%s3393 + $0x68] sm:$0xff]
  %v3408 = vld [vmem:[%s3393 + $0x70] sm:$0xff]
  %v3409 = vld [vmem:[%s3393 + $0x78] sm:$0xff]
  %v3410 = vld [vmem:[%s3393 + $0x80] sm:$0xff]
  %v3411 = vld [vmem:[%s3393 + $0x88] sm:$0xff]
  %v3412 = vld [vmem:[%s3393 + $0x90] sm:$0xff]
  %v3413 = vld [vmem:[%s3393 + $0x98] sm:$0xff]
  %v3414 = vld [vmem:[%s3393 + $0xa0] sm:$0xf]
  %v3415 = vld [vmem:[%s3393 + $0xa8] sm:$0xf]
  %v3417 = vsel %vm2982, %v3414, 0
  %v3420 = vsel %vm2982, %v3415, 0
  %3422 = vmatprep.subr.mxu0 %v3395
  %3423 = vmatpush1.msra.mxu0 %v3394
  %3424 = vmatprep.subr.mxu0 %v3397
  %3425 = vmatpush1.msra.mxu0 %v3396
  %3426 = vmatprep.subr.mxu0 %v3399
  %3427 = vmatpush1.msra.mxu0 %v3398
  %3428 = vmatprep.subr.mxu0 %v3401
  %3429 = vmatpush1.msra.mxu0 %v3400
  %3430 = vmatprep.subr.mxu0 %v3403
  %3431 = vmatpush1.msra.mxu0 %v3402
  %3432 = vmatprep.subr.mxu0 %v3405
  %3433 = vmatpush1.msra.mxu0 %v3404
  %3434 = vmatprep.subr.mxu0 %v3407
  %3435 = vmatpush1.msra.mxu0 %v3406
  %3436 = vmatprep.subr.mxu0 %v3409
  %3437 = vmatpush1.msra.mxu0 %v3408
  %3438 = vmatprep.subr.mxu0 %v3411
  %3439 = vmatpush1.msra.mxu0 %v3410
  %3440 = vmatprep.subr.mxu0 %v3413
  %3441 = vmatpush1.msra.mxu0 %v3412
  %3442 = vmatprep.subr.mxu0 %v3420
  %3443 = vmatpush1.msra.mxu0 %v3417
  %3444 = vmatprep.subr.mxu0 0.0
  %3445 = vmatpush1.msra.mxu0 0.0
  %3446 = vmatprep.subr.mxu0 0.0
  %3447 = vmatpush1.msra.mxu0 0.0
  %3448 = vmatprep.subr.mxu0 0.0
  %3449 = vmatpush1.msra.mxu0 0.0
  %3450 = vmatprep.subr.mxu0 0.0
  %3451 = vmatpush1.msra.mxu0 0.0
  %3452 = vmatprep.subr.mxu0 0.0
  %3453 = vmatpush1.msra.mxu0 0.0
  %3454 = vmatprep.subr.mxu0 0.0
  %3455 = vmatpush1.msra.mxu0 0.0
  %3456 = vmatprep.subr.mxu0 0.0
  %3457 = vmatpush1.msra.mxu0 0.0
  %3458 = vmatprep.subr.mxu0 0.0
  %3459 = vmatpush1.msra.mxu0 0.0
  %3460 = vmatprep.subr.mxu0 0.0
  %3461 = vmatpush1.msra.mxu0 0.0
  %3462 = vmatprep.subr.mxu0 0.0
  %3463 = vmatpush1.msra.mxu0 0.0
  %3464 = vmatprep.subr.mxu0 0.0
  %3465 = vmatpush1.msra.mxu0 0.0
  %3466 = vmatprep.subr.mxu0 0.0
  %3467 = vmatpush1.msra.mxu0 0.0
  %3468 = vmatprep.subr.mxu0 0.0
  %3469 = vmatpush1.msra.mxu0 0.0
  %3470 = vmatprep.subr.mxu0 0.0
  %3471 = vmatpush1.msra.mxu0 0.0
  %3472 = vmatprep.subr.mxu0 0.0
  %3473 = vmatpush1.msra.mxu0 0.0
  %3474 = vmatprep.subr.mxu0 0.0
  %3475 = vmatpush1.msra.mxu0 0.0
  %3476 = vmatprep.subr.mxu0 0.0
  %3477 = vmatpush1.msra.mxu0 0.0
  %3478 = vmatprep.subr.mxu0 0.0
  %3479 = vmatpush1.msra.mxu0 0.0
  %3480 = vmatprep.subr.mxu0 0.0
  %3481 = vmatpush1.msra.mxu0 0.0
  %3482 = vmatprep.subr.mxu0 0.0
  %3483 = vmatpush1.msra.mxu0 0.0
  %3484 = vmatprep.subr.mxu0 0.0
  %3485 = vmatpush1.msra.mxu0 0.0
  %3486 = vmatprep.mubr.f32.mxu0 0.0
  %3487 = vmatmul.mubr.f32.gmra.mrb[0].mxu0 %v3088
  %v3488 = vpop.f32.mrb[0].mxu0
  %v3489 = vadd.f32 0.0, %v3488
  %v3490 = vpop.f32.mrb[0].mxu0
  %v3491 = vadd.f32 0.0, %v3490
  %3492 = vmatprep.mubr.f32.mxu0 0.0
  %3493 = vmatmul.mubr.f32.gmra.mrb[0].mxu0 %v3091
  %v3494 = vpop.f32.mrb[0].mxu0
  %v3495 = vadd.f32 0.0, %v3494
  %v3496 = vpop.f32.mrb[0].mxu0
  %v3497 = vadd.f32 0.0, %v3496
  %3498 = vmatprep.mubr.f32.mxu0 0.0
  %3499 = vmatmul.mubr.f32.gmra.mrb[0].mxu0 %v3094
  %v3500 = vpop.f32.mrb[0].mxu0
  %v3501 = vadd.f32 0.0, %v3500
  %v3502 = vpop.f32.mrb[0].mxu0
  %v3503 = vadd.f32 0.0, %v3502
  %3504 = vmatprep.mubr.f32.mxu0 0.0
  %3505 = vmatmul.mubr.f32.gmra.mrb[0].mxu0 %v3097
  %v3506 = vpop.f32.mrb[0].mxu0
  %v3507 = vadd.f32 0.0, %v3506
  %v3508 = vpop.f32.mrb[0].mxu0
  %v3509 = vadd.f32 0.0, %v3508
  %3510 = vmatprep.mubr.f32.mxu0 0.0
  %3511 = vmatmul.mubr.f32.gmra.mrb[0].mxu0 %v3201
  %v3512 = vpop.f32.mrb[0].mxu0
  %v3513 = vadd.f32 0.0, %v3512
  %v3514 = vpop.f32.mrb[0].mxu0
  %v3515 = vadd.f32 0.0, %v3514
  %3516 = vdwg.mxu0
  %v3517 = vadd.f32 %v3172, %v3489
  %v3518 = vadd.f32 %v3174, %v3491
  %v3519 = vadd.f32 %v3178, %v3495
  %v3520 = vadd.f32 %v3180, %v3497
  %v3521 = vadd.f32 %v3184, %v3501
  %v3522 = vadd.f32 %v3186, %v3503
  %v3523 = vadd.f32 %v3190, %v3507
  %v3524 = vadd.f32 %v3192, %v3509
  %v3525 = vadd.f32 %v3196, %v3513
  %v3526 = vadd.f32 %v3198, %v3515
  %v3528 = vsel %vm2966, %v2919, 0
  %3530 = vmatprep.subr.mxu0 %v3395
  %3531 = vmatpush1.msra.mxu0 %v3394
  %3532 = vmatprep.subr.mxu0 %v3397
  %3533 = vmatpush1.msra.mxu0 %v3396
  %3534 = vmatprep.subr.mxu0 %v3399
  %3535 = vmatpush1.msra.mxu0 %v3398
  %3536 = vmatprep.subr.mxu0 %v3401
  %3537 = vmatpush1.msra.mxu0 %v3400
  %3538 = vmatprep.subr.mxu0 %v3403
  %3539 = vmatpush1.msra.mxu0 %v3402
  %3540 = vmatprep.subr.mxu0 %v3405
  %3541 = vmatpush1.msra.mxu0 %v3404
  %3542 = vmatprep.subr.mxu0 %v3407
  %3543 = vmatpush1.msra.mxu0 %v3406
  %3544 = vmatprep.subr.mxu0 %v3409
  %3545 = vmatpush1.msra.mxu0 %v3408
  %3546 = vmatprep.subr.mxu0 %v3411
  %3547 = vmatpush1.msra.mxu0 %v3410
  %3548 = vmatprep.subr.mxu0 %v3413
  %3549 = vmatpush1.msra.mxu0 %v3412
  %3550 = vmatprep.subr.mxu0 %v3420
  %3551 = vmatpush1.msra.mxu0 %v3417
  %3552 = vmatprep.subr.mxu0 0.0
  %3553 = vmatpush1.msra.mxu0 0.0
  %3554 = vmatprep.subr.mxu0 0.0
  %3555 = vmatpush1.msra.mxu0 0.0
  %3556 = vmatprep.subr.mxu0 0.0
  %3557 = vmatpush1.msra.mxu0 0.0
  %3558 = vmatprep.subr.mxu0 0.0
  %3559 = vmatpush1.msra.mxu0 0.0
  %3560 = vmatprep.subr.mxu0 0.0
  %3561 = vmatpush1.msra.mxu0 0.0
  %3562 = vmatprep.subr.mxu0 0.0
  %3563 = vmatpush1.msra.mxu0 0.0
  %3564 = vmatprep.subr.mxu0 0.0
  %3565 = vmatpush1.msra.mxu0 0.0
  %3566 = vmatprep.subr.mxu0 0.0
  %3567 = vmatpush1.msra.mxu0 0.0
  %3568 = vmatprep.subr.mxu0 0.0
  %3569 = vmatpush1.msra.mxu0 0.0
  %3570 = vmatprep.subr.mxu0 0.0
  %3571 = vmatpush1.msra.mxu0 0.0
  %3572 = vmatprep.subr.mxu0 0.0
  %3573 = vmatpush1.msra.mxu0 0.0
  %3574 = vmatprep.subr.mxu0 0.0
  %3575 = vmatpush1.msra.mxu0 0.0
  %3576 = vmatprep.subr.mxu0 0.0
  %3577 = vmatpush1.msra.mxu0 0.0
  %3578 = vmatprep.subr.mxu0 0.0
  %3579 = vmatpush1.msra.mxu0 0.0
  %3580 = vmatprep.subr.mxu0 0.0
  %3581 = vmatpush1.msra.mxu0 0.0
  %3582 = vmatprep.subr.mxu0 0.0
  %3583 = vmatpush1.msra.mxu0 0.0
  %3584 = vmatprep.subr.mxu0 0.0
  %3585 = vmatpush1.msra.mxu0 0.0
  %3586 = vmatprep.subr.mxu0 0.0
  %3587 = vmatpush1.msra.mxu0 0.0
  %3588 = vmatprep.subr.mxu0 0.0
  %3589 = vmatpush1.msra.mxu0 0.0
  %3590 = vmatprep.subr.mxu0 0.0
  %3591 = vmatpush1.msra.mxu0 0.0
  %3592 = vmatprep.subr.mxu0 0.0
  %3593 = vmatpush1.msra.mxu0 0.0
  %3594 = vmatprep.mubr.f32.mxu0 0.0
  %3595 = vmatmul.mubr.f32.gmra.mrb[0].mxu0 %v2971
  %v3596 = vpop.f32.mrb[0].mxu0
  %v3597 = vadd.f32 0.0, %v3596
  %v3598 = vpop.f32.mrb[0].mxu0
  %v3599 = vadd.f32 0.0, %v3598
  %3600 = vmatprep.mubr.f32.mxu0 0.0
  %3601 = vmatmul.mubr.f32.gmra.mrb[0].mxu0 %v2974
  %v3602 = vpop.f32.mrb[0].mxu0
  %v3603 = vadd.f32 0.0, %v3602
  %v3604 = vpop.f32.mrb[0].mxu0
  %v3605 = vadd.f32 0.0, %v3604
  %3606 = vmatprep.mubr.f32.mxu0 0.0
  %3607 = vmatmul.mubr.f32.gmra.mrb[0].mxu0 %v2977
  %v3608 = vpop.f32.mrb[0].mxu0
  %v3609 = vadd.f32 0.0, %v3608
  %v3610 = vpop.f32.mrb[0].mxu0
  %v3611 = vadd.f32 0.0, %v3610
  %3612 = vmatprep.mubr.f32.mxu0 0.0
  %3613 = vmatmul.mubr.f32.gmra.mrb[0].mxu0 %v2980
  %v3614 = vpop.f32.mrb[0].mxu0
  %v3615 = vadd.f32 0.0, %v3614
  %v3616 = vpop.f32.mrb[0].mxu0
  %v3617 = vadd.f32 0.0, %v3616
  %3618 = vmatprep.mubr.f32.mxu0 0.0
  %3619 = vmatmul.mubr.f32.gmra.mrb[0].mxu0 %v3528
  %v3620 = vpop.f32.mrb[0].mxu0
  %v3621 = vadd.f32 0.0, %v3620
  %v3622 = vpop.f32.mrb[0].mxu0
  %v3623 = vadd.f32 0.0, %v3622
  %3624 = vdwg.mxu0
  %v3625 = vadd.f32 %v3365, %v3597
  %v3626 = vadd.f32 %v3367, %v3599
  %v3627 = vadd.f32 %v3371, %v3603
  %v3628 = vadd.f32 %v3373, %v3605
  %v3629 = vadd.f32 %v3377, %v3609
  %v3630 = vadd.f32 %v3379, %v3611
  %v3631 = vadd.f32 %v3383, %v3615
  %v3632 = vadd.f32 %v3385, %v3617
  %v3633 = vadd.f32 %v3389, %v3621
  %v3634 = vadd.f32 %v3391, %v3623
  %s3635 = scalar_lea.vmem %s3, 528
  %v3636 = vld [vmem:[%s3635] sm:$0xff]
  %v3637 = vld [vmem:[%s3635 + $0x8] sm:$0xff]
  %v3638 = vld [vmem:[%s3635 + $0x10] sm:$0xff]
  %v3639 = vld [vmem:[%s3635 + $0x18] sm:$0xff]
  %v3640 = vld [vmem:[%s3635 + $0x20] sm:$0xff]
  %v3641 = vld [vmem:[%s3635 + $0x28] sm:$0xff]
  %v3642 = vld [vmem:[%s3635 + $0x30] sm:$0xff]
  %v3643 = vld [vmem:[%s3635 + $0x38] sm:$0xff]
  %v3644 = vld [vmem:[%s3635 + $0x40] sm:$0xff]
  %v3645 = vld [vmem:[%s3635 + $0x48] sm:$0xff]
  %v3646 = vld [vmem:[%s3635 + $0x50] sm:$0xff]
  %v3647 = vld [vmem:[%s3635 + $0x58] sm:$0xff]
  %v3648 = vld [vmem:[%s3635 + $0x60] sm:$0xff]
  %v3649 = vld [vmem:[%s3635 + $0x68] sm:$0xff]
  %v3650 = vld [vmem:[%s3635 + $0x70] sm:$0xff]
  %v3651 = vld [vmem:[%s3635 + $0x78] sm:$0xff]
  %v3652 = vld [vmem:[%s3635 + $0x80] sm:$0xff]
  %v3653 = vld [vmem:[%s3635 + $0x88] sm:$0xff]
  %v3654 = vld [vmem:[%s3635 + $0x90] sm:$0xff]
  %v3655 = vld [vmem:[%s3635 + $0x98] sm:$0xff]
  %v3656 = vld [vmem:[%s3635 + $0xa0] sm:$0xf]
  %v3657 = vld [vmem:[%s3635 + $0xa8] sm:$0xf]
  %v3659 = vsel %vm2982, %v3656, 0
  %v3662 = vsel %vm2982, %v3657, 0
  %3664 = vmatprep.subr.mxu0 %v3637
  %3665 = vmatpush1.msra.mxu0 %v3636
  %3666 = vmatprep.subr.mxu0 %v3639
  %3667 = vmatpush1.msra.mxu0 %v3638
  %3668 = vmatprep.subr.mxu0 %v3641
  %3669 = vmatpush1.msra.mxu0 %v3640
  %3670 = vmatprep.subr.mxu0 %v3643
  %3671 = vmatpush1.msra.mxu0 %v3642
  %3672 = vmatprep.subr.mxu0 %v3645
  %3673 = vmatpush1.msra.mxu0 %v3644
  %3674 = vmatprep.subr.mxu0 %v3647
  %3675 = vmatpush1.msra.mxu0 %v3646
  %3676 = vmatprep.subr.mxu0 %v3649
  %3677 = vmatpush1.msra.mxu0 %v3648
  %3678 = vmatprep.subr.mxu0 %v3651
  %3679 = vmatpush1.msra.mxu0 %v3650
  %3680 = vmatprep.subr.mxu0 %v3653
  %3681 = vmatpush1.msra.mxu0 %v3652
  %3682 = vmatprep.subr.mxu0 %v3655
  %3683 = vmatpush1.msra.mxu0 %v3654
  %3684 = vmatprep.subr.mxu0 %v3662
  %3685 = vmatpush1.msra.mxu0 %v3659
  %3686 = vmatprep.subr.mxu0 0.0
  %3687 = vmatpush1.msra.mxu0 0.0
  %3688 = vmatprep.subr.mxu0 0.0
  %3689 = vmatpush1.msra.mxu0 0.0
  %3690 = vmatprep.subr.mxu0 0.0
  %3691 = vmatpush1.msra.mxu0 0.0
  %3692 = vmatprep.subr.mxu0 0.0
  %3693 = vmatpush1.msra.mxu0 0.0
  %3694 = vmatprep.subr.mxu0 0.0
  %3695 = vmatpush1.msra.mxu0 0.0
  %3696 = vmatprep.subr.mxu0 0.0
  %3697 = vmatpush1.msra.mxu0 0.0
  %3698 = vmatprep.subr.mxu0 0.0
  %3699 = vmatpush1.msra.mxu0 0.0
  %3700 = vmatprep.subr.mxu0 0.0
  %3701 = vmatpush1.msra.mxu0 0.0
  %3702 = vmatprep.subr.mxu0 0.0
  %3703 = vmatpush1.msra.mxu0 0.0
  %3704 = vmatprep.subr.mxu0 0.0
  %3705 = vmatpush1.msra.mxu0 0.0
  %3706 = vmatprep.subr.mxu0 0.0
  %3707 = vmatpush1.msra.mxu0 0.0
  %3708 = vmatprep.subr.mxu0 0.0
  %3709 = vmatpush1.msra.mxu0 0.0
  %3710 = vmatprep.subr.mxu0 0.0
  %3711 = vmatpush1.msra.mxu0 0.0
  %3712 = vmatprep.subr.mxu0 0.0
  %3713 = vmatpush1.msra.mxu0 0.0
  %3714 = vmatprep.subr.mxu0 0.0
  %3715 = vmatpush1.msra.mxu0 0.0
  %3716 = vmatprep.subr.mxu0 0.0
  %3717 = vmatpush1.msra.mxu0 0.0
  %3718 = vmatprep.subr.mxu0 0.0
  %3719 = vmatpush1.msra.mxu0 0.0
  %3720 = vmatprep.subr.mxu0 0.0
  %3721 = vmatpush1.msra.mxu0 0.0
  %3722 = vmatprep.subr.mxu0 0.0
  %3723 = vmatpush1.msra.mxu0 0.0
  %3724 = vmatprep.subr.mxu0 0.0
  %3725 = vmatpush1.msra.mxu0 0.0
  %3726 = vmatprep.subr.mxu0 0.0
  %3727 = vmatpush1.msra.mxu0 0.0
  %3728 = vmatprep.mubr.f32.mxu0 0.0
  %3729 = vmatmul.mubr.f32.gmra.mrb[0].mxu0 %v2971
  %v3730 = vpop.f32.mrb[0].mxu0
  %v3731 = vadd.f32 0.0, %v3730
  %v3732 = vpop.f32.mrb[0].mxu0
  %v3733 = vadd.f32 0.0, %v3732
  %3734 = vmatprep.mubr.f32.mxu0 0.0
  %3735 = vmatmul.mubr.f32.gmra.mrb[0].mxu0 %v2974
  %v3736 = vpop.f32.mrb[0].mxu0
  %v3737 = vadd.f32 0.0, %v3736
  %v3738 = vpop.f32.mrb[0].mxu0
  %v3739 = vadd.f32 0.0, %v3738
  %3740 = vmatprep.mubr.f32.mxu0 0.0
  %3741 = vmatmul.mubr.f32.gmra.mrb[0].mxu0 %v2977
  %v3742 = vpop.f32.mrb[0].mxu0
  %v3743 = vadd.f32 0.0, %v3742
  %v3744 = vpop.f32.mrb[0].mxu0
  %v3745 = vadd.f32 0.0, %v3744
  %3746 = vmatprep.mubr.f32.mxu0 0.0
  %3747 = vmatmul.mubr.f32.gmra.mrb[0].mxu0 %v2980
  %v3748 = vpop.f32.mrb[0].mxu0
  %v3749 = vadd.f32 0.0, %v3748
  %v3750 = vpop.f32.mrb[0].mxu0
  %v3751 = vadd.f32 0.0, %v3750
  %3752 = vmatprep.mubr.f32.mxu0 0.0
  %3753 = vmatmul.mubr.f32.gmra.mrb[0].mxu0 %v3528
  %v3754 = vpop.f32.mrb[0].mxu0
  %v3755 = vadd.f32 0.0, %v3754
  %v3756 = vpop.f32.mrb[0].mxu0
  %v3757 = vadd.f32 0.0, %v3756
  %3758 = vdwg.mxu0
  %v3759 = vadd.f32 %v3517, %v3731
  %v3760 = vadd.f32 %v3518, %v3733
  %v3761 = vadd.f32 %v3519, %v3737
  %v3762 = vadd.f32 %v3520, %v3739
  %v3763 = vadd.f32 %v3521, %v3743
  %v3764 = vadd.f32 %v3522, %v3745
  %v3765 = vadd.f32 %v3523, %v3749
  %v3766 = vadd.f32 %v3524, %v3751
  %v3767 = vadd.f32 %v3525, %v3755
  %v3768 = vadd.f32 %v3526, %v3757
  %v3770 = vsel %vm2966, %v2773, 0
  %3772 = vmatprep.subr.mxu0 %v3637
  %3773 = vmatpush1.msra.mxu0 %v3636
  %3774 = vmatprep.subr.mxu0 %v3639
  %3775 = vmatpush1.msra.mxu0 %v3638
  %3776 = vmatprep.subr.mxu0 %v3641
  %3777 = vmatpush1.msra.mxu0 %v3640
  %3778 = vmatprep.subr.mxu0 %v3643
  %3779 = vmatpush1.msra.mxu0 %v3642
  %3780 = vmatprep.subr.mxu0 %v3645
  %3781 = vmatpush1.msra.mxu0 %v3644
  %3782 = vmatprep.subr.mxu0 %v3647
  %3783 = vmatpush1.msra.mxu0 %v3646
  %3784 = vmatprep.subr.mxu0 %v3649
  %3785 = vmatpush1.msra.mxu0 %v3648
  %3786 = vmatprep.subr.mxu0 %v3651
  %3787 = vmatpush1.msra.mxu0 %v3650
  %3788 = vmatprep.subr.mxu0 %v3653
  %3789 = vmatpush1.msra.mxu0 %v3652
  %3790 = vmatprep.subr.mxu0 %v3655
  %3791 = vmatpush1.msra.mxu0 %v3654
  %3792 = vmatprep.subr.mxu0 %v3662
  %3793 = vmatpush1.msra.mxu0 %v3659
  %3794 = vmatprep.subr.mxu0 0.0
  %3795 = vmatpush1.msra.mxu0 0.0
  %3796 = vmatprep.subr.mxu0 0.0
  %3797 = vmatpush1.msra.mxu0 0.0
  %3798 = vmatprep.subr.mxu0 0.0
  %3799 = vmatpush1.msra.mxu0 0.0
  %3800 = vmatprep.subr.mxu0 0.0
  %3801 = vmatpush1.msra.mxu0 0.0
  %3802 = vmatprep.subr.mxu0 0.0
  %3803 = vmatpush1.msra.mxu0 0.0
  %3804 = vmatprep.subr.mxu0 0.0
  %3805 = vmatpush1.msra.mxu0 0.0
  %3806 = vmatprep.subr.mxu0 0.0
  %3807 = vmatpush1.msra.mxu0 0.0
  %3808 = vmatprep.subr.mxu0 0.0
  %3809 = vmatpush1.msra.mxu0 0.0
  %3810 = vmatprep.subr.mxu0 0.0
  %3811 = vmatpush1.msra.mxu0 0.0
  %3812 = vmatprep.subr.mxu0 0.0
  %3813 = vmatpush1.msra.mxu0 0.0
  %3814 = vmatprep.subr.mxu0 0.0
  %3815 = vmatpush1.msra.mxu0 0.0
  %3816 = vmatprep.subr.mxu0 0.0
  %3817 = vmatpush1.msra.mxu0 0.0
  %3818 = vmatprep.subr.mxu0 0.0
  %3819 = vmatpush1.msra.mxu0 0.0
  %3820 = vmatprep.subr.mxu0 0.0
  %3821 = vmatpush1.msra.mxu0 0.0
  %3822 = vmatprep.subr.mxu0 0.0
  %3823 = vmatpush1.msra.mxu0 0.0
  %3824 = vmatprep.subr.mxu0 0.0
  %3825 = vmatpush1.msra.mxu0 0.0
  %3826 = vmatprep.subr.mxu0 0.0
  %3827 = vmatpush1.msra.mxu0 0.0
  %3828 = vmatprep.subr.mxu0 0.0
  %3829 = vmatpush1.msra.mxu0 0.0
  %3830 = vmatprep.subr.mxu0 0.0
  %3831 = vmatpush1.msra.mxu0 0.0
  %3832 = vmatprep.subr.mxu0 0.0
  %3833 = vmatpush1.msra.mxu0 0.0
  %3834 = vmatprep.subr.mxu0 0.0
  %3835 = vmatpush1.msra.mxu0 0.0
  %3836 = vmatprep.mubr.f32.mxu0 0.0
  %3837 = vmatmul.mubr.f32.gmra.mrb[0].mxu0 %v3091
  %v3838 = vpop.f32.mrb[0].mxu0
  %v3839 = vadd.f32 0.0, %v3838
  %v3840 = vpop.f32.mrb[0].mxu0
  %v3841 = vadd.f32 0.0, %v3840
  %3842 = vmatprep.mubr.f32.mxu0 0.0
  %3843 = vmatmul.mubr.f32.gmra.mrb[0].mxu0 %v3094
  %v3844 = vpop.f32.mrb[0].mxu0
  %v3845 = vadd.f32 0.0, %v3844
  %v3846 = vpop.f32.mrb[0].mxu0
  %v3847 = vadd.f32 0.0, %v3846
  %3848 = vmatprep.mubr.f32.mxu0 0.0
  %3849 = vmatmul.mubr.f32.gmra.mrb[0].mxu0 %v3097
  %v3850 = vpop.f32.mrb[0].mxu0
  %v3851 = vadd.f32 0.0, %v3850
  %v3852 = vpop.f32.mrb[0].mxu0
  %v3853 = vadd.f32 0.0, %v3852
  %3854 = vmatprep.mubr.f32.mxu0 0.0
  %3855 = vmatmul.mubr.f32.gmra.mrb[0].mxu0 %v3201
  %v3856 = vpop.f32.mrb[0].mxu0
  %v3857 = vadd.f32 0.0, %v3856
  %v3858 = vpop.f32.mrb[0].mxu0
  %v3859 = vadd.f32 0.0, %v3858
  %3860 = vmatprep.mubr.f32.mxu0 0.0
  %3861 = vmatmul.mubr.f32.gmra.mrb[0].mxu0 %v3770
  %v3862 = vpop.f32.mrb[0].mxu0
  %v3863 = vadd.f32 0.0, %v3862
  %v3864 = vpop.f32.mrb[0].mxu0
  %v3865 = vadd.f32 0.0, %v3864
  %3866 = vdwg.mxu0
  %v3867 = vadd.f32 %v3625, %v3839
  %v3868 = vadd.f32 %v3626, %v3841
  %v3869 = vadd.f32 %v3627, %v3845
  %v3870 = vadd.f32 %v3628, %v3847
  %v3871 = vadd.f32 %v3629, %v3851
  %v3872 = vadd.f32 %v3630, %v3853
  %v3873 = vadd.f32 %v3631, %v3857
  %v3874 = vadd.f32 %v3632, %v3859
  %v3875 = vadd.f32 %v3633, %v3863
  %v3876 = vadd.f32 %v3634, %v3865
  %s3877 = scalar_lea.vmem %s3, 704
  %v3878 = vld [vmem:[%s3877] sm:$0xff]
  %v3879 = vld [vmem:[%s3877 + $0x8] sm:$0xff]
  %v3880 = vld [vmem:[%s3877 + $0x10] sm:$0xff]
  %v3881 = vld [vmem:[%s3877 + $0x18] sm:$0xff]
  %v3882 = vld [vmem:[%s3877 + $0x20] sm:$0xff]
  %v3883 = vld [vmem:[%s3877 + $0x28] sm:$0xff]
  %v3884 = vld [vmem:[%s3877 + $0x30] sm:$0xff]
  %v3885 = vld [vmem:[%s3877 + $0x38] sm:$0xff]
  %v3886 = vld [vmem:[%s3877 + $0x40] sm:$0xff]
  %v3887 = vld [vmem:[%s3877 + $0x48] sm:$0xff]
  %v3888 = vld [vmem:[%s3877 + $0x50] sm:$0xff]
  %v3889 = vld [vmem:[%s3877 + $0x58] sm:$0xff]
  %v3890 = vld [vmem:[%s3877 + $0x60] sm:$0xff]
  %v3891 = vld [vmem:[%s3877 + $0x68] sm:$0xff]
  %v3892 = vld [vmem:[%s3877 + $0x70] sm:$0xff]
  %v3893 = vld [vmem:[%s3877 + $0x78] sm:$0xff]
  %v3894 = vld [vmem:[%s3877 + $0x80] sm:$0xff]
  %v3895 = vld [vmem:[%s3877 + $0x88] sm:$0xff]
  %v3896 = vld [vmem:[%s3877 + $0x90] sm:$0xff]
  %v3897 = vld [vmem:[%s3877 + $0x98] sm:$0xff]
  %v3898 = vld [vmem:[%s3877 + $0xa0] sm:$0xf]
  %v3899 = vld [vmem:[%s3877 + $0xa8] sm:$0xf]
  %v3901 = vsel %vm2982, %v3898, 0
  %v3904 = vsel %vm2982, %v3899, 0
  %3906 = vmatprep.subr.mxu0 %v3879
  %3907 = vmatpush1.msra.mxu0 %v3878
  %3908 = vmatprep.subr.mxu0 %v3881
  %3909 = vmatpush1.msra.mxu0 %v3880
  %3910 = vmatprep.subr.mxu0 %v3883
  %3911 = vmatpush1.msra.mxu0 %v3882
  %3912 = vmatprep.subr.mxu0 %v3885
  %3913 = vmatpush1.msra.mxu0 %v3884
  %3914 = vmatprep.subr.mxu0 %v3887
  %3915 = vmatpush1.msra.mxu0 %v3886
  %3916 = vmatprep.subr.mxu0 %v3889
  %3917 = vmatpush1.msra.mxu0 %v3888
  %3918 = vmatprep.subr.mxu0 %v3891
  %3919 = vmatpush1.msra.mxu0 %v3890
  %3920 = vmatprep.subr.mxu0 %v3893
  %3921 = vmatpush1.msra.mxu0 %v3892
  %3922 = vmatprep.subr.mxu0 %v3895
  %3923 = vmatpush1.msra.mxu0 %v3894
  %3924 = vmatprep.subr.mxu0 %v3897
  %3925 = vmatpush1.msra.mxu0 %v3896
  %3926 = vmatprep.subr.mxu0 %v3904
  %3927 = vmatpush1.msra.mxu0 %v3901
  %3928 = vmatprep.subr.mxu0 0.0
  %3929 = vmatpush1.msra.mxu0 0.0
  %3930 = vmatprep.subr.mxu0 0.0
  %3931 = vmatpush1.msra.mxu0 0.0
  %3932 = vmatprep.subr.mxu0 0.0
  %3933 = vmatpush1.msra.mxu0 0.0
  %3934 = vmatprep.subr.mxu0 0.0
  %3935 = vmatpush1.msra.mxu0 0.0
  %3936 = vmatprep.subr.mxu0 0.0
  %3937 = vmatpush1.msra.mxu0 0.0
  %3938 = vmatprep.subr.mxu0 0.0
  %3939 = vmatpush1.msra.mxu0 0.0
  %3940 = vmatprep.subr.mxu0 0.0
  %3941 = vmatpush1.msra.mxu0 0.0
  %3942 = vmatprep.subr.mxu0 0.0
  %3943 = vmatpush1.msra.mxu0 0.0
  %3944 = vmatprep.subr.mxu0 0.0
  %3945 = vmatpush1.msra.mxu0 0.0
  %3946 = vmatprep.subr.mxu0 0.0
  %3947 = vmatpush1.msra.mxu0 0.0
  %3948 = vmatprep.subr.mxu0 0.0
  %3949 = vmatpush1.msra.mxu0 0.0
  %3950 = vmatprep.subr.mxu0 0.0
  %3951 = vmatpush1.msra.mxu0 0.0
  %3952 = vmatprep.subr.mxu0 0.0
  %3953 = vmatpush1.msra.mxu0 0.0
  %3954 = vmatprep.subr.mxu0 0.0
  %3955 = vmatpush1.msra.mxu0 0.0
  %3956 = vmatprep.subr.mxu0 0.0
  %3957 = vmatpush1.msra.mxu0 0.0
  %3958 = vmatprep.subr.mxu0 0.0
  %3959 = vmatpush1.msra.mxu0 0.0
  %3960 = vmatprep.subr.mxu0 0.0
  %3961 = vmatpush1.msra.mxu0 0.0
  %3962 = vmatprep.subr.mxu0 0.0
  %3963 = vmatpush1.msra.mxu0 0.0
  %3964 = vmatprep.subr.mxu0 0.0
  %3965 = vmatpush1.msra.mxu0 0.0
  %3966 = vmatprep.subr.mxu0 0.0
  %3967 = vmatpush1.msra.mxu0 0.0
  %3968 = vmatprep.subr.mxu0 0.0
  %3969 = vmatpush1.msra.mxu0 0.0
  %3970 = vmatprep.mubr.f32.mxu0 0.0
  %3971 = vmatmul.mubr.f32.gmra.mrb[0].mxu0 %v3091
  %v3972 = vpop.f32.mrb[0].mxu0
  %v3973 = vadd.f32 0.0, %v3972
  %v3974 = vpop.f32.mrb[0].mxu0
  %v3975 = vadd.f32 0.0, %v3974
  %3976 = vmatprep.mubr.f32.mxu0 0.0
  %3977 = vmatmul.mubr.f32.gmra.mrb[0].mxu0 %v3094
  %v3978 = vpop.f32.mrb[0].mxu0
  %v3979 = vadd.f32 0.0, %v3978
  %v3980 = vpop.f32.mrb[0].mxu0
  %v3981 = vadd.f32 0.0, %v3980
  %3982 = vmatprep.mubr.f32.mxu0 0.0
  %3983 = vmatmul.mubr.f32.gmra.mrb[0].mxu0 %v3097
  %v3984 = vpop.f32.mrb[0].mxu0
  %v3985 = vadd.f32 0.0, %v3984
  %v3986 = vpop.f32.mrb[0].mxu0
  %v3987 = vadd.f32 0.0, %v3986
  %3988 = vmatprep.mubr.f32.mxu0 0.0
  %3989 = vmatmul.mubr.f32.gmra.mrb[0].mxu0 %v3201
  %v3990 = vpop.f32.mrb[0].mxu0
  %v3991 = vadd.f32 0.0, %v3990
  %v3992 = vpop.f32.mrb[0].mxu0
  %v3993 = vadd.f32 0.0, %v3992
  %3994 = vmatprep.mubr.f32.mxu0 0.0
  %3995 = vmatmul.mubr.f32.gmra.mrb[0].mxu0 %v3770
  %v3996 = vpop.f32.mrb[0].mxu0
  %v3997 = vadd.f32 0.0, %v3996
  %v3998 = vpop.f32.mrb[0].mxu0
  %v3999 = vadd.f32 0.0, %v3998
  %4000 = vdwg.mxu0
  %v4001 = vadd.f32 %v3759, %v3973
  %v4002 = vadd.f32 %v3760, %v3975
  %v4003 = vadd.f32 %v3761, %v3979
  %v4004 = vadd.f32 %v3762, %v3981
  %v4005 = vadd.f32 %v3763, %v3985
  %v4006 = vadd.f32 %v3764, %v3987
  %v4007 = vadd.f32 %v3765, %v3991
  %v4008 = vadd.f32 %v3766, %v3993
  %v4009 = vadd.f32 %v3767, %v3997
  %v4010 = vadd.f32 %v3768, %v3999
  %v4012 = vsel %vm2966, %v2920, 0
  %4014 = vmatprep.subr.mxu0 %v3879
  %4015 = vmatpush1.msra.mxu0 %v3878
  %4016 = vmatprep.subr.mxu0 %v3881
  %4017 = vmatpush1.msra.mxu0 %v3880
  %4018 = vmatprep.subr.mxu0 %v3883
  %4019 = vmatpush1.msra.mxu0 %v3882
  %4020 = vmatprep.subr.mxu0 %v3885
  %4021 = vmatpush1.msra.mxu0 %v3884
  %4022 = vmatprep.subr.mxu0 %v3887
  %4023 = vmatpush1.msra.mxu0 %v3886
  %4024 = vmatprep.subr.mxu0 %v3889
  %4025 = vmatpush1.msra.mxu0 %v3888
  %4026 = vmatprep.subr.mxu0 %v3891
  %4027 = vmatpush1.msra.mxu0 %v3890
  %4028 = vmatprep.subr.mxu0 %v3893
  %4029 = vmatpush1.msra.mxu0 %v3892
  %4030 = vmatprep.subr.mxu0 %v3895
  %4031 = vmatpush1.msra.mxu0 %v3894
  %4032 = vmatprep.subr.mxu0 %v3897
  %4033 = vmatpush1.msra.mxu0 %v3896
  %4034 = vmatprep.subr.mxu0 %v3904
  %4035 = vmatpush1.msra.mxu0 %v3901
  %4036 = vmatprep.subr.mxu0 0.0
  %4037 = vmatpush1.msra.mxu0 0.0
  %4038 = vmatprep.subr.mxu0 0.0
  %4039 = vmatpush1.msra.mxu0 0.0
  %4040 = vmatprep.subr.mxu0 0.0
  %4041 = vmatpush1.msra.mxu0 0.0
  %4042 = vmatprep.subr.mxu0 0.0
  %4043 = vmatpush1.msra.mxu0 0.0
  %4044 = vmatprep.subr.mxu0 0.0
  %4045 = vmatpush1.msra.mxu0 0.0
  %4046 = vmatprep.subr.mxu0 0.0
  %4047 = vmatpush1.msra.mxu0 0.0
  %4048 = vmatprep.subr.mxu0 0.0
  %4049 = vmatpush1.msra.mxu0 0.0
  %4050 = vmatprep.subr.mxu0 0.0
  %4051 = vmatpush1.msra.mxu0 0.0
  %4052 = vmatprep.subr.mxu0 0.0
  %4053 = vmatpush1.msra.mxu0 0.0
  %4054 = vmatprep.subr.mxu0 0.0
  %4055 = vmatpush1.msra.mxu0 0.0
  %4056 = vmatprep.subr.mxu0 0.0
  %4057 = vmatpush1.msra.mxu0 0.0
  %4058 = vmatprep.subr.mxu0 0.0
  %4059 = vmatpush1.msra.mxu0 0.0
  %4060 = vmatprep.subr.mxu0 0.0
  %4061 = vmatpush1.msra.mxu0 0.0
  %4062 = vmatprep.subr.mxu0 0.0
  %4063 = vmatpush1.msra.mxu0 0.0
  %4064 = vmatprep.subr.mxu0 0.0
  %4065 = vmatpush1.msra.mxu0 0.0
  %4066 = vmatprep.subr.mxu0 0.0
  %4067 = vmatpush1.msra.mxu0 0.0
  %4068 = vmatprep.subr.mxu0 0.0
  %4069 = vmatpush1.msra.mxu0 0.0
  %4070 = vmatprep.subr.mxu0 0.0
  %4071 = vmatpush1.msra.mxu0 0.0
  %4072 = vmatprep.subr.mxu0 0.0
  %4073 = vmatpush1.msra.mxu0 0.0
  %4074 = vmatprep.subr.mxu0 0.0
  %4075 = vmatpush1.msra.mxu0 0.0
  %4076 = vmatprep.subr.mxu0 0.0
  %4077 = vmatpush1.msra.mxu0 0.0
  %4078 = vmatprep.mubr.f32.mxu0 0.0
  %4079 = vmatmul.mubr.f32.gmra.mrb[0].mxu0 %v2974
  %v4080 = vpop.f32.mrb[0].mxu0
  %v4081 = vadd.f32 0.0, %v4080
  %v4082 = vpop.f32.mrb[0].mxu0
  %v4083 = vadd.f32 0.0, %v4082
  %4084 = vmatprep.mubr.f32.mxu0 0.0
  %4085 = vmatmul.mubr.f32.gmra.mrb[0].mxu0 %v2977
  %v4086 = vpop.f32.mrb[0].mxu0
  %v4087 = vadd.f32 0.0, %v4086
  %v4088 = vpop.f32.mrb[0].mxu0
  %v4089 = vadd.f32 0.0, %v4088
  %4090 = vmatprep.mubr.f32.mxu0 0.0
  %4091 = vmatmul.mubr.f32.gmra.mrb[0].mxu0 %v2980
  %v4092 = vpop.f32.mrb[0].mxu0
  %v4093 = vadd.f32 0.0, %v4092
  %v4094 = vpop.f32.mrb[0].mxu0
  %v4095 = vadd.f32 0.0, %v4094
  %4096 = vmatprep.mubr.f32.mxu0 0.0
  %4097 = vmatmul.mubr.f32.gmra.mrb[0].mxu0 %v3528
  %v4098 = vpop.f32.mrb[0].mxu0
  %v4099 = vadd.f32 0.0, %v4098
  %v4100 = vpop.f32.mrb[0].mxu0
  %v4101 = vadd.f32 0.0, %v4100
  %4102 = vmatprep.mubr.f32.mxu0 0.0
  %4103 = vmatmul.mubr.f32.gmra.mrb[0].mxu0 %v4012
  %v4104 = vpop.f32.mrb[0].mxu0
  %v4105 = vadd.f32 0.0, %v4104
  %v4106 = vpop.f32.mrb[0].mxu0
  %v4107 = vadd.f32 0.0, %v4106
  %4108 = vdwg.mxu0
  %v4109 = vadd.f32 %v3867, %v4081
  %v4110 = vadd.f32 %v3868, %v4083
  %v4111 = vadd.f32 %v3869, %v4087
  %v4112 = vadd.f32 %v3870, %v4089
  %v4113 = vadd.f32 %v3871, %v4093
  %v4114 = vadd.f32 %v3872, %v4095
  %v4115 = vadd.f32 %v3873, %v4099
  %v4116 = vadd.f32 %v3874, %v4101
  %v4117 = vadd.f32 %v3875, %v4105
  %v4118 = vadd.f32 %v3876, %v4107
  %4129 = vrot.lane.b32.xlu0 %v4001, 48
  %v4130 = vpop.permute.xlu0 %4129
  %4131 = vrot.lane.b32.xlu0 %v4002, 48
  %v4132 = vpop.permute.xlu0 %4131
  %4133 = vrot.lane.b32.xlu0 %v4003, 48
  %v4134 = vpop.permute.xlu0 %4133
  %4135 = vrot.lane.b32.xlu0 %v4004, 48
  %v4136 = vpop.permute.xlu0 %4135
  %4137 = vrot.lane.b32.xlu0 %v4005, 48
  %v4138 = vpop.permute.xlu0 %4137
  %4139 = vrot.lane.b32.xlu0 %v4006, 48
  %v4140 = vpop.permute.xlu0 %4139
  %4141 = vrot.lane.b32.xlu0 %v4007, 48
  %v4142 = vpop.permute.xlu0 %4141
  %4143 = vrot.lane.b32.xlu0 %v4008, 48
  %v4144 = vpop.permute.xlu0 %4143
  %4145 = vrot.lane.b32.xlu0 %v4009, 48
  %v4146 = vpop.permute.xlu0 %4145
  %4147 = vrot.lane.b32.xlu0 %v4010, 48
  %v4148 = vpop.permute.xlu0 %4147
  %vm4149 = vcmask 392192
  %v4150 = vsel %vm4149, %v4130, %v4132
  %v4151 = vsel %vm4149, %v4134, %v4136
  %v4152 = vsel %vm4149, %v4138, %v4140
  %v4153 = vsel %vm4149, %v4142, %v4144
  %v4154 = vsel %vm4149, %v4146, %v4148
  %v4160 = vmax.f32 %v4001, %v4150
  %v4161 = vmax.f32 %v4003, %v4151
  %v4162 = vmax.f32 %v4005, %v4152
  %v4163 = vmax.f32 %v4007, %v4153
  %v4164 = vmax.f32 %v4009, %v4154
  %4175 = vrot.lane.b32.xlu0 %v4109, 48
  %v4176 = vpop.permute.xlu0 %4175
  %4177 = vrot.lane.b32.xlu0 %v4110, 48
  %v4178 = vpop.permute.xlu0 %4177
  %4179 = vrot.lane.b32.xlu0 %v4111, 48
  %v4180 = vpop.permute.xlu0 %4179
  %4181 = vrot.lane.b32.xlu0 %v4112, 48
  %v4182 = vpop.permute.xlu0 %4181
  %4183 = vrot.lane.b32.xlu0 %v4113, 48
  %v4184 = vpop.permute.xlu0 %4183
  %4185 = vrot.lane.b32.xlu0 %v4114, 48
  %v4186 = vpop.permute.xlu0 %4185
  %4187 = vrot.lane.b32.xlu0 %v4115, 48
  %v4188 = vpop.permute.xlu0 %4187
  %4189 = vrot.lane.b32.xlu0 %v4116, 48
  %v4190 = vpop.permute.xlu0 %4189
  %4191 = vrot.lane.b32.xlu0 %v4117, 48
  %v4192 = vpop.permute.xlu0 %4191
  %4193 = vrot.lane.b32.xlu0 %v4118, 48
  %v4194 = vpop.permute.xlu0 %4193
  %v4195 = vsel %vm4149, %v4176, %v4178
  %v4196 = vsel %vm4149, %v4180, %v4182
  %v4197 = vsel %vm4149, %v4184, %v4186
  %v4198 = vsel %vm4149, %v4188, %v4190
  %v4199 = vsel %vm4149, %v4192, %v4194
  %v4205 = vmax.f32 %v4109, %v4195
  %v4206 = vmax.f32 %v4111, %v4196
  %v4207 = vmax.f32 %v4113, %v4197
  %v4208 = vmax.f32 %v4115, %v4198
  %v4209 = vmax.f32 %v4117, %v4199
  %v4210 = vmax.f32 %v4160, %v4205
  %v4211 = vmax.f32 %v4161, %v4206
  %v4212 = vmax.f32 %v4162, %v4207
  %v4213 = vmax.f32 %v4163, %v4208
  %v4214 = vmax.f32 %v4164, %v4209
  %v4216 = vlaneseq
  %v4217 = vshrl.u32 %v4216, 7
  %v4218 = vsub.s32 0, %v4217
  %v4219 = vrot.slane %v39, %v4218
  %v4221 = vadd.f32 %v4210, %v4219
  %v4222 = vadd.f32 %v4211, %v4219
  %v4223 = vadd.f32 %v4212, %v4219
  %v4224 = vadd.f32 %v4213, %v4219
  %v4225 = vadd.f32 %v4214, %v4219
  %v4226 = vmax.f32 %v4221, 0.0
  %v4227 = vmax.f32 %v4222, 0.0
  %v4228 = vmax.f32 %v4223, 0.0
  %v4229 = vmax.f32 %v4224, 0.0
  %v4230 = vmax.f32 %v4225, 0.0
  %v4231 = vld [vmem:[%s5] sm:$0xff]
  %v4232 = vld [vmem:[%s5 + $0x8] sm:$0xff]
  %v4233 = vld [vmem:[%s5 + $0x10] sm:$0xff]
  %v4234 = vld [vmem:[%s5 + $0x18] sm:$0xff]
  %v4235 = vld [vmem:[%s5 + $0x20] sm:$0xff]
  %v4236 = vld [vmem:[%s5 + $0x28] sm:$0xff]
  %v4237 = vld [vmem:[%s5 + $0x30] sm:$0xff]
  %v4238 = vld [vmem:[%s5 + $0x38] sm:$0xff]
  %v4239 = vld [vmem:[%s5 + $0x40] sm:$0xff]
  %v4240 = vld [vmem:[%s5 + $0x48] sm:$0xff]
  %s4241 = scalar_lea.vmem %s5, 80
  %v4242 = vld [vmem:[%s4241] sm:$0xff]
  %v4243 = vld [vmem:[%s4241 + $0x8] sm:$0xff]
  %v4244 = vld [vmem:[%s4241 + $0x10] sm:$0xff]
  %v4245 = vld [vmem:[%s4241 + $0x18] sm:$0xff]
  %v4246 = vld [vmem:[%s4241 + $0x20] sm:$0xff]
  %v4247 = vld [vmem:[%s4241 + $0x28] sm:$0xff]
  %v4248 = vld [vmem:[%s4241 + $0x30] sm:$0xff]
  %v4249 = vld [vmem:[%s4241 + $0x38] sm:$0xff]
  %v4250 = vld [vmem:[%s4241 + $0x40] sm:$0xff]
  %v4251 = vld [vmem:[%s4241 + $0x48] sm:$0xff]
  %vm4252 = vcmask 654336
  %v4254 = vsel %vm4252, %v4227, 0
  %4256 = vmatprep.subr.mxu0 0.0
  %4257 = vmatpush1.msra.mxu0 %v4242
  %4258 = vmatprep.subr.mxu0 0.0
  %4259 = vmatpush1.msra.mxu0 %v4243
  %4260 = vmatprep.subr.mxu0 0.0
  %4261 = vmatpush1.msra.mxu0 %v4244
  %4262 = vmatprep.subr.mxu0 0.0
  %4263 = vmatpush1.msra.mxu0 %v4245
  %4264 = vmatprep.subr.mxu0 0.0
  %4265 = vmatpush1.msra.mxu0 %v4246
  %4266 = vmatprep.subr.mxu0 0.0
  %4267 = vmatpush1.msra.mxu0 %v4247
  %4268 = vmatprep.subr.mxu0 0.0
  %4269 = vmatpush1.msra.mxu0 %v4248
  %4270 = vmatprep.subr.mxu0 0.0
  %4271 = vmatpush1.msra.mxu0 %v4249
  %4272 = vmatprep.subr.mxu0 0.0
  %4273 = vmatpush1.msra.mxu0 %v4250
  %4274 = vmatprep.subr.mxu0 0.0
  %4275 = vmatpush1.msra.mxu0 %v4251
  %4276 = vmatprep.subr.mxu0 0.0
  %4277 = vmatpush1.msra.mxu0 0.0
  %4278 = vmatprep.subr.mxu0 0.0
  %4279 = vmatpush1.msra.mxu0 0.0
  %4280 = vmatprep.subr.mxu0 0.0
  %4281 = vmatpush1.msra.mxu0 0.0
  %4282 = vmatprep.subr.mxu0 0.0
  %4283 = vmatpush1.msra.mxu0 0.0
  %4284 = vmatprep.subr.mxu0 0.0
  %4285 = vmatpush1.msra.mxu0 0.0
  %4286 = vmatprep.subr.mxu0 0.0
  %4287 = vmatpush1.msra.mxu0 0.0
  %4288 = vmatprep.subr.mxu0 0.0
  %4289 = vmatpush1.msra.mxu0 0.0
  %4290 = vmatprep.subr.mxu0 0.0
  %4291 = vmatpush1.msra.mxu0 0.0
  %4292 = vmatprep.subr.mxu0 0.0
  %4293 = vmatpush1.msra.mxu0 0.0
  %4294 = vmatprep.subr.mxu0 0.0
  %4295 = vmatpush1.msra.mxu0 0.0
  %4296 = vmatprep.subr.mxu0 0.0
  %4297 = vmatpush1.msra.mxu0 0.0
  %4298 = vmatprep.subr.mxu0 0.0
  %4299 = vmatpush1.msra.mxu0 0.0
  %4300 = vmatprep.subr.mxu0 0.0
  %4301 = vmatpush1.msra.mxu0 0.0
  %4302 = vmatprep.subr.mxu0 0.0
  %4303 = vmatpush1.msra.mxu0 0.0
  %4304 = vmatprep.subr.mxu0 0.0
  %4305 = vmatpush1.msra.mxu0 0.0
  %4306 = vmatprep.subr.mxu0 0.0
  %4307 = vmatpush1.msra.mxu0 0.0
  %4308 = vmatprep.subr.mxu0 0.0
  %4309 = vmatpush1.msra.mxu0 0.0
  %4310 = vmatprep.subr.mxu0 0.0
  %4311 = vmatpush1.msra.mxu0 0.0
  %4312 = vmatprep.subr.mxu0 0.0
  %4313 = vmatpush1.msra.mxu0 0.0
  %4314 = vmatprep.subr.mxu0 0.0
  %4315 = vmatpush1.msra.mxu0 0.0
  %4316 = vmatprep.subr.mxu0 0.0
  %4317 = vmatpush1.msra.mxu0 0.0
  %4318 = vmatprep.subr.mxu0 0.0
  %4319 = vmatpush1.msra.mxu0 0.0
  %4320 = vmatprep.mubr.f32.mxu0 0.0
  %4321 = vmatmul.mubr.f32.gmra.mrb[0].mxu0 %v4254
  %v4322 = vpop.f32.mrb[0].mxu0
  %v4323 = vadd.f32 0.0, %v4322
  %v4324 = vpop.f32.mrb[0].mxu0
  %4325 = vdwg.mxu0
  %v4327 = vsel %vm4252, %v4226, 0
  %4329 = vmatprep.subr.mxu0 0.0
  %4330 = vmatpush1.msra.mxu0 %v4231
  %4331 = vmatprep.subr.mxu0 0.0
  %4332 = vmatpush1.msra.mxu0 %v4232
  %4333 = vmatprep.subr.mxu0 0.0
  %4334 = vmatpush1.msra.mxu0 %v4233
  %4335 = vmatprep.subr.mxu0 0.0
  %4336 = vmatpush1.msra.mxu0 %v4234
  %4337 = vmatprep.subr.mxu0 0.0
  %4338 = vmatpush1.msra.mxu0 %v4235
  %4339 = vmatprep.subr.mxu0 0.0
  %4340 = vmatpush1.msra.mxu0 %v4236
  %4341 = vmatprep.subr.mxu0 0.0
  %4342 = vmatpush1.msra.mxu0 %v4237
  %4343 = vmatprep.subr.mxu0 0.0
  %4344 = vmatpush1.msra.mxu0 %v4238
  %4345 = vmatprep.subr.mxu0 0.0
  %4346 = vmatpush1.msra.mxu0 %v4239
  %4347 = vmatprep.subr.mxu0 0.0
  %4348 = vmatpush1.msra.mxu0 %v4240
  %4349 = vmatprep.subr.mxu0 0.0
  %4350 = vmatpush1.msra.mxu0 0.0
  %4351 = vmatprep.subr.mxu0 0.0
  %4352 = vmatpush1.msra.mxu0 0.0
  %4353 = vmatprep.subr.mxu0 0.0
  %4354 = vmatpush1.msra.mxu0 0.0
  %4355 = vmatprep.subr.mxu0 0.0
  %4356 = vmatpush1.msra.mxu0 0.0
  %4357 = vmatprep.subr.mxu0 0.0
  %4358 = vmatpush1.msra.mxu0 0.0
  %4359 = vmatprep.subr.mxu0 0.0
  %4360 = vmatpush1.msra.mxu0 0.0
  %4361 = vmatprep.subr.mxu0 0.0
  %4362 = vmatpush1.msra.mxu0 0.0
  %4363 = vmatprep.subr.mxu0 0.0
  %4364 = vmatpush1.msra.mxu0 0.0
  %4365 = vmatprep.subr.mxu0 0.0
  %4366 = vmatpush1.msra.mxu0 0.0
  %4367 = vmatprep.subr.mxu0 0.0
  %4368 = vmatpush1.msra.mxu0 0.0
  %4369 = vmatprep.subr.mxu0 0.0
  %4370 = vmatpush1.msra.mxu0 0.0
  %4371 = vmatprep.subr.mxu0 0.0
  %4372 = vmatpush1.msra.mxu0 0.0
  %4373 = vmatprep.subr.mxu0 0.0
  %4374 = vmatpush1.msra.mxu0 0.0
  %4375 = vmatprep.subr.mxu0 0.0
  %4376 = vmatpush1.msra.mxu0 0.0
  %4377 = vmatprep.subr.mxu0 0.0
  %4378 = vmatpush1.msra.mxu0 0.0
  %4379 = vmatprep.subr.mxu0 0.0
  %4380 = vmatpush1.msra.mxu0 0.0
  %4381 = vmatprep.subr.mxu0 0.0
  %4382 = vmatpush1.msra.mxu0 0.0
  %4383 = vmatprep.subr.mxu0 0.0
  %4384 = vmatpush1.msra.mxu0 0.0
  %4385 = vmatprep.subr.mxu0 0.0
  %4386 = vmatpush1.msra.mxu0 0.0
  %4387 = vmatprep.subr.mxu0 0.0
  %4388 = vmatpush1.msra.mxu0 0.0
  %4389 = vmatprep.subr.mxu0 0.0
  %4390 = vmatpush1.msra.mxu0 0.0
  %4391 = vmatprep.subr.mxu0 0.0
  %4392 = vmatpush1.msra.mxu0 0.0
  %4393 = vmatprep.mubr.f32.mxu0 0.0
  %4394 = vmatmul.mubr.f32.gmra.mrb[0].mxu0 %v4327
  %v4395 = vpop.f32.mrb[0].mxu0
  %v4396 = vadd.f32 %v4323, %v4395
  %v4397 = vpop.f32.mrb[0].mxu0
  %4398 = vdwg.mxu0
  %s4399 = scalar_lea.vmem %s5, 160
  %v4400 = vld [vmem:[%s4399] sm:$0xff]
  %v4401 = vld [vmem:[%s4399 + $0x8] sm:$0xff]
  %v4402 = vld [vmem:[%s4399 + $0x10] sm:$0xff]
  %v4403 = vld [vmem:[%s4399 + $0x18] sm:$0xff]
  %v4404 = vld [vmem:[%s4399 + $0x20] sm:$0xff]
  %v4405 = vld [vmem:[%s4399 + $0x28] sm:$0xff]
  %v4406 = vld [vmem:[%s4399 + $0x30] sm:$0xff]
  %v4407 = vld [vmem:[%s4399 + $0x38] sm:$0xff]
  %v4408 = vld [vmem:[%s4399 + $0x40] sm:$0xff]
  %v4409 = vld [vmem:[%s4399 + $0x48] sm:$0xff]
  %v4411 = vsel %vm4252, %v4228, 0
  %4413 = vmatprep.subr.mxu0 0.0
  %4414 = vmatpush1.msra.mxu0 %v4400
  %4415 = vmatprep.subr.mxu0 0.0
  %4416 = vmatpush1.msra.mxu0 %v4401
  %4417 = vmatprep.subr.mxu0 0.0
  %4418 = vmatpush1.msra.mxu0 %v4402
  %4419 = vmatprep.subr.mxu0 0.0
  %4420 = vmatpush1.msra.mxu0 %v4403
  %4421 = vmatprep.subr.mxu0 0.0
  %4422 = vmatpush1.msra.mxu0 %v4404
  %4423 = vmatprep.subr.mxu0 0.0
  %4424 = vmatpush1.msra.mxu0 %v4405
  %4425 = vmatprep.subr.mxu0 0.0
  %4426 = vmatpush1.msra.mxu0 %v4406
  %4427 = vmatprep.subr.mxu0 0.0
  %4428 = vmatpush1.msra.mxu0 %v4407
  %4429 = vmatprep.subr.mxu0 0.0
  %4430 = vmatpush1.msra.mxu0 %v4408
  %4431 = vmatprep.subr.mxu0 0.0
  %4432 = vmatpush1.msra.mxu0 %v4409
  %4433 = vmatprep.subr.mxu0 0.0
  %4434 = vmatpush1.msra.mxu0 0.0
  %4435 = vmatprep.subr.mxu0 0.0
  %4436 = vmatpush1.msra.mxu0 0.0
  %4437 = vmatprep.subr.mxu0 0.0
  %4438 = vmatpush1.msra.mxu0 0.0
  %4439 = vmatprep.subr.mxu0 0.0
  %4440 = vmatpush1.msra.mxu0 0.0
  %4441 = vmatprep.subr.mxu0 0.0
  %4442 = vmatpush1.msra.mxu0 0.0
  %4443 = vmatprep.subr.mxu0 0.0
  %4444 = vmatpush1.msra.mxu0 0.0
  %4445 = vmatprep.subr.mxu0 0.0
  %4446 = vmatpush1.msra.mxu0 0.0
  %4447 = vmatprep.subr.mxu0 0.0
  %4448 = vmatpush1.msra.mxu0 0.0
  %4449 = vmatprep.subr.mxu0 0.0
  %4450 = vmatpush1.msra.mxu0 0.0
  %4451 = vmatprep.subr.mxu0 0.0
  %4452 = vmatpush1.msra.mxu0 0.0
  %4453 = vmatprep.subr.mxu0 0.0
  %4454 = vmatpush1.msra.mxu0 0.0
  %4455 = vmatprep.subr.mxu0 0.0
  %4456 = vmatpush1.msra.mxu0 0.0
  %4457 = vmatprep.subr.mxu0 0.0
  %4458 = vmatpush1.msra.mxu0 0.0
  %4459 = vmatprep.subr.mxu0 0.0
  %4460 = vmatpush1.msra.mxu0 0.0
  %4461 = vmatprep.subr.mxu0 0.0
  %4462 = vmatpush1.msra.mxu0 0.0
  %4463 = vmatprep.subr.mxu0 0.0
  %4464 = vmatpush1.msra.mxu0 0.0
  %4465 = vmatprep.subr.mxu0 0.0
  %4466 = vmatpush1.msra.mxu0 0.0
  %4467 = vmatprep.subr.mxu0 0.0
  %4468 = vmatpush1.msra.mxu0 0.0
  %4469 = vmatprep.subr.mxu0 0.0
  %4470 = vmatpush1.msra.mxu0 0.0
  %4471 = vmatprep.subr.mxu0 0.0
  %4472 = vmatpush1.msra.mxu0 0.0
  %4473 = vmatprep.subr.mxu0 0.0
  %4474 = vmatpush1.msra.mxu0 0.0
  %4475 = vmatprep.subr.mxu0 0.0
  %4476 = vmatpush1.msra.mxu0 0.0
  %4477 = vmatprep.mubr.f32.mxu0 0.0
  %4478 = vmatmul.mubr.f32.gmra.mrb[0].mxu0 %v4411
  %v4479 = vpop.f32.mrb[0].mxu0
  %v4480 = vadd.f32 0.0, %v4479
  %v4481 = vpop.f32.mrb[0].mxu0
  %4482 = vdwg.mxu0
  %v4483 = vadd.f32 %v4396, %v4480
  %s4484 = scalar_lea.vmem %s5, 240
  %v4485 = vld [vmem:[%s4484] sm:$0xff]
  %v4486 = vld [vmem:[%s4484 + $0x8] sm:$0xff]
  %v4487 = vld [vmem:[%s4484 + $0x10] sm:$0xff]
  %v4488 = vld [vmem:[%s4484 + $0x18] sm:$0xff]
  %v4489 = vld [vmem:[%s4484 + $0x20] sm:$0xff]
  %v4490 = vld [vmem:[%s4484 + $0x28] sm:$0xff]
  %v4491 = vld [vmem:[%s4484 + $0x30] sm:$0xff]
  %v4492 = vld [vmem:[%s4484 + $0x38] sm:$0xff]
  %v4493 = vld [vmem:[%s4484 + $0x40] sm:$0xff]
  %v4494 = vld [vmem:[%s4484 + $0x48] sm:$0xff]
  %v4496 = vsel %vm4252, %v4229, 0
  %4498 = vmatprep.subr.mxu0 0.0
  %4499 = vmatpush1.msra.mxu0 %v4485
  %4500 = vmatprep.subr.mxu0 0.0
  %4501 = vmatpush1.msra.mxu0 %v4486
  %4502 = vmatprep.subr.mxu0 0.0
  %4503 = vmatpush1.msra.mxu0 %v4487
  %4504 = vmatprep.subr.mxu0 0.0
  %4505 = vmatpush1.msra.mxu0 %v4488
  %4506 = vmatprep.subr.mxu0 0.0
  %4507 = vmatpush1.msra.mxu0 %v4489
  %4508 = vmatprep.subr.mxu0 0.0
  %4509 = vmatpush1.msra.mxu0 %v4490
  %4510 = vmatprep.subr.mxu0 0.0
  %4511 = vmatpush1.msra.mxu0 %v4491
  %4512 = vmatprep.subr.mxu0 0.0
  %4513 = vmatpush1.msra.mxu0 %v4492
  %4514 = vmatprep.subr.mxu0 0.0
  %4515 = vmatpush1.msra.mxu0 %v4493
  %4516 = vmatprep.subr.mxu0 0.0
  %4517 = vmatpush1.msra.mxu0 %v4494
  %4518 = vmatprep.subr.mxu0 0.0
  %4519 = vmatpush1.msra.mxu0 0.0
  %4520 = vmatprep.subr.mxu0 0.0
  %4521 = vmatpush1.msra.mxu0 0.0
  %4522 = vmatprep.subr.mxu0 0.0
  %4523 = vmatpush1.msra.mxu0 0.0
  %4524 = vmatprep.subr.mxu0 0.0
  %4525 = vmatpush1.msra.mxu0 0.0
  %4526 = vmatprep.subr.mxu0 0.0
  %4527 = vmatpush1.msra.mxu0 0.0
  %4528 = vmatprep.subr.mxu0 0.0
  %4529 = vmatpush1.msra.mxu0 0.0
  %4530 = vmatprep.subr.mxu0 0.0
  %4531 = vmatpush1.msra.mxu0 0.0
  %4532 = vmatprep.subr.mxu0 0.0
  %4533 = vmatpush1.msra.mxu0 0.0
  %4534 = vmatprep.subr.mxu0 0.0
  %4535 = vmatpush1.msra.mxu0 0.0
  %4536 = vmatprep.subr.mxu0 0.0
  %4537 = vmatpush1.msra.mxu0 0.0
  %4538 = vmatprep.subr.mxu0 0.0
  %4539 = vmatpush1.msra.mxu0 0.0
  %4540 = vmatprep.subr.mxu0 0.0
  %4541 = vmatpush1.msra.mxu0 0.0
  %4542 = vmatprep.subr.mxu0 0.0
  %4543 = vmatpush1.msra.mxu0 0.0
  %4544 = vmatprep.subr.mxu0 0.0
  %4545 = vmatpush1.msra.mxu0 0.0
  %4546 = vmatprep.subr.mxu0 0.0
  %4547 = vmatpush1.msra.mxu0 0.0
  %4548 = vmatprep.subr.mxu0 0.0
  %4549 = vmatpush1.msra.mxu0 0.0
  %4550 = vmatprep.subr.mxu0 0.0
  %4551 = vmatpush1.msra.mxu0 0.0
  %4552 = vmatprep.subr.mxu0 0.0
  %4553 = vmatpush1.msra.mxu0 0.0
  %4554 = vmatprep.subr.mxu0 0.0
  %4555 = vmatpush1.msra.mxu0 0.0
  %4556 = vmatprep.subr.mxu0 0.0
  %4557 = vmatpush1.msra.mxu0 0.0
  %4558 = vmatprep.subr.mxu0 0.0
  %4559 = vmatpush1.msra.mxu0 0.0
  %4560 = vmatprep.subr.mxu0 0.0
  %4561 = vmatpush1.msra.mxu0 0.0
  %4562 = vmatprep.mubr.f32.mxu0 0.0
  %4563 = vmatmul.mubr.f32.gmra.mrb[0].mxu0 %v4496
  %v4564 = vpop.f32.mrb[0].mxu0
  %v4565 = vadd.f32 0.0, %v4564
  %v4566 = vpop.f32.mrb[0].mxu0
  %4567 = vdwg.mxu0
  %v4568 = vadd.f32 %v4483, %v4565
  %s4569 = scalar_lea.vmem %s5, 320
  %v4570 = vld [vmem:[%s4569] sm:$0xff]
  %v4571 = vld [vmem:[%s4569 + $0x8] sm:$0xff]
  %v4572 = vld [vmem:[%s4569 + $0x10] sm:$0xff]
  %v4573 = vld [vmem:[%s4569 + $0x18] sm:$0xff]
  %v4574 = vld [vmem:[%s4569 + $0x20] sm:$0xff]
  %v4575 = vld [vmem:[%s4569 + $0x28] sm:$0xff]
  %v4576 = vld [vmem:[%s4569 + $0x30] sm:$0xff]
  %v4577 = vld [vmem:[%s4569 + $0x38] sm:$0xff]
  %v4578 = vld [vmem:[%s4569 + $0x40] sm:$0xff]
  %v4579 = vld [vmem:[%s4569 + $0x48] sm:$0xff]
  %v4581 = vsel %vm4252, %v4230, 0
  %4583 = vmatprep.subr.mxu0 0.0
  %4584 = vmatpush1.msra.mxu0 %v4570
  %4585 = vmatprep.subr.mxu0 0.0
  %4586 = vmatpush1.msra.mxu0 %v4571
  %4587 = vmatprep.subr.mxu0 0.0
  %4588 = vmatpush1.msra.mxu0 %v4572
  %4589 = vmatprep.subr.mxu0 0.0
  %4590 = vmatpush1.msra.mxu0 %v4573
  %4591 = vmatprep.subr.mxu0 0.0
  %4592 = vmatpush1.msra.mxu0 %v4574
  %4593 = vmatprep.subr.mxu0 0.0
  %4594 = vmatpush1.msra.mxu0 %v4575
  %4595 = vmatprep.subr.mxu0 0.0
  %4596 = vmatpush1.msra.mxu0 %v4576
  %4597 = vmatprep.subr.mxu0 0.0
  %4598 = vmatpush1.msra.mxu0 %v4577
  %4599 = vmatprep.subr.mxu0 0.0
  %4600 = vmatpush1.msra.mxu0 %v4578
  %4601 = vmatprep.subr.mxu0 0.0
  %4602 = vmatpush1.msra.mxu0 %v4579
  %4603 = vmatprep.subr.mxu0 0.0
  %4604 = vmatpush1.msra.mxu0 0.0
  %4605 = vmatprep.subr.mxu0 0.0
  %4606 = vmatpush1.msra.mxu0 0.0
  %4607 = vmatprep.subr.mxu0 0.0
  %4608 = vmatpush1.msra.mxu0 0.0
  %4609 = vmatprep.subr.mxu0 0.0
  %4610 = vmatpush1.msra.mxu0 0.0
  %4611 = vmatprep.subr.mxu0 0.0
  %4612 = vmatpush1.msra.mxu0 0.0
  %4613 = vmatprep.subr.mxu0 0.0
  %4614 = vmatpush1.msra.mxu0 0.0
  %4615 = vmatprep.subr.mxu0 0.0
  %4616 = vmatpush1.msra.mxu0 0.0
  %4617 = vmatprep.subr.mxu0 0.0
  %4618 = vmatpush1.msra.mxu0 0.0
  %4619 = vmatprep.subr.mxu0 0.0
  %4620 = vmatpush1.msra.mxu0 0.0
  %4621 = vmatprep.subr.mxu0 0.0
  %4622 = vmatpush1.msra.mxu0 0.0
  %4623 = vmatprep.subr.mxu0 0.0
  %4624 = vmatpush1.msra.mxu0 0.0
  %4625 = vmatprep.subr.mxu0 0.0
  %4626 = vmatpush1.msra.mxu0 0.0
  %4627 = vmatprep.subr.mxu0 0.0
  %4628 = vmatpush1.msra.mxu0 0.0
  %4629 = vmatprep.subr.mxu0 0.0
  %4630 = vmatpush1.msra.mxu0 0.0
  %4631 = vmatprep.subr.mxu0 0.0
  %4632 = vmatpush1.msra.mxu0 0.0
  %4633 = vmatprep.subr.mxu0 0.0
  %4634 = vmatpush1.msra.mxu0 0.0
  %4635 = vmatprep.subr.mxu0 0.0
  %4636 = vmatpush1.msra.mxu0 0.0
  %4637 = vmatprep.subr.mxu0 0.0
  %4638 = vmatpush1.msra.mxu0 0.0
  %4639 = vmatprep.subr.mxu0 0.0
  %4640 = vmatpush1.msra.mxu0 0.0
  %4641 = vmatprep.subr.mxu0 0.0
  %4642 = vmatpush1.msra.mxu0 0.0
  %4643 = vmatprep.subr.mxu0 0.0
  %4644 = vmatpush1.msra.mxu0 0.0
  %4645 = vmatprep.subr.mxu0 0.0
  %4646 = vmatpush1.msra.mxu0 0.0
  %4647 = vmatprep.mubr.f32.mxu0 0.0
  %4648 = vmatmul.mubr.f32.gmra.mrb[0].mxu0 %v4581
  %v4649 = vpop.f32.mrb[0].mxu0
  %v4650 = vadd.f32 0.0, %v4649
  %v4651 = vpop.f32.mrb[0].mxu0
  %4652 = vdwg.mxu0
  %v4653 = vadd.f32 %v4568, %v4650
  %v4654 = vld [vmem:[%s6] sm:$0x1]
  %v4656 = vlaneseq
  %v4657 = vshrl.u32 %v4656, 7
  %v4658 = vsub.s32 0, %v4657
  %v4659 = vrot.slane %v4654, %v4658
  %v4661 = vadd.f32 %v4653, %v4659
  %v4662 = vmax.f32 %v4661, 0.0
  %v4663 = vld [vmem:[%s7] sm:$0xff]
  %v4664 = vld [vmem:[%s7 + $0x8] sm:$0xff]
  %v4665 = vld [vmem:[%s7 + $0x10] sm:$0xff]
  %v4666 = vld [vmem:[%s7 + $0x18] sm:$0xff]
  %v4667 = vld [vmem:[%s7 + $0x20] sm:$0xff]
  %v4668 = vld [vmem:[%s7 + $0x28] sm:$0xff]
  %v4669 = vld [vmem:[%s7 + $0x30] sm:$0xff]
  %v4670 = vld [vmem:[%s7 + $0x38] sm:$0xff]
  %v4671 = vld [vmem:[%s7 + $0x40] sm:$0xff]
  %v4672 = vld [vmem:[%s7 + $0x48] sm:$0xff]
  %v4673 = vld [vmem:[%s7 + $0x50] sm:$0xff]
  %v4674 = vld [vmem:[%s7 + $0x58] sm:$0xff]
  %v4675 = vld [vmem:[%s7 + $0x60] sm:$0xff]
  %v4676 = vld [vmem:[%s7 + $0x68] sm:$0xff]
  %v4677 = vld [vmem:[%s7 + $0x70] sm:$0xff]
  %v4678 = vld [vmem:[%s8] sm:$0x1]
  %v4680 = vlaneseq
  %v4681 = vshrl.u32 %v4680, 7
  %v4682 = vsub.s32 0, %v4681
  %v4683 = vrot.slane %v4678, %v4682
  %vm4685 = vcmask 982016
  %v4687 = vsel %vm4685, %v4662, 0
  %4689 = vmatprep.subr.mxu0 0.0
  %4690 = vmatpush1.msra.mxu0 %v4663
  %4691 = vmatprep.subr.mxu0 0.0
  %4692 = vmatpush1.msra.mxu0 %v4664
  %4693 = vmatprep.subr.mxu0 0.0
  %4694 = vmatpush1.msra.mxu0 %v4665
  %4695 = vmatprep.subr.mxu0 0.0
  %4696 = vmatpush1.msra.mxu0 %v4666
  %4697 = vmatprep.subr.mxu0 0.0
  %4698 = vmatpush1.msra.mxu0 %v4667
  %4699 = vmatprep.subr.mxu0 0.0
  %4700 = vmatpush1.msra.mxu0 %v4668
  %4701 = vmatprep.subr.mxu0 0.0
  %4702 = vmatpush1.msra.mxu0 %v4669
  %4703 = vmatprep.subr.mxu0 0.0
  %4704 = vmatpush1.msra.mxu0 %v4670
  %4705 = vmatprep.subr.mxu0 0.0
  %4706 = vmatpush1.msra.mxu0 %v4671
  %4707 = vmatprep.subr.mxu0 0.0
  %4708 = vmatpush1.msra.mxu0 %v4672
  %4709 = vmatprep.subr.mxu0 0.0
  %4710 = vmatpush1.msra.mxu0 %v4673
  %4711 = vmatprep.subr.mxu0 0.0
  %4712 = vmatpush1.msra.mxu0 %v4674
  %4713 = vmatprep.subr.mxu0 0.0
  %4714 = vmatpush1.msra.mxu0 %v4675
  %4715 = vmatprep.subr.mxu0 0.0
  %4716 = vmatpush1.msra.mxu0 %v4676
  %4717 = vmatprep.subr.mxu0 0.0
  %4718 = vmatpush1.msra.mxu0 %v4677
  %4719 = vmatprep.subr.mxu0 0.0
  %4720 = vmatpush1.msra.mxu0 0.0
  %4721 = vmatprep.subr.mxu0 0.0
  %4722 = vmatpush1.msra.mxu0 0.0
  %4723 = vmatprep.subr.mxu0 0.0
  %4724 = vmatpush1.msra.mxu0 0.0
  %4725 = vmatprep.subr.mxu0 0.0
  %4726 = vmatpush1.msra.mxu0 0.0
  %4727 = vmatprep.subr.mxu0 0.0
  %4728 = vmatpush1.msra.mxu0 0.0
  %4729 = vmatprep.subr.mxu0 0.0
  %4730 = vmatpush1.msra.mxu0 0.0
  %4731 = vmatprep.subr.mxu0 0.0
  %4732 = vmatpush1.msra.mxu0 0.0
  %4733 = vmatprep.subr.mxu0 0.0
  %4734 = vmatpush1.msra.mxu0 0.0
  %4735 = vmatprep.subr.mxu0 0.0
  %4736 = vmatpush1.msra.mxu0 0.0
  %4737 = vmatprep.subr.mxu0 0.0
  %4738 = vmatpush1.msra.mxu0 0.0
  %4739 = vmatprep.subr.mxu0 0.0
  %4740 = vmatpush1.msra.mxu0 0.0
  %4741 = vmatprep.subr.mxu0 0.0
  %4742 = vmatpush1.msra.mxu0 0.0
  %4743 = vmatprep.subr.mxu0 0.0
  %4744 = vmatpush1.msra.mxu0 0.0
  %4745 = vmatprep.subr.mxu0 0.0
  %4746 = vmatpush1.msra.mxu0 0.0
  %4747 = vmatprep.subr.mxu0 0.0
  %4748 = vmatpush1.msra.mxu0 0.0
  %4749 = vmatprep.subr.mxu0 0.0
  %4750 = vmatpush1.msra.mxu0 0.0
  %4751 = vmatprep.subr.mxu0 0.0
  %4752 = vmatpush1.msra.mxu0 0.0
  %4753 = vmatprep.mubr.f32.mxu0 0.0
  %4754 = vmatmul.mubr.f32.gmra.mrb[0].mxu0 %v4687
  %v4755 = vpop.f32.mrb[0].mxu0
  %v4756 = vadd.f32 %v4683, %v4755
  %v4757 = vpop.f32.mrb[0].mxu0
  %4758 = vdwg.mxu0
  %v4759 = vmax.f32 %v4756, 0.0
  %v4760 = vld [vmem:[%s9] sm:$0xff]
  %v4761 = vld [vmem:[%s9 + $0x8] sm:$0xff]
  %v4762 = vld [vmem:[%s9 + $0x10] sm:$0xff]
  %v4763 = vld [vmem:[%s9 + $0x18] sm:$0xff]
  %v4764 = vld [vmem:[%s9 + $0x20] sm:$0xff]
  %v4765 = vld [vmem:[%s9 + $0x28] sm:$0xff]
  %v4766 = vld [vmem:[%s9 + $0x30] sm:$0xff]
  %v4767 = vld [vmem:[%s9 + $0x38] sm:$0xff]
  %v4768 = vld [vmem:[%s9 + $0x40] sm:$0xff]
  %v4769 = vld [vmem:[%s9 + $0x48] sm:$0xff]
  %v4770 = vld [vmem:[%s9 + $0x50] sm:$0xf]
  %v4771 = vld [vmem:[%s10] sm:$0x1]
  %v4773 = vlaneseq
  %v4774 = vshrl.u32 %v4773, 7
  %v4775 = vsub.s32 0, %v4774
  %v4776 = vrot.slane %v4771, %v4775
  %v4779 = vsel %vm2966, %v4759, 0
  %v4782 = vsel %vm2982, %v4770, 0
  %4784 = vmatprep.subr.mxu0 0.0
  %4785 = vmatpush1.msra.mxu0 %v4760
  %4786 = vmatprep.subr.mxu0 0.0
  %4787 = vmatpush1.msra.mxu0 %v4761
  %4788 = vmatprep.subr.mxu0 0.0
  %4789 = vmatpush1.msra.mxu0 %v4762
  %4790 = vmatprep.subr.mxu0 0.0
  %4791 = vmatpush1.msra.mxu0 %v4763
  %4792 = vmatprep.subr.mxu0 0.0
  %4793 = vmatpush1.msra.mxu0 %v4764
  %4794 = vmatprep.subr.mxu0 0.0
  %4795 = vmatpush1.msra.mxu0 %v4765
  %4796 = vmatprep.subr.mxu0 0.0
  %4797 = vmatpush1.msra.mxu0 %v4766
  %4798 = vmatprep.subr.mxu0 0.0
  %4799 = vmatpush1.msra.mxu0 %v4767
  %4800 = vmatprep.subr.mxu0 0.0
  %4801 = vmatpush1.msra.mxu0 %v4768
  %4802 = vmatprep.subr.mxu0 0.0
  %4803 = vmatpush1.msra.mxu0 %v4769
  %4804 = vmatprep.subr.mxu0 0.0
  %4805 = vmatpush1.msra.mxu0 %v4782
  %4806 = vmatprep.subr.mxu0 0.0
  %4807 = vmatpush1.msra.mxu0 0.0
  %4808 = vmatprep.subr.mxu0 0.0
  %4809 = vmatpush1.msra.mxu0 0.0
  %4810 = vmatprep.subr.mxu0 0.0
  %4811 = vmatpush1.msra.mxu0 0.0
  %4812 = vmatprep.subr.mxu0 0.0
  %4813 = vmatpush1.msra.mxu0 0.0
  %4814 = vmatprep.subr.mxu0 0.0
  %4815 = vmatpush1.msra.mxu0 0.0
  %4816 = vmatprep.subr.mxu0 0.0
  %4817 = vmatpush1.msra.mxu0 0.0
  %4818 = vmatprep.subr.mxu0 0.0
  %4819 = vmatpush1.msra.mxu0 0.0
  %4820 = vmatprep.subr.mxu0 0.0
  %4821 = vmatpush1.msra.mxu0 0.0
  %4822 = vmatprep.subr.mxu0 0.0
  %4823 = vmatpush1.msra.mxu0 0.0
  %4824 = vmatprep.subr.mxu0 0.0
  %4825 = vmatpush1.msra.mxu0 0.0
  %4826 = vmatprep.subr.mxu0 0.0
  %4827 = vmatpush1.msra.mxu0 0.0
  %4828 = vmatprep.subr.mxu0 0.0
  %4829 = vmatpush1.msra.mxu0 0.0
  %4830 = vmatprep.subr.mxu0 0.0
  %4831 = vmatpush1.msra.mxu0 0.0
  %4832 = vmatprep.subr.mxu0 0.0
  %4833 = vmatpush1.msra.mxu0 0.0
  %4834 = vmatprep.subr.mxu0 0.0
  %4835 = vmatpush1.msra.mxu0 0.0
  %4836 = vmatprep.subr.mxu0 0.0
  %4837 = vmatpush1.msra.mxu0 0.0
  %4838 = vmatprep.subr.mxu0 0.0
  %4839 = vmatpush1.msra.mxu0 0.0
  %4840 = vmatprep.subr.mxu0 0.0
  %4841 = vmatpush1.msra.mxu0 0.0
  %4842 = vmatprep.subr.mxu0 0.0
  %4843 = vmatpush1.msra.mxu0 0.0
  %4844 = vmatprep.subr.mxu0 0.0
  %4845 = vmatpush1.msra.mxu0 0.0
  %4846 = vmatprep.subr.mxu0 0.0
  %4847 = vmatpush1.msra.mxu0 0.0
  %4848 = vmatprep.mubr.f32.mxu0 0.0
  %4849 = vmatmul.mubr.f32.gmra.mrb[0].mxu0 %v4779
  %v4850 = vpop.f32.mrb[0].mxu0
  %v4851 = vadd.f32 %v4776, %v4850
  %v4852 = vpop.f32.mrb[0].mxu0
  %4853 = vdwg.mxu0
  %4854 = vst [vmem:[%s11] sm:$0xff] %v4851
  // Predicated region
  $region46: #{lenet5_forward.1} parent=0 // pred_check
    _
  $region47: #{lenet5_forward.1} parent=0 // pred_check_branch
    %4856 = sbr.rel (0) target = $region49
  $region48: #{lenet5_forward.1} parent=0 // pred_region
    _
  $region49: #{lenet5_forward.1} parent=0 // pred_fallthru
    _
  // Predicated region
  $region50: #{lenet5_forward.1} parent=0 // pred_check
    _
  $region51: #{lenet5_forward.1} parent=0 // pred_check_branch
    %4858 = sbr.rel (0) target = $region53
  $region52: #{lenet5_forward.1} parent=0 // pred_region
    _
  $region53: #{lenet5_forward.1} parent=0 // pred_fallthru
    _

</llo_original>
